<compile_context>
chip_gen: v7x
topology: tpu7x:2x2x1
jax: 0.10.0
libtpu: 0.0.40
codegen_flags: <defaults>
</compile_context>

<pallas_src>
import math
import numpy as np
import jax
import jax.numpy as jnp
from jax.experimental import pallas as pl
from jax.experimental.pallas import tpu as pltpu

# ---------------- config ----------------
B = 2            # batch
S = 8            # sequence length
H = 32           # hidden_size
NH = 4           # num_attention_heads
HD = 8           # head_dim  (NH*HD == H)
KVC = 16         # kv_compressed_dim
QC = 16          # query_compressed_dim
I = 64           # intermediate_size
EPS = 1e-6
ROPE_THETA = 10000.0
BS = B * S

# ---------------- parameter-slab layout (width 128, f32) ----------------
SLAB_COLS = 128
# row 0: rms1(0:32) | rms2(32:64) | b_O(64:96) | b2(96:128)
# row 1: b_DKV(0:16)|b_DQ(16:32)  | b_UK(32:64)|b_UV(64:96)
# row 2: b_UQ*s(0:32) | (b_UQ@P)*s(32:64) | b_UK@P(64:96)
# row 3: b1(0:64) | b3(64:128)
R_ROPE = 8       # rows 8..23 : cos_full(0:32) | sin_full(32:64)      (B*S rows)
R_WD = 24        # rows 24..55: [W_DKV^T|W_DQ^T](0:32) | W_O^T(32:64)
R_WU = 56        # rows 56..71: [W_UK^T|W_UV^T](0:64) | W_UQ^T*s(64:96) | (W_UQ^T@P)*s(96:128)
R_WKR = 72       # rows 72..87: W_UK^T@P (0:32)
R_W13 = 88       # rows 88..119: [w1^T | w3^T] (0:128)
R_W2 = 120       # rows 120..183: w2^T (0:32)
SLAB_ROWS = 184


def _rotate_half(x):
    half = x.shape[-1] // 2
    return jnp.concatenate([-x[..., half:], x[..., :half]], axis=-1)


# ---------------- Pallas kernel ----------------
def quasar_block_kernel(x_ref, slab_ref, out_ref):
    x = x_ref[...]                                   # (BS, H) float32

    # --- unpack parameter slab (static ref slices; a single DMA brought everything in) ---
    rms1 = slab_ref[0:1, 0:H]
    rms2 = slab_ref[0:1, H:2 * H]
    b_o = slab_ref[0:1, 2 * H:3 * H]
    b_2 = slab_ref[0:1, 3 * H:4 * H]
    b_d = slab_ref[1:2, 0:KVC + QC]                  # [b_DKV | b_DQ]
    b_ukv = slab_ref[1:2, 32:32 + 2 * H]             # [b_UK | b_UV]
    b_uq = slab_ref[2:3, 0:H]                        # scaled
    b_uqr = slab_ref[2:3, H:2 * H]                   # rotated + scaled
    b_ukr = slab_ref[2:3, 2 * H:3 * H]               # rotated
    b_13 = slab_ref[3:4, 0:2 * I]                    # [b1 | b3]
    cosf = slab_ref[R_ROPE:R_ROPE + BS, 0:H]         # (BS, H)
    sinf = slab_ref[R_ROPE:R_ROPE + BS, H:2 * H]
    w_d = slab_ref[R_WD:R_WD + H, 0:KVC + QC]        # (H, 32) = [W_DKV^T | W_DQ^T]
    w_o = slab_ref[R_WD:R_WD + H, 32:32 + H]         # (H, H)
    w_ukv = slab_ref[R_WU:R_WU + KVC, 0:2 * H]       # (KVC, 64) = [W_UK^T | W_UV^T]
    w_uq = slab_ref[R_WU:R_WU + QC, 64:64 + H]       # (QC, H), 1/sqrt(HD) folded
    w_uqr = slab_ref[R_WU:R_WU + QC, 96:96 + H]      # (QC, H), rotate + scale folded
    w_ukr = slab_ref[R_WKR:R_WKR + KVC, 0:H]         # (KVC, H), rotate folded
    w_13 = slab_ref[R_W13:R_W13 + H, 0:2 * I]        # (H, 2I) = [w1^T | w3^T]
    w_2 = slab_ref[R_W2:R_W2 + I, 0:H]               # (I, H)

    def rmsnorm(z, w):
        var = jnp.mean(z * z, axis=-1, keepdims=True)
        return (z * jax.lax.rsqrt(var + EPS)) * w

    def mm(a, b):
        return jnp.dot(a, b, preferred_element_type=jnp.float32)

    # --- pre-attention RMSNorm + MLA latent projections ---
    n1 = rmsnorm(x, rms1)

    ckq = mm(n1, w_d) + b_d                          # (BS, 32): [c_kv | c_q]
    c_kv = ckq[:, :KVC]
    c_q = ckq[:, KVC:KVC + QC]

    kv = mm(c_kv, w_ukv) + b_ukv                     # (BS, 64): [k | v]
    k = kv[:, :H]
    v = kv[:, H:2 * H]
    k_rot = mm(c_kv, w_ukr) + b_ukr                  # rotate_half(k)  (folded into weights)
    q = mm(c_q, w_uq) + b_uq                         # q / sqrt(HD)
    q_rot = mm(c_q, w_uqr) + b_uqr                   # rotate_half(q) / sqrt(HD)

    # RoPE: zero-padded cos/sin columns make per-head upper halves exactly zero,
    # matching the torch apply_rotary_pos_emb semantics.  Pure VPU math, no shuffles.
    q_r = q * cosf + q_rot * sinf                    # (BS, H), score scale pre-folded
    k_r = k * cosf + k_rot * sinf                    # (BS, H) -> also the k cache

    # --- attention: per-(batch, head) small matmuls, accumulated straight through W_O ---
    attn_rows = []
    for b in range(B):
        r0 = b * S
        acc = None
        for h in range(NH):
            lo = h * HD
            qh = q_r[r0:r0 + S, lo:lo + HD]          # (S, HD)
            kh = k_r[r0:r0 + S, lo:lo + HD]
            vh = v[r0:r0 + S, lo:lo + HD]
            s = mm(qh, kh.T)                         # (S, S), 1/sqrt(HD) already applied
            s = s - jnp.max(s, axis=-1, keepdims=True)
            e = jnp.exp(s)
            p = e * pl.reciprocal(jnp.sum(e, axis=-1, keepdims=True), approx=True)
            ctx_h = mm(p, vh)                        # (S, HD)
            part = mm(ctx_h, w_o[lo:lo + HD, :])     # (S, H) : ctx_h @ W_O[head rows]
            acc = part if acc is None else acc + part
        attn_rows.append(acc)
    attn = jnp.concatenate(attn_rows, axis=0) + b_o  # (BS, H)

    h1 = x + attn                                    # residual 1 (dropout=0 in eval)

    # --- post-attention RMSNorm + SwiGLU FFN (fused w1|w3 matmul) ---
    n2 = rmsnorm(h1, rms2)
    au = mm(n2, w_13) + b_13                         # (BS, 2I): [a | u]
    a = au[:, :I]
    u = au[:, I:2 * I]
    f = mm(a * jax.nn.sigmoid(a) * u, w_2) + b_2     # (BS, H)
    y = h1 + f

    # --- lane-dense fused output: [y | k_r | v | 0-pad] -> (BS, 128), one unmasked store ---
    pad = jnp.zeros((BS, SLAB_COLS - 3 * H), jnp.float32)
    out_ref[...] = jnp.concatenate([y, k_r, v, pad], axis=-1)


# ---------------- host-side helpers ----------------
def precompute_cos_sin_padded(seq_len, head_dim, theta=ROPE_THETA):
    """precompute_freqs_cis + the gather/zero-pad logic of apply_rotary_pos_emb (numpy)."""
    dim = head_dim                               # min(rope_dim_per_head, head_dim)
    end = seq_len * 2                            # max_seq_length * 2
    inv = 1.0 / (theta ** (np.arange(0, dim, 2)[: dim // 2].astype(np.float32) / dim))
    t = np.arange(end, dtype=np.float32)
    freqs = np.outer(t, inv)
    cos_full = np.cos(freqs).astype(np.float32)
    sin_full = np.sin(freqs).astype(np.float32)
    pos = np.arange(seq_len)
    cos_g = cos_full[pos]
    sin_g = sin_full[pos]
    pad = head_dim - cos_g.shape[-1]
    return (np.pad(cos_g, ((0, 0), (0, pad))).astype(np.float32),
            np.pad(sin_g, ((0, 0), (0, pad))).astype(np.float32))


def init_params(key):
    ks = jax.random.split(key, 20)

    def lin(k, out_dim, in_dim):
        w = jax.random.normal(k, (out_dim, in_dim), jnp.float32) * 0.05
        b = jax.random.normal(jax.random.fold_in(k, 7), (out_dim,), jnp.float32) * 0.02
        return w, b

    p = {}
    p["rms1"] = jnp.ones((H,), jnp.float32)
    p["rms2"] = jnp.ones((H,), jnp.float32)
    p["W_DKV"], p["b_DKV"] = lin(ks[0], KVC, H)
    p["W_UK"], p["b_UK"] = lin(ks[1], NH * HD, KVC)
    p["W_UV"], p["b_UV"] = lin(ks[2], NH * HD, KVC)
    p["W_DQ"], p["b_DQ"] = lin(ks[3], QC, H)
    p["W_UQ"], p["b_UQ"] = lin(ks[4], NH * HD, QC)
    p["W_O"], p["b_O"] = lin(ks[5], H, NH * HD)
    p["w1"], p["b1"] = lin(ks[6], I, H)
    p["w2"], p["b2"] = lin(ks[7], H, I)
    p["w3"], p["b3"] = lin(ks[8], I, H)
    return p


def pack_params(p):
    """One-time (hoisted) packing: transpose, fold rotate_half + score scale, build slab."""
    scale = np.float32(1.0 / math.sqrt(HD))

    # rotate_half as a right-multiplied permutation-with-sign matrix, per head block.
    half = HD // 2
    Ph = np.zeros((HD, HD), np.float32)
    Ph[:half, half:] = np.eye(half, dtype=np.float32)    # x1 ->  second half
    Ph[half:, :half] = -np.eye(half, dtype=np.float32)   # x2 -> -first half
    P = np.kron(np.eye(NH, dtype=np.float32), Ph)        # (H, H), block diagonal

    def npf(a):
        return np.asarray(a, np.float32)

    w_dkv_t = npf(p["W_DKV"]).T      # (H, KVC)
    w_dq_t = npf(p["W_DQ"]).T        # (H, QC)
    w_uk_t = npf(p["W_UK"]).T        # (KVC, H)
    w_uv_t = npf(p["W_UV"]).T        # (KVC, H)
    w_uq_t = npf(p["W_UQ"]).T        # (QC, H)
    w_o_t = npf(p["W_O"]).T          # (H, H)
    w1_t = npf(p["w1"]).T            # (H, I)
    w2_t = npf(p["w2"]).T            # (I, H)
    w3_t = npf(p["w3"]).T            # (H, I)

    w_ukr_t = w_uk_t @ P                     # rotate_half folded into k up-proj
    b_ukr = npf(p["b_UK"]) @ P
    w_uqs_t = w_uq_t * scale                 # score scale folded into q up-proj
    b_uqs = npf(p["b_UQ"]) * scale
    w_uqrs_t = (w_uq_t @ P) * scale
    b_uqrs = (npf(p["b_UQ"]) @ P) * scale

    cos_p, sin_p = precompute_cos_sin_padded(S, HD)          # (S, HD)
    cos_full = np.tile(np.tile(cos_p, (1, NH)), (B, 1))      # (B*S, H)
    sin_full = np.tile(np.tile(sin_p, (1, NH)), (B, 1))

    slab = np.zeros((SLAB_ROWS, SLAB_COLS), np.float32)
    slab[0, 0:H] = npf(p["rms1"])
    slab[0, H:2 * H] = npf(p["rms2"])
    slab[0, 2 * H:3 * H] = npf(p["b_O"])
    slab[0, 3 * H:4 * H] = npf(p["b2"])
    slab[1, 0:KVC] = npf(p["b_DKV"])
    slab[1, KVC:KVC + QC] = npf(p["b_DQ"])
    slab[1, 32:32 + H] = npf(p["b_UK"])
    slab[1, 32 + H:32 + 2 * H] = npf(p["b_UV"])
    slab[2, 0:H] = b_uqs
    slab[2, H:2 * H] = b_uqrs
    slab[2, 2 * H:3 * H] = b_ukr
    slab[3, 0:I] = npf(p["b1"])
    slab[3, I:2 * I] = npf(p["b3"])
    slab[R_ROPE:R_ROPE + BS, 0:H] = cos_full
    slab[R_ROPE:R_ROPE + BS, H:2 * H] = sin_full
    slab[R_WD:R_WD + H, 0:KVC] = w_dkv_t
    slab[R_WD:R_WD + H, KVC:KVC + QC] = w_dq_t
    slab[R_WD:R_WD + H, 32:32 + H] = w_o_t
    slab[R_WU:R_WU + KVC, 0:H] = w_uk_t
    slab[R_WU:R_WU + KVC, H:2 * H] = w_uv_t
    slab[R_WU:R_WU + QC, 64:64 + H] = w_uqs_t
    slab[R_WU:R_WU + QC, 96:96 + H] = w_uqrs_t
    slab[R_WKR:R_WKR + KVC, 0:H] = w_ukr_t
    slab[R_W13:R_W13 + H, 0:I] = w1_t
    slab[R_W13:R_W13 + H, I:2 * I] = w3_t
    slab[R_W2:R_W2 + I, 0:H] = w2_t
    return jnp.asarray(slab)


@jax.jit
def quasar_block_pallas(x, slab):
    x2d = x.reshape(BS, H)
    res = pl.pallas_call(
        quasar_block_kernel,
        out_shape=jax.ShapeDtypeStruct((BS, SLAB_COLS), jnp.float32),
        in_specs=[pl.BlockSpec(memory_space=pltpu.MemorySpace.VMEM),
                  pl.BlockSpec(memory_space=pltpu.MemorySpace.VMEM)],
        out_specs=pl.BlockSpec(memory_space=pltpu.MemorySpace.VMEM),
    )(x2d, slab)
    y = res[:, :H].reshape(B, S, H)
    k_cache = res[:, H:2 * H].reshape(B, S, NH, HD)       # matches torch current_key_value[0]
    v_cache = res[:, 2 * H:3 * H].reshape(B, S, NH, HD)   # matches torch current_key_value[1]
    return y, (k_cache, v_cache)


# ---------------- pure-JAX reference (for correctness check) ----------------
def quasar_block_ref(x, p):
    cos_np, sin_np = precompute_cos_sin_padded(S, HD)
    cos = jnp.asarray(cos_np)
    sin = jnp.asarray(sin_np)

    def rms(z, w):
        var = jnp.mean(z * z, axis=-1, keepdims=True)
        return (z * jax.lax.rsqrt(var + EPS)) * w

    n1 = rms(x, p["rms1"])
    c_kv = n1 @ p["W_DKV"].T + p["b_DKV"]
    k = (c_kv @ p["W_UK"].T + p["b_UK"]).reshape(B, S, NH, HD)
    v = (c_kv @ p["W_UV"].T + p["b_UV"]).reshape(B, S, NH, HD)
    c_q = n1 @ p["W_DQ"].T + p["b_DQ"]
    q = (c_q @ p["W_UQ"].T + p["b_UQ"]).reshape(B, S, NH, HD)

    cos4 = cos[None, :, None, :]
    sin4 = sin[None, :, None, :]
    q_r = q * cos4 + _rotate_half(q) * sin4
    k_r = k * cos4 + _rotate_half(k) * sin4

    scores = jnp.einsum("bqhd,bkhd->bhqk", q_r, k_r) / math.sqrt(HD)
    probs = jax.nn.softmax(scores, axis=-1)
    ctx = jnp.einsum("bhqk,bkhd->bqhd", probs, v).reshape(B, S, H)
    attn_out = ctx @ p["W_O"].T + p["b_O"]

    h1 = x + attn_out
    n2 = rms(h1, p["rms2"])
    a = n2 @ p["w1"].T + p["b1"]
    g = a * jax.nn.sigmoid(a)
    u = n2 @ p["w3"].T + p["b3"]
    f = (g * u) @ p["w2"].T + p["b2"]
    return h1 + f, (k_r, v)


if __name__ == "__main__":
    key = jax.random.PRNGKey(0)
    kx, kp = jax.random.split(key)
    x = jax.random.normal(kx, (B, S, H), jnp.float32)
    params = init_params(kp)
    slab = pack_params(params)     # hoisted one-time packing (not in the per-call path)

    out, (k_cache, v_cache) = quasar_block_pallas(x, slab)
    jax.block_until_ready(out)

    out_ref, (k_ref, v_ref) = quasar_block_ref(x, params)
    np.testing.assert_allclose(np.asarray(out), np.asarray(out_ref), rtol=2e-3, atol=2e-3)
    np.testing.assert_allclose(np.asarray(k_cache), np.asarray(k_ref), rtol=2e-3, atol=2e-3)
    np.testing.assert_allclose(np.asarray(v_cache), np.asarray(v_ref), rtol=2e-3, atol=2e-3)

    print("KERNEL_OK")
</pallas_src>

<mosaic_0001>
module attributes {stable_mosaic.version = 11 : i64} {
  func.func @quasar_block_kernel(%arg0: memref<16x32xf32, #tpu.memory_space<vmem>>, %arg1: memref<184x128xf32, #tpu.memory_space<vmem>>, %arg2: memref<16x128xf32, #tpu.memory_space<vmem>>) attributes {dimension_semantics = [], scalar_prefetch = 0 : i64, scratch_operands = 0 : i64, tpu.core_type = #tpu.core_type<tc>} {
    %c0 = arith.constant 0 : index
    %c0_0 = arith.constant 0 : index
    %0 = vector.load %arg0[%c0, %c0_0] : memref<16x32xf32, #tpu.memory_space<vmem>>, vector<16x32xf32>
    %c0_1 = arith.constant 0 : index
    %c0_2 = arith.constant 0 : index
    %1 = vector.load %arg1[%c0_1, %c0_2] : memref<184x128xf32, #tpu.memory_space<vmem>>, vector<1x32xf32>
    %c0_3 = arith.constant 0 : index
    %c32 = arith.constant 32 : index
    %2 = vector.load %arg1[%c0_3, %c32] : memref<184x128xf32, #tpu.memory_space<vmem>>, vector<1x32xf32>
    %c0_4 = arith.constant 0 : index
    %c64 = arith.constant 64 : index
    %3 = vector.load %arg1[%c0_4, %c64] : memref<184x128xf32, #tpu.memory_space<vmem>>, vector<1x32xf32>
    %c0_5 = arith.constant 0 : index
    %c96 = arith.constant 96 : index
    %4 = vector.load %arg1[%c0_5, %c96] : memref<184x128xf32, #tpu.memory_space<vmem>>, vector<1x32xf32>
    %c1 = arith.constant 1 : index
    %c0_6 = arith.constant 0 : index
    %5 = vector.load %arg1[%c1, %c0_6] : memref<184x128xf32, #tpu.memory_space<vmem>>, vector<1x32xf32>
    %c1_7 = arith.constant 1 : index
    %c32_8 = arith.constant 32 : index
    %6 = vector.load %arg1[%c1_7, %c32_8] : memref<184x128xf32, #tpu.memory_space<vmem>>, vector<1x64xf32>
    %c2 = arith.constant 2 : index
    %c0_9 = arith.constant 0 : index
    %7 = vector.load %arg1[%c2, %c0_9] : memref<184x128xf32, #tpu.memory_space<vmem>>, vector<1x32xf32>
    %c2_10 = arith.constant 2 : index
    %c32_11 = arith.constant 32 : index
    %8 = vector.load %arg1[%c2_10, %c32_11] : memref<184x128xf32, #tpu.memory_space<vmem>>, vector<1x32xf32>
    %c2_12 = arith.constant 2 : index
    %c64_13 = arith.constant 64 : index
    %9 = vector.load %arg1[%c2_12, %c64_13] : memref<184x128xf32, #tpu.memory_space<vmem>>, vector<1x32xf32>
    %c3 = arith.constant 3 : index
    %c0_14 = arith.constant 0 : index
    %10 = vector.load %arg1[%c3, %c0_14] : memref<184x128xf32, #tpu.memory_space<vmem>>, vector<1x128xf32>
    %c8 = arith.constant 8 : index
    %c0_15 = arith.constant 0 : index
    %11 = vector.load %arg1[%c8, %c0_15] : memref<184x128xf32, #tpu.memory_space<vmem>>, vector<16x32xf32>
    %c8_16 = arith.constant 8 : index
    %c32_17 = arith.constant 32 : index
    %12 = vector.load %arg1[%c8_16, %c32_17] : memref<184x128xf32, #tpu.memory_space<vmem>>, vector<16x32xf32>
    %c24 = arith.constant 24 : index
    %c0_18 = arith.constant 0 : index
    %13 = vector.load %arg1[%c24, %c0_18] : memref<184x128xf32, #tpu.memory_space<vmem>>, vector<32x32xf32>
    %c24_19 = arith.constant 24 : index
    %c32_20 = arith.constant 32 : index
    %14 = vector.load %arg1[%c24_19, %c32_20] : memref<184x128xf32, #tpu.memory_space<vmem>>, vector<32x32xf32>
    %c56 = arith.constant 56 : index
    %c0_21 = arith.constant 0 : index
    %15 = vector.load %arg1[%c56, %c0_21] : memref<184x128xf32, #tpu.memory_space<vmem>>, vector<16x64xf32>
    %c56_22 = arith.constant 56 : index
    %c64_23 = arith.constant 64 : index
    %16 = vector.load %arg1[%c56_22, %c64_23] : memref<184x128xf32, #tpu.memory_space<vmem>>, vector<16x32xf32>
    %c56_24 = arith.constant 56 : index
    %c96_25 = arith.constant 96 : index
    %17 = vector.load %arg1[%c56_24, %c96_25] : memref<184x128xf32, #tpu.memory_space<vmem>>, vector<16x32xf32>
    %c72 = arith.constant 72 : index
    %c0_26 = arith.constant 0 : index
    %18 = vector.load %arg1[%c72, %c0_26] : memref<184x128xf32, #tpu.memory_space<vmem>>, vector<16x32xf32>
    %c88 = arith.constant 88 : index
    %c0_27 = arith.constant 0 : index
    %19 = vector.load %arg1[%c88, %c0_27] : memref<184x128xf32, #tpu.memory_space<vmem>>, vector<32x128xf32>
    %c120 = arith.constant 120 : index
    %c0_28 = arith.constant 0 : index
    %20 = vector.load %arg1[%c120, %c0_28] : memref<184x128xf32, #tpu.memory_space<vmem>>, vector<64x32xf32>
    %21 = arith.mulf %0, %0 : vector<16x32xf32>
    %cst = arith.constant dense<0.000000e+00> : vector<16xf32>
    %22 = vector.multi_reduction <add>, %21, %cst [1] : vector<16x32xf32> to vector<16xf32>
    %23 = vector.shape_cast %22 : vector<16xf32> to vector<16x1xf32>
    %cst_29 = arith.constant 3.200000e+01 : f32
    %24 = vector.broadcast %cst_29 : f32 to vector<16x1xf32>
    %25 = arith.divf %23, %24 : vector<16x1xf32>
    %cst_30 = arith.constant 9.99999997E-7 : f32
    %26 = vector.broadcast %cst_30 : f32 to vector<16x1xf32>
    %27 = arith.addf %25, %26 : vector<16x1xf32>
    %28 = math.rsqrt %27 : vector<16x1xf32>
    %29 = vector.broadcast %28 : vector<16x1xf32> to vector<16x32xf32>
    %30 = arith.mulf %0, %29 : vector<16x32xf32>
    %31 = vector.broadcast %1 : vector<1x32xf32> to vector<16x32xf32>
    %32 = arith.mulf %30, %31 : vector<16x32xf32>
    %cst_31 = arith.constant dense<0.000000e+00> : vector<16x32xf32>
    %33 = tpu.matmul %32, %13, %cst_31 {dimension_numbers = #tpu.dot_dimension_numbers<[1], [0], [0], [1], [0, 0, 1, 1], [], []>} : vector<16x32xf32>, vector<32x32xf32>, vector<16x32xf32> -> vector<16x32xf32>
    %34 = vector.broadcast %5 : vector<1x32xf32> to vector<16x32xf32>
    %35 = arith.addf %33, %34 : vector<16x32xf32>
    %36 = vector.extract_strided_slice %35 {offsets = [0, 0], sizes = [16, 16], strides = [1, 1]} : vector<16x32xf32> to vector<16x16xf32>
    %37 = vector.extract_strided_slice %35 {offsets = [0, 16], sizes = [16, 16], strides = [1, 1]} : vector<16x32xf32> to vector<16x16xf32>
    %cst_32 = arith.constant dense<0.000000e+00> : vector<16x64xf32>
    %38 = tpu.matmul %36, %15, %cst_32 {dimension_numbers = #tpu.dot_dimension_numbers<[1], [0], [0], [1], [0, 0, 1, 1], [], []>} : vector<16x16xf32>, vector<16x64xf32>, vector<16x64xf32> -> vector<16x64xf32>
    %39 = vector.broadcast %6 : vector<1x64xf32> to vector<16x64xf32>
    %40 = arith.addf %38, %39 : vector<16x64xf32>
    %41 = vector.extract_strided_slice %40 {offsets = [0, 0], sizes = [16, 32], strides = [1, 1]} : vector<16x64xf32> to vector<16x32xf32>
    %42 = vector.extract_strided_slice %40 {offsets = [0, 32], sizes = [16, 32], strides = [1, 1]} : vector<16x64xf32> to vector<16x32xf32>
    %cst_33 = arith.constant dense<0.000000e+00> : vector<16x32xf32>
    %43 = tpu.matmul %36, %18, %cst_33 {dimension_numbers = #tpu.dot_dimension_numbers<[1], [0], [0], [1], [0, 0, 1, 1], [], []>} : vector<16x16xf32>, vector<16x32xf32>, vector<16x32xf32> -> vector<16x32xf32>
    %44 = vector.broadcast %9 : vector<1x32xf32> to vector<16x32xf32>
    %45 = arith.addf %43, %44 : vector<16x32xf32>
    %cst_34 = arith.constant dense<0.000000e+00> : vector<16x32xf32>
    %46 = tpu.matmul %37, %16, %cst_34 {dimension_numbers = #tpu.dot_dimension_numbers<[1], [0], [0], [1], [0, 0, 1, 1], [], []>} : vector<16x16xf32>, vector<16x32xf32>, vector<16x32xf32> -> vector<16x32xf32>
    %47 = vector.broadcast %7 : vector<1x32xf32> to vector<16x32xf32>
    %48 = arith.addf %46, %47 : vector<16x32xf32>
    %cst_35 = arith.constant dense<0.000000e+00> : vector<16x32xf32>
    %49 = tpu.matmul %37, %17, %cst_35 {dimension_numbers = #tpu.dot_dimension_numbers<[1], [0], [0], [1], [0, 0, 1, 1], [], []>} : vector<16x16xf32>, vector<16x32xf32>, vector<16x32xf32> -> vector<16x32xf32>
    %50 = vector.broadcast %8 : vector<1x32xf32> to vector<16x32xf32>
    %51 = arith.addf %49, %50 : vector<16x32xf32>
    %52 = arith.mulf %48, %11 : vector<16x32xf32>
    %53 = arith.mulf %51, %12 : vector<16x32xf32>
    %54 = arith.addf %52, %53 : vector<16x32xf32>
    %55 = arith.mulf %41, %11 : vector<16x32xf32>
    %56 = arith.mulf %45, %12 : vector<16x32xf32>
    %57 = arith.addf %55, %56 : vector<16x32xf32>
    %58 = vector.extract_strided_slice %54 {offsets = [0, 0], sizes = [8, 8], strides = [1, 1]} : vector<16x32xf32> to vector<8x8xf32>
    %59 = vector.extract_strided_slice %57 {offsets = [0, 0], sizes = [8, 8], strides = [1, 1]} : vector<16x32xf32> to vector<8x8xf32>
    %60 = vector.extract_strided_slice %42 {offsets = [0, 0], sizes = [8, 8], strides = [1, 1]} : vector<16x32xf32> to vector<8x8xf32>
    %61 = tpu.transpose %59, [1, 0] : vector<8x8xf32> -> vector<8x8xf32>
    %cst_36 = arith.constant dense<0.000000e+00> : vector<8x8xf32>
    %62 = tpu.matmul %58, %61, %cst_36 {dimension_numbers = #tpu.dot_dimension_numbers<[1], [0], [0], [1], [0, 0, 1, 1], [], []>} : vector<8x8xf32>, vector<8x8xf32>, vector<8x8xf32> -> vector<8x8xf32>
    %cst_37 = arith.constant dense<0xFF800000> : vector<8xf32>
    %63 = vector.multi_reduction <maximumf>, %62, %cst_37 [1] : vector<8x8xf32> to vector<8xf32>
    %64 = vector.shape_cast %63 : vector<8xf32> to vector<8x1xf32>
    %65 = vector.broadcast %64 : vector<8x1xf32> to vector<8x8xf32>
    %66 = arith.subf %62, %65 : vector<8x8xf32>
    %67 = math.exp %66 : vector<8x8xf32>
    %cst_38 = arith.constant dense<0.000000e+00> : vector<8xf32>
    %68 = vector.multi_reduction <add>, %67, %cst_38 [1] : vector<8x8xf32> to vector<8xf32>
    %69 = vector.shape_cast %68 : vector<8xf32> to vector<8x1xf32>
    %70 = tpu.reciprocal %69 {approx = true} : vector<8x1xf32> -> vector<8x1xf32>
    %71 = vector.broadcast %70 : vector<8x1xf32> to vector<8x8xf32>
    %72 = arith.mulf %67, %71 : vector<8x8xf32>
    %cst_39 = arith.constant dense<0.000000e+00> : vector<8x8xf32>
    %73 = tpu.matmul %72, %60, %cst_39 {dimension_numbers = #tpu.dot_dimension_numbers<[1], [0], [0], [1], [0, 0, 1, 1], [], []>} : vector<8x8xf32>, vector<8x8xf32>, vector<8x8xf32> -> vector<8x8xf32>
    %74 = vector.extract_strided_slice %14 {offsets = [0, 0], sizes = [8, 32], strides = [1, 1]} : vector<32x32xf32> to vector<8x32xf32>
    %cst_40 = arith.constant dense<0.000000e+00> : vector<8x32xf32>
    %75 = tpu.matmul %73, %74, %cst_40 {dimension_numbers = #tpu.dot_dimension_numbers<[1], [0], [0], [1], [0, 0, 1, 1], [], []>} : vector<8x8xf32>, vector<8x32xf32>, vector<8x32xf32> -> vector<8x32xf32>
    %76 = vector.extract_strided_slice %54 {offsets = [0, 8], sizes = [8, 8], strides = [1, 1]} : vector<16x32xf32> to vector<8x8xf32>
    %77 = vector.extract_strided_slice %57 {offsets = [0, 8], sizes = [8, 8], strides = [1, 1]} : vector<16x32xf32> to vector<8x8xf32>
    %78 = vector.extract_strided_slice %42 {offsets = [0, 8], sizes = [8, 8], strides = [1, 1]} : vector<16x32xf32> to vector<8x8xf32>
    %79 = tpu.transpose %77, [1, 0] : vector<8x8xf32> -> vector<8x8xf32>
    %cst_41 = arith.constant dense<0.000000e+00> : vector<8x8xf32>
    %80 = tpu.matmul %76, %79, %cst_41 {dimension_numbers = #tpu.dot_dimension_numbers<[1], [0], [0], [1], [0, 0, 1, 1], [], []>} : vector<8x8xf32>, vector<8x8xf32>, vector<8x8xf32> -> vector<8x8xf32>
    %cst_42 = arith.constant dense<0xFF800000> : vector<8xf32>
    %81 = vector.multi_reduction <maximumf>, %80, %cst_42 [1] : vector<8x8xf32> to vector<8xf32>
    %82 = vector.shape_cast %81 : vector<8xf32> to vector<8x1xf32>
    %83 = vector.broadcast %82 : vector<8x1xf32> to vector<8x8xf32>
    %84 = arith.subf %80, %83 : vector<8x8xf32>
    %85 = math.exp %84 : vector<8x8xf32>
    %cst_43 = arith.constant dense<0.000000e+00> : vector<8xf32>
    %86 = vector.multi_reduction <add>, %85, %cst_43 [1] : vector<8x8xf32> to vector<8xf32>
    %87 = vector.shape_cast %86 : vector<8xf32> to vector<8x1xf32>
    %88 = tpu.reciprocal %87 {approx = true} : vector<8x1xf32> -> vector<8x1xf32>
    %89 = vector.broadcast %88 : vector<8x1xf32> to vector<8x8xf32>
    %90 = arith.mulf %85, %89 : vector<8x8xf32>
    %cst_44 = arith.constant dense<0.000000e+00> : vector<8x8xf32>
    %91 = tpu.matmul %90, %78, %cst_44 {dimension_numbers = #tpu.dot_dimension_numbers<[1], [0], [0], [1], [0, 0, 1, 1], [], []>} : vector<8x8xf32>, vector<8x8xf32>, vector<8x8xf32> -> vector<8x8xf32>
    %92 = vector.extract_strided_slice %14 {offsets = [8, 0], sizes = [8, 32], strides = [1, 1]} : vector<32x32xf32> to vector<8x32xf32>
    %cst_45 = arith.constant dense<0.000000e+00> : vector<8x32xf32>
    %93 = tpu.matmul %91, %92, %cst_45 {dimension_numbers = #tpu.dot_dimension_numbers<[1], [0], [0], [1], [0, 0, 1, 1], [], []>} : vector<8x8xf32>, vector<8x32xf32>, vector<8x32xf32> -> vector<8x32xf32>
    %94 = arith.addf %75, %93 : vector<8x32xf32>
    %95 = vector.extract_strided_slice %54 {offsets = [0, 16], sizes = [8, 8], strides = [1, 1]} : vector<16x32xf32> to vector<8x8xf32>
    %96 = vector.extract_strided_slice %57 {offsets = [0, 16], sizes = [8, 8], strides = [1, 1]} : vector<16x32xf32> to vector<8x8xf32>
    %97 = vector.extract_strided_slice %42 {offsets = [0, 16], sizes = [8, 8], strides = [1, 1]} : vector<16x32xf32> to vector<8x8xf32>
    %98 = tpu.transpose %96, [1, 0] : vector<8x8xf32> -> vector<8x8xf32>
    %cst_46 = arith.constant dense<0.000000e+00> : vector<8x8xf32>
    %99 = tpu.matmul %95, %98, %cst_46 {dimension_numbers = #tpu.dot_dimension_numbers<[1], [0], [0], [1], [0, 0, 1, 1], [], []>} : vector<8x8xf32>, vector<8x8xf32>, vector<8x8xf32> -> vector<8x8xf32>
    %cst_47 = arith.constant dense<0xFF800000> : vector<8xf32>
    %100 = vector.multi_reduction <maximumf>, %99, %cst_47 [1] : vector<8x8xf32> to vector<8xf32>
    %101 = vector.shape_cast %100 : vector<8xf32> to vector<8x1xf32>
    %102 = vector.broadcast %101 : vector<8x1xf32> to vector<8x8xf32>
    %103 = arith.subf %99, %102 : vector<8x8xf32>
    %104 = math.exp %103 : vector<8x8xf32>
    %cst_48 = arith.constant dense<0.000000e+00> : vector<8xf32>
    %105 = vector.multi_reduction <add>, %104, %cst_48 [1] : vector<8x8xf32> to vector<8xf32>
    %106 = vector.shape_cast %105 : vector<8xf32> to vector<8x1xf32>
    %107 = tpu.reciprocal %106 {approx = true} : vector<8x1xf32> -> vector<8x1xf32>
    %108 = vector.broadcast %107 : vector<8x1xf32> to vector<8x8xf32>
    %109 = arith.mulf %104, %108 : vector<8x8xf32>
    %cst_49 = arith.constant dense<0.000000e+00> : vector<8x8xf32>
    %110 = tpu.matmul %109, %97, %cst_49 {dimension_numbers = #tpu.dot_dimension_numbers<[1], [0], [0], [1], [0, 0, 1, 1], [], []>} : vector<8x8xf32>, vector<8x8xf32>, vector<8x8xf32> -> vector<8x8xf32>
    %111 = vector.extract_strided_slice %14 {offsets = [16, 0], sizes = [8, 32], strides = [1, 1]} : vector<32x32xf32> to vector<8x32xf32>
    %cst_50 = arith.constant dense<0.000000e+00> : vector<8x32xf32>
    %112 = tpu.matmul %110, %111, %cst_50 {dimension_numbers = #tpu.dot_dimension_numbers<[1], [0], [0], [1], [0, 0, 1, 1], [], []>} : vector<8x8xf32>, vector<8x32xf32>, vector<8x32xf32> -> vector<8x32xf32>
    %113 = arith.addf %94, %112 : vector<8x32xf32>
    %114 = vector.extract_strided_slice %54 {offsets = [0, 24], sizes = [8, 8], strides = [1, 1]} : vector<16x32xf32> to vector<8x8xf32>
    %115 = vector.extract_strided_slice %57 {offsets = [0, 24], sizes = [8, 8], strides = [1, 1]} : vector<16x32xf32> to vector<8x8xf32>
    %116 = vector.extract_strided_slice %42 {offsets = [0, 24], sizes = [8, 8], strides = [1, 1]} : vector<16x32xf32> to vector<8x8xf32>
    %117 = tpu.transpose %115, [1, 0] : vector<8x8xf32> -> vector<8x8xf32>
    %cst_51 = arith.constant dense<0.000000e+00> : vector<8x8xf32>
    %118 = tpu.matmul %114, %117, %cst_51 {dimension_numbers = #tpu.dot_dimension_numbers<[1], [0], [0], [1], [0, 0, 1, 1], [], []>} : vector<8x8xf32>, vector<8x8xf32>, vector<8x8xf32> -> vector<8x8xf32>
    %cst_52 = arith.constant dense<0xFF800000> : vector<8xf32>
    %119 = vector.multi_reduction <maximumf>, %118, %cst_52 [1] : vector<8x8xf32> to vector<8xf32>
    %120 = vector.shape_cast %119 : vector<8xf32> to vector<8x1xf32>
    %121 = vector.broadcast %120 : vector<8x1xf32> to vector<8x8xf32>
    %122 = arith.subf %118, %121 : vector<8x8xf32>
    %123 = math.exp %122 : vector<8x8xf32>
    %cst_53 = arith.constant dense<0.000000e+00> : vector<8xf32>
    %124 = vector.multi_reduction <add>, %123, %cst_53 [1] : vector<8x8xf32> to vector<8xf32>
    %125 = vector.shape_cast %124 : vector<8xf32> to vector<8x1xf32>
    %126 = tpu.reciprocal %125 {approx = true} : vector<8x1xf32> -> vector<8x1xf32>
    %127 = vector.broadcast %126 : vector<8x1xf32> to vector<8x8xf32>
    %128 = arith.mulf %123, %127 : vector<8x8xf32>
    %cst_54 = arith.constant dense<0.000000e+00> : vector<8x8xf32>
    %129 = tpu.matmul %128, %116, %cst_54 {dimension_numbers = #tpu.dot_dimension_numbers<[1], [0], [0], [1], [0, 0, 1, 1], [], []>} : vector<8x8xf32>, vector<8x8xf32>, vector<8x8xf32> -> vector<8x8xf32>
    %130 = vector.extract_strided_slice %14 {offsets = [24, 0], sizes = [8, 32], strides = [1, 1]} : vector<32x32xf32> to vector<8x32xf32>
    %cst_55 = arith.constant dense<0.000000e+00> : vector<8x32xf32>
    %131 = tpu.matmul %129, %130, %cst_55 {dimension_numbers = #tpu.dot_dimension_numbers<[1], [0], [0], [1], [0, 0, 1, 1], [], []>} : vector<8x8xf32>, vector<8x32xf32>, vector<8x32xf32> -> vector<8x32xf32>
    %132 = arith.addf %113, %131 : vector<8x32xf32>
    %133 = vector.extract_strided_slice %54 {offsets = [8, 0], sizes = [8, 8], strides = [1, 1]} : vector<16x32xf32> to vector<8x8xf32>
    %134 = vector.extract_strided_slice %57 {offsets = [8, 0], sizes = [8, 8], strides = [1, 1]} : vector<16x32xf32> to vector<8x8xf32>
    %135 = vector.extract_strided_slice %42 {offsets = [8, 0], sizes = [8, 8], strides = [1, 1]} : vector<16x32xf32> to vector<8x8xf32>
    %136 = tpu.transpose %134, [1, 0] : vector<8x8xf32> -> vector<8x8xf32>
    %cst_56 = arith.constant dense<0.000000e+00> : vector<8x8xf32>
    %137 = tpu.matmul %133, %136, %cst_56 {dimension_numbers = #tpu.dot_dimension_numbers<[1], [0], [0], [1], [0, 0, 1, 1], [], []>} : vector<8x8xf32>, vector<8x8xf32>, vector<8x8xf32> -> vector<8x8xf32>
    %cst_57 = arith.constant dense<0xFF800000> : vector<8xf32>
    %138 = vector.multi_reduction <maximumf>, %137, %cst_57 [1] : vector<8x8xf32> to vector<8xf32>
    %139 = vector.shape_cast %138 : vector<8xf32> to vector<8x1xf32>
    %140 = vector.broadcast %139 : vector<8x1xf32> to vector<8x8xf32>
    %141 = arith.subf %137, %140 : vector<8x8xf32>
    %142 = math.exp %141 : vector<8x8xf32>
    %cst_58 = arith.constant dense<0.000000e+00> : vector<8xf32>
    %143 = vector.multi_reduction <add>, %142, %cst_58 [1] : vector<8x8xf32> to vector<8xf32>
    %144 = vector.shape_cast %143 : vector<8xf32> to vector<8x1xf32>
    %145 = tpu.reciprocal %144 {approx = true} : vector<8x1xf32> -> vector<8x1xf32>
    %146 = vector.broadcast %145 : vector<8x1xf32> to vector<8x8xf32>
    %147 = arith.mulf %142, %146 : vector<8x8xf32>
    %cst_59 = arith.constant dense<0.000000e+00> : vector<8x8xf32>
    %148 = tpu.matmul %147, %135, %cst_59 {dimension_numbers = #tpu.dot_dimension_numbers<[1], [0], [0], [1], [0, 0, 1, 1], [], []>} : vector<8x8xf32>, vector<8x8xf32>, vector<8x8xf32> -> vector<8x8xf32>
    %149 = vector.extract_strided_slice %14 {offsets = [0, 0], sizes = [8, 32], strides = [1, 1]} : vector<32x32xf32> to vector<8x32xf32>
    %cst_60 = arith.constant dense<0.000000e+00> : vector<8x32xf32>
    %150 = tpu.matmul %148, %149, %cst_60 {dimension_numbers = #tpu.dot_dimension_numbers<[1], [0], [0], [1], [0, 0, 1, 1], [], []>} : vector<8x8xf32>, vector<8x32xf32>, vector<8x32xf32> -> vector<8x32xf32>
    %151 = vector.extract_strided_slice %54 {offsets = [8, 8], sizes = [8, 8], strides = [1, 1]} : vector<16x32xf32> to vector<8x8xf32>
    %152 = vector.extract_strided_slice %57 {offsets = [8, 8], sizes = [8, 8], strides = [1, 1]} : vector<16x32xf32> to vector<8x8xf32>
    %153 = vector.extract_strided_slice %42 {offsets = [8, 8], sizes = [8, 8], strides = [1, 1]} : vector<16x32xf32> to vector<8x8xf32>
    %154 = tpu.transpose %152, [1, 0] : vector<8x8xf32> -> vector<8x8xf32>
    %cst_61 = arith.constant dense<0.000000e+00> : vector<8x8xf32>
    %155 = tpu.matmul %151, %154, %cst_61 {dimension_numbers = #tpu.dot_dimension_numbers<[1], [0], [0], [1], [0, 0, 1, 1], [], []>} : vector<8x8xf32>, vector<8x8xf32>, vector<8x8xf32> -> vector<8x8xf32>
    %cst_62 = arith.constant dense<0xFF800000> : vector<8xf32>
    %156 = vector.multi_reduction <maximumf>, %155, %cst_62 [1] : vector<8x8xf32> to vector<8xf32>
    %157 = vector.shape_cast %156 : vector<8xf32> to vector<8x1xf32>
    %158 = vector.broadcast %157 : vector<8x1xf32> to vector<8x8xf32>
    %159 = arith.subf %155, %158 : vector<8x8xf32>
    %160 = math.exp %159 : vector<8x8xf32>
    %cst_63 = arith.constant dense<0.000000e+00> : vector<8xf32>
    %161 = vector.multi_reduction <add>, %160, %cst_63 [1] : vector<8x8xf32> to vector<8xf32>
    %162 = vector.shape_cast %161 : vector<8xf32> to vector<8x1xf32>
    %163 = tpu.reciprocal %162 {approx = true} : vector<8x1xf32> -> vector<8x1xf32>
    %164 = vector.broadcast %163 : vector<8x1xf32> to vector<8x8xf32>
    %165 = arith.mulf %160, %164 : vector<8x8xf32>
    %cst_64 = arith.constant dense<0.000000e+00> : vector<8x8xf32>
    %166 = tpu.matmul %165, %153, %cst_64 {dimension_numbers = #tpu.dot_dimension_numbers<[1], [0], [0], [1], [0, 0, 1, 1], [], []>} : vector<8x8xf32>, vector<8x8xf32>, vector<8x8xf32> -> vector<8x8xf32>
    %167 = vector.extract_strided_slice %14 {offsets = [8, 0], sizes = [8, 32], strides = [1, 1]} : vector<32x32xf32> to vector<8x32xf32>
    %cst_65 = arith.constant dense<0.000000e+00> : vector<8x32xf32>
    %168 = tpu.matmul %166, %167, %cst_65 {dimension_numbers = #tpu.dot_dimension_numbers<[1], [0], [0], [1], [0, 0, 1, 1], [], []>} : vector<8x8xf32>, vector<8x32xf32>, vector<8x32xf32> -> vector<8x32xf32>
    %169 = arith.addf %150, %168 : vector<8x32xf32>
    %170 = vector.extract_strided_slice %54 {offsets = [8, 16], sizes = [8, 8], strides = [1, 1]} : vector<16x32xf32> to vector<8x8xf32>
    %171 = vector.extract_strided_slice %57 {offsets = [8, 16], sizes = [8, 8], strides = [1, 1]} : vector<16x32xf32> to vector<8x8xf32>
    %172 = vector.extract_strided_slice %42 {offsets = [8, 16], sizes = [8, 8], strides = [1, 1]} : vector<16x32xf32> to vector<8x8xf32>
    %173 = tpu.transpose %171, [1, 0] : vector<8x8xf32> -> vector<8x8xf32>
    %cst_66 = arith.constant dense<0.000000e+00> : vector<8x8xf32>
    %174 = tpu.matmul %170, %173, %cst_66 {dimension_numbers = #tpu.dot_dimension_numbers<[1], [0], [0], [1], [0, 0, 1, 1], [], []>} : vector<8x8xf32>, vector<8x8xf32>, vector<8x8xf32> -> vector<8x8xf32>
    %cst_67 = arith.constant dense<0xFF800000> : vector<8xf32>
    %175 = vector.multi_reduction <maximumf>, %174, %cst_67 [1] : vector<8x8xf32> to vector<8xf32>
    %176 = vector.shape_cast %175 : vector<8xf32> to vector<8x1xf32>
    %177 = vector.broadcast %176 : vector<8x1xf32> to vector<8x8xf32>
    %178 = arith.subf %174, %177 : vector<8x8xf32>
    %179 = math.exp %178 : vector<8x8xf32>
    %cst_68 = arith.constant dense<0.000000e+00> : vector<8xf32>
    %180 = vector.multi_reduction <add>, %179, %cst_68 [1] : vector<8x8xf32> to vector<8xf32>
    %181 = vector.shape_cast %180 : vector<8xf32> to vector<8x1xf32>
    %182 = tpu.reciprocal %181 {approx = true} : vector<8x1xf32> -> vector<8x1xf32>
    %183 = vector.broadcast %182 : vector<8x1xf32> to vector<8x8xf32>
    %184 = arith.mulf %179, %183 : vector<8x8xf32>
    %cst_69 = arith.constant dense<0.000000e+00> : vector<8x8xf32>
    %185 = tpu.matmul %184, %172, %cst_69 {dimension_numbers = #tpu.dot_dimension_numbers<[1], [0], [0], [1], [0, 0, 1, 1], [], []>} : vector<8x8xf32>, vector<8x8xf32>, vector<8x8xf32> -> vector<8x8xf32>
    %186 = vector.extract_strided_slice %14 {offsets = [16, 0], sizes = [8, 32], strides = [1, 1]} : vector<32x32xf32> to vector<8x32xf32>
    %cst_70 = arith.constant dense<0.000000e+00> : vector<8x32xf32>
    %187 = tpu.matmul %185, %186, %cst_70 {dimension_numbers = #tpu.dot_dimension_numbers<[1], [0], [0], [1], [0, 0, 1, 1], [], []>} : vector<8x8xf32>, vector<8x32xf32>, vector<8x32xf32> -> vector<8x32xf32>
    %188 = arith.addf %169, %187 : vector<8x32xf32>
    %189 = vector.extract_strided_slice %54 {offsets = [8, 24], sizes = [8, 8], strides = [1, 1]} : vector<16x32xf32> to vector<8x8xf32>
    %190 = vector.extract_strided_slice %57 {offsets = [8, 24], sizes = [8, 8], strides = [1, 1]} : vector<16x32xf32> to vector<8x8xf32>
    %191 = vector.extract_strided_slice %42 {offsets = [8, 24], sizes = [8, 8], strides = [1, 1]} : vector<16x32xf32> to vector<8x8xf32>
    %192 = tpu.transpose %190, [1, 0] : vector<8x8xf32> -> vector<8x8xf32>
    %cst_71 = arith.constant dense<0.000000e+00> : vector<8x8xf32>
    %193 = tpu.matmul %189, %192, %cst_71 {dimension_numbers = #tpu.dot_dimension_numbers<[1], [0], [0], [1], [0, 0, 1, 1], [], []>} : vector<8x8xf32>, vector<8x8xf32>, vector<8x8xf32> -> vector<8x8xf32>
    %cst_72 = arith.constant dense<0xFF800000> : vector<8xf32>
    %194 = vector.multi_reduction <maximumf>, %193, %cst_72 [1] : vector<8x8xf32> to vector<8xf32>
    %195 = vector.shape_cast %194 : vector<8xf32> to vector<8x1xf32>
    %196 = vector.broadcast %195 : vector<8x1xf32> to vector<8x8xf32>
    %197 = arith.subf %193, %196 : vector<8x8xf32>
    %198 = math.exp %197 : vector<8x8xf32>
    %cst_73 = arith.constant dense<0.000000e+00> : vector<8xf32>
    %199 = vector.multi_reduction <add>, %198, %cst_73 [1] : vector<8x8xf32> to vector<8xf32>
    %200 = vector.shape_cast %199 : vector<8xf32> to vector<8x1xf32>
    %201 = tpu.reciprocal %200 {approx = true} : vector<8x1xf32> -> vector<8x1xf32>
    %202 = vector.broadcast %201 : vector<8x1xf32> to vector<8x8xf32>
    %203 = arith.mulf %198, %202 : vector<8x8xf32>
    %cst_74 = arith.constant dense<0.000000e+00> : vector<8x8xf32>
    %204 = tpu.matmul %203, %191, %cst_74 {dimension_numbers = #tpu.dot_dimension_numbers<[1], [0], [0], [1], [0, 0, 1, 1], [], []>} : vector<8x8xf32>, vector<8x8xf32>, vector<8x8xf32> -> vector<8x8xf32>
    %205 = vector.extract_strided_slice %14 {offsets = [24, 0], sizes = [8, 32], strides = [1, 1]} : vector<32x32xf32> to vector<8x32xf32>
    %cst_75 = arith.constant dense<0.000000e+00> : vector<8x32xf32>
    %206 = tpu.matmul %204, %205, %cst_75 {dimension_numbers = #tpu.dot_dimension_numbers<[1], [0], [0], [1], [0, 0, 1, 1], [], []>} : vector<8x8xf32>, vector<8x32xf32>, vector<8x32xf32> -> vector<8x32xf32>
    %207 = arith.addf %188, %206 : vector<8x32xf32>
    %208 = tpu.concatenate %132, %207 in 0 : vector<8x32xf32>, vector<8x32xf32> -> vector<16x32xf32>
    %209 = vector.broadcast %3 : vector<1x32xf32> to vector<16x32xf32>
    %210 = arith.addf %208, %209 : vector<16x32xf32>
    %211 = arith.addf %0, %210 : vector<16x32xf32>
    %212 = arith.mulf %211, %211 : vector<16x32xf32>
    %cst_76 = arith.constant dense<0.000000e+00> : vector<16xf32>
    %213 = vector.multi_reduction <add>, %212, %cst_76 [1] : vector<16x32xf32> to vector<16xf32>
    %214 = vector.shape_cast %213 : vector<16xf32> to vector<16x1xf32>
    %cst_77 = arith.constant 3.200000e+01 : f32
    %215 = vector.broadcast %cst_77 : f32 to vector<16x1xf32>
    %216 = arith.divf %214, %215 : vector<16x1xf32>
    %cst_78 = arith.constant 9.99999997E-7 : f32
    %217 = vector.broadcast %cst_78 : f32 to vector<16x1xf32>
    %218 = arith.addf %216, %217 : vector<16x1xf32>
    %219 = math.rsqrt %218 : vector<16x1xf32>
    %220 = vector.broadcast %219 : vector<16x1xf32> to vector<16x32xf32>
    %221 = arith.mulf %211, %220 : vector<16x32xf32>
    %222 = vector.broadcast %2 : vector<1x32xf32> to vector<16x32xf32>
    %223 = arith.mulf %221, %222 : vector<16x32xf32>
    %cst_79 = arith.constant dense<0.000000e+00> : vector<16x128xf32>
    %224 = tpu.matmul %223, %19, %cst_79 {dimension_numbers = #tpu.dot_dimension_numbers<[1], [0], [0], [1], [0, 0, 1, 1], [], []>} : vector<16x32xf32>, vector<32x128xf32>, vector<16x128xf32> -> vector<16x128xf32>
    %225 = vector.broadcast %10 : vector<1x128xf32> to vector<16x128xf32>
    %226 = arith.addf %224, %225 : vector<16x128xf32>
    %227 = vector.extract_strided_slice %226 {offsets = [0, 0], sizes = [16, 64], strides = [1, 1]} : vector<16x128xf32> to vector<16x64xf32>
    %228 = vector.extract_strided_slice %226 {offsets = [0, 64], sizes = [16, 64], strides = [1, 1]} : vector<16x128xf32> to vector<16x64xf32>
    %229 = arith.negf %227 : vector<16x64xf32>
    %230 = math.exp %229 : vector<16x64xf32>
    %cst_80 = arith.constant 1.000000e+00 : f32
    %231 = vector.broadcast %cst_80 : f32 to vector<16x64xf32>
    %232 = arith.addf %231, %230 : vector<16x64xf32>
    %233 = arith.divf %231, %232 : vector<16x64xf32>
    %234 = arith.mulf %227, %233 : vector<16x64xf32>
    %235 = arith.mulf %234, %228 : vector<16x64xf32>
    %cst_81 = arith.constant dense<0.000000e+00> : vector<16x32xf32>
    %236 = tpu.matmul %235, %20, %cst_81 {dimension_numbers = #tpu.dot_dimension_numbers<[1], [0], [0], [1], [0, 0, 1, 1], [], []>} : vector<16x64xf32>, vector<64x32xf32>, vector<16x32xf32> -> vector<16x32xf32>
    %237 = vector.broadcast %4 : vector<1x32xf32> to vector<16x32xf32>
    %238 = arith.addf %236, %237 : vector<16x32xf32>
    %239 = arith.addf %211, %238 : vector<16x32xf32>
    %cst_82 = arith.constant 0.000000e+00 : f32
    %240 = vector.broadcast %cst_82 : f32 to vector<16x32xf32>
    %241 = tpu.concatenate %239, %57, %42, %240 in 1 : vector<16x32xf32>, vector<16x32xf32>, vector<16x32xf32>, vector<16x32xf32> -> vector<16x128xf32>
    %c0_83 = arith.constant 0 : index
    %c0_84 = arith.constant 0 : index
    %242 = vector.load %arg2[%c0_83, %c0_84] : memref<16x128xf32, #tpu.memory_space<vmem>>, vector<16x128xf32>
    tpu.vector_store %arg2[%c0_83, %c0_84], %241 {strides = array<i32>} : memref<16x128xf32, #tpu.memory_space<vmem>>, vector<16x128xf32>,
    return
  }
}

</mosaic_0001>

<llo_original>
// kernel: quasar_block_pallas.1
$region0: #{quasar_block_pallas.1}
  #allocation0 [shape = 'u32[]', space=smem, size = 0x4, offset = 0x4, fixed_abs, tag = 'smem constant byte address 0x4 - core index']
  #allocation1 [shape = 'u32[144,128]{1,0:T(1,128)}', space=vmem, size = 0x12000, scoped, tag = 'internal scratch']
  %s0 = inlined_call_operand.hbm [shape: f32[16,32], index: 0, kind: input, shape index: {}]
  %s1 = inlined_call_operand.hbm [shape: f32[184,128], index: 1, kind: input, shape index: {}]
  %s2 = inlined_call_operand.vmem [shape: f32[16,128], index: 2, kind: output, shape index: {}]
  %s3 = sld [smem:[#allocation0]]
  $region26: #{quasar_block_pallas.1} parent=0
    _
  %s5 = ssub.s32 1, %s3
  %s6 = scalar_select 0, %s5, %s3
  $region1: #{quasar_block_pallas.1} parent=0
    #allocation2 [shape = 'u8[8192]{0}', space=vmem, size = 0x2000, scoped, tag = 'input window, operand 0, single buffered']
    #allocation3 [shape = 's32[1]{0}', space=sflag, size = 0x4, scoped, tag = 'scoped memory for quasar_block_pallas.1']
    #allocation4 [shape = 'u8[94208]{0}', space=vmem, size = 0x17000, scoped, tag = 'input window, operand 1, single buffered']
    #allocation5 [shape = 's32[1]{0}', space=sflag, size = 0x4, scoped, tag = 'scoped memory for quasar_block_pallas.1']
    %7 = vsyncpa [#allocation3], 0
    %8 = vsyncpa [#allocation5], 0
    // Predicated region
    $region2: #{quasar_block_pallas.1} parent=1 // pred_check
      _
    $region3: #{quasar_block_pallas.1} parent=1 // pred_check_branch
      %10 = sbr.rel (0) target = $region5
    $region4: #{quasar_block_pallas.1} parent=1 // pred_region
      %s12 = ssub.s32 256, 256
      %13 = vsyncadd [#allocation3], %s12
      %s14 = sshll.u32 [#allocation2], 4
      %s15 = int_to_ptr.vmem [resolvable:$true] %s14
      %20 = dma.hbm_to_vmem [thread:$0]  %s0, 256, %s15, [#allocation3], 128, 128, 8
    $region5: #{quasar_block_pallas.1} parent=1 // pred_fallthru
      _
    // Predicated region
    $region6: #{quasar_block_pallas.1} parent=1 // pred_check
      _
    $region7: #{quasar_block_pallas.1} parent=1 // pred_check_branch
      %22 = sbr.rel (0) target = $region9
    $region8: #{quasar_block_pallas.1} parent=1 // pred_region
      %s24 = ssub.s32 2944, 2944
      %25 = vsyncadd [#allocation5], %s24
      %s26 = sshll.u32 [#allocation4], 4
      %s27 = int_to_ptr.vmem [resolvable:$true] %s26
      %32 = dma.hbm_to_vmem [thread:$0]  %s1, 2944, %s27, [#allocation5], 128, 128, 8
    $region9: #{quasar_block_pallas.1} parent=1 // pred_fallthru
      _
    // Predicated region
    $region10: #{quasar_block_pallas.1} parent=1 // pred_check
      _
    $region11: #{quasar_block_pallas.1} parent=1 // pred_check_branch
      %34 = sbr.rel (0) target = $region13
    $region12: #{quasar_block_pallas.1} parent=1 // pred_region
      %35 = dma.done [#allocation3], 256
    $region13: #{quasar_block_pallas.1} parent=1 // pred_fallthru
      _
    // Predicated region
    $region14: #{quasar_block_pallas.1} parent=1 // pred_check
      _
    $region15: #{quasar_block_pallas.1} parent=1 // pred_check_branch
      %37 = sbr.rel (0) target = $region17
    $region16: #{quasar_block_pallas.1} parent=1 // pred_region
      %38 = dma.done [#allocation5], 2944
    $region17: #{quasar_block_pallas.1} parent=1 // pred_fallthru
      _
    %v39 = vld [vmem:[#allocation2] sm:$0xff]
    %v40 = vld [vmem:[#allocation2 + $0x8] sm:$0xff]
    %v41 = vld [vmem:[#allocation4] sm:$0x1]
    %v42 = vld [vmem:[#allocation4 + $0x1] sm:$0x1]
    %v43 = vld [vmem:[#allocation4 + $0x2] sm:$0x1]
    %v44 = vld [vmem:[#allocation4 + $0x3] sm:$0x1]
    %v45 = vld [vmem:[#allocation4 + $0x8] sm:$0xff]
    %v46 = vld [vmem:[#allocation4 + $0x10] sm:$0xff]
    %v47 = vld [vmem:[#allocation4 + $0x18] sm:$0xff]
    %v48 = vld [vmem:[#allocation4 + $0x20] sm:$0xff]
    %v49 = vld [vmem:[#allocation4 + $0x28] sm:$0xff]
    %v50 = vld [vmem:[#allocation4 + $0x30] sm:$0xff]
    %v51 = vld [vmem:[#allocation4 + $0x38] sm:$0xff]
    %v52 = vld [vmem:[#allocation4 + $0x40] sm:$0xff]
    %v53 = vld [vmem:[#allocation4 + $0x48] sm:$0xff]
    %v54 = vld [vmem:[#allocation4 + $0x50] sm:$0xff]
    %v55 = vld [vmem:[#allocation4 + $0x58] sm:$0xff]
    %v56 = vld [vmem:[#allocation4 + $0x60] sm:$0xff]
    %v57 = vld [vmem:[#allocation4 + $0x68] sm:$0xff]
    %v58 = vld [vmem:[#allocation4 + $0x70] sm:$0xff]
    %v59 = vld [vmem:[#allocation4 + $0x78] sm:$0xff]
    %v60 = vld [vmem:[#allocation4 + $0x80] sm:$0xff]
    %v61 = vld [vmem:[#allocation4 + $0x88] sm:$0xff]
    %v62 = vld [vmem:[#allocation4 + $0x90] sm:$0xff]
    %v63 = vld [vmem:[#allocation4 + $0x98] sm:$0xff]
    %v64 = vld [vmem:[#allocation4 + $0xa0] sm:$0xff]
    %v65 = vld [vmem:[#allocation4 + $0xa8] sm:$0xff]
    %v66 = vld [vmem:[#allocation4 + $0xb0] sm:$0xff]
    %v67 = vmul.f32 %v39, %v39
    %v68 = vmul.f32 %v40, %v40
    %vm69 = vcmask 261120
    %v70 = vsel %vm69, %v67, 0.0
    %71 = vadd.xlane.f32.xlu0 %v70
    %v72 = vpop.xlane.xlu0 %71
    %v73 = vsel %vm69, %v68, 0.0
    %74 = vadd.xlane.f32.xlu0 %v73
    %v75 = vpop.xlane.xlu0 %74
    %v76 = vrcp.pop 32.0
    %v77 = vmul.f32 %v72, %v76
    %v78 = vmul.f32 %v75, %v76
    %v79 = vadd.f32 %v77, 1e-06
    %v80 = vadd.f32 %v78, 1e-06
    %v81 = vrsqrt.pop %v79
    %v82 = vrsqrt.pop %v80
    %v83 = vmul.f32 %v39, %v81
    %v84 = vmul.f32 %v40, %v82
    %v85 = vlaneseq
    %v86 = vshrl.u32 %v85, 7
    %v87 = vsub.s32 0, %v86
    %v88 = vrot.slane %v41, %v87
    %v89 = vmul.f32 %v83, %v88
    %v90 = vmul.f32 %v84, %v88
    %v91 = vlaneseq
    %v92 = vshrl.u32 %v91, 7
    %v93 = vsub.s32 0, %v92
    %v94 = vrot.slane %v42, %v93
    %v96 = vsel %vm69, %v89, 0
    %v99 = vsel %vm69, %v90, 0
    %101 = vmatprep.subr.mxu0 0.0
    %102 = vmatpush1.msra.mxu0 %v47
    %103 = vmatprep.subr.mxu0 0.0
    %104 = vmatpush1.msra.mxu0 %v48
    %105 = vmatprep.subr.mxu0 0.0
    %106 = vmatpush1.msra.mxu0 %v49
    %107 = vmatprep.subr.mxu0 0.0
    %108 = vmatpush1.msra.mxu0 %v50
    %109 = vmatprep.subr.mxu0 0.0
    %110 = vmatpush1.msra.mxu0 0.0
    %111 = vmatprep.subr.mxu0 0.0
    %112 = vmatpush1.msra.mxu0 0.0
    %113 = vmatprep.subr.mxu0 0.0
    %114 = vmatpush1.msra.mxu0 0.0
    %115 = vmatprep.subr.mxu0 0.0
    %116 = vmatpush1.msra.mxu0 0.0
    %117 = vmatprep.subr.mxu0 0.0
    %118 = vmatpush1.msra.mxu0 0.0
    %119 = vmatprep.subr.mxu0 0.0
    %120 = vmatpush1.msra.mxu0 0.0
    %121 = vmatprep.subr.mxu0 0.0
    %122 = vmatpush1.msra.mxu0 0.0
    %123 = vmatprep.subr.mxu0 0.0
    %124 = vmatpush1.msra.mxu0 0.0
    %125 = vmatprep.subr.mxu0 0.0
    %126 = vmatpush1.msra.mxu0 0.0
    %127 = vmatprep.subr.mxu0 0.0
    %128 = vmatpush1.msra.mxu0 0.0
    %129 = vmatprep.subr.mxu0 0.0
    %130 = vmatpush1.msra.mxu0 0.0
    %131 = vmatprep.subr.mxu0 0.0
    %132 = vmatpush1.msra.mxu0 0.0
    %133 = vmatprep.subr.mxu0 0.0
    %134 = vmatpush1.msra.mxu0 0.0
    %135 = vmatprep.subr.mxu0 0.0
    %136 = vmatpush1.msra.mxu0 0.0
    %137 = vmatprep.subr.mxu0 0.0
    %138 = vmatpush1.msra.mxu0 0.0
    %139 = vmatprep.subr.mxu0 0.0
    %140 = vmatpush1.msra.mxu0 0.0
    %141 = vmatprep.subr.mxu0 0.0
    %142 = vmatpush1.msra.mxu0 0.0
    %143 = vmatprep.subr.mxu0 0.0
    %144 = vmatpush1.msra.mxu0 0.0
    %145 = vmatprep.subr.mxu0 0.0
    %146 = vmatpush1.msra.mxu0 0.0
    %147 = vmatprep.subr.mxu0 0.0
    %148 = vmatpush1.msra.mxu0 0.0
    %149 = vmatprep.subr.mxu0 0.0
    %150 = vmatpush1.msra.mxu0 0.0
    %151 = vmatprep.subr.mxu0 0.0
    %152 = vmatpush1.msra.mxu0 0.0
    %153 = vmatprep.subr.mxu0 0.0
    %154 = vmatpush1.msra.mxu0 0.0
    %155 = vmatprep.subr.mxu0 0.0
    %156 = vmatpush1.msra.mxu0 0.0
    %157 = vmatprep.subr.mxu0 0.0
    %158 = vmatpush1.msra.mxu0 0.0
    %159 = vmatprep.subr.mxu0 0.0
    %160 = vmatpush1.msra.mxu0 0.0
    %161 = vmatprep.subr.mxu0 0.0
    %162 = vmatpush1.msra.mxu0 0.0
    %163 = vmatprep.subr.mxu0 0.0
    %164 = vmatpush1.msra.mxu0 0.0
    %165 = vmatprep.mubr.f32.mxu0 0.0
    %166 = vmatmul.mubr.f32.gmra.mrb[0].mxu0 %v96
    %v167 = vpop.f32.mrb[0].mxu0
    %v168 = vadd.f32 %v94, %v167
    %v169 = vpop.f32.mrb[0].mxu0
    %170 = vmatprep.mubr.f32.mxu0 0.0
    %171 = vmatmul.mubr.f32.gmra.mrb[0].mxu0 %v99
    %v172 = vpop.f32.mrb[0].mxu0
    %v173 = vadd.f32 %v94, %v172
    %v174 = vpop.f32.mrb[0].mxu0
    %175 = vdwg.mxu0
    %177 = vrot.lane.b32.xlu0 %v94, 96
    %v178 = vpop.permute.xlu0 %177
    %vm180 = vcmask 130048
    %v182 = vsel %vm180, %v168, 0
    %v185 = vsel %vm180, %v173, 0
    %187 = vmatprep.subr.mxu0 0.0
    %188 = vmatpush1.msra.mxu0 %v51
    %189 = vmatprep.subr.mxu0 0.0
    %190 = vmatpush1.msra.mxu0 %v52
    %191 = vmatprep.subr.mxu0 0.0
    %192 = vmatpush1.msra.mxu0 0.0
    %193 = vmatprep.subr.mxu0 0.0
    %194 = vmatpush1.msra.mxu0 0.0
    %195 = vmatprep.subr.mxu0 0.0
    %196 = vmatpush1.msra.mxu0 0.0
    %197 = vmatprep.subr.mxu0 0.0
    %198 = vmatpush1.msra.mxu0 0.0
    %199 = vmatprep.subr.mxu0 0.0
    %200 = vmatpush1.msra.mxu0 0.0
    %201 = vmatprep.subr.mxu0 0.0
    %202 = vmatpush1.msra.mxu0 0.0
    %203 = vmatprep.subr.mxu0 0.0
    %204 = vmatpush1.msra.mxu0 0.0
    %205 = vmatprep.subr.mxu0 0.0
    %206 = vmatpush1.msra.mxu0 0.0
    %207 = vmatprep.subr.mxu0 0.0
    %208 = vmatpush1.msra.mxu0 0.0
    %209 = vmatprep.subr.mxu0 0.0
    %210 = vmatpush1.msra.mxu0 0.0
    %211 = vmatprep.subr.mxu0 0.0
    %212 = vmatpush1.msra.mxu0 0.0
    %213 = vmatprep.subr.mxu0 0.0
    %214 = vmatpush1.msra.mxu0 0.0
    %215 = vmatprep.subr.mxu0 0.0
    %216 = vmatpush1.msra.mxu0 0.0
    %217 = vmatprep.subr.mxu0 0.0
    %218 = vmatpush1.msra.mxu0 0.0
    %219 = vmatprep.subr.mxu0 0.0
    %220 = vmatpush1.msra.mxu0 0.0
    %221 = vmatprep.subr.mxu0 0.0
    %222 = vmatpush1.msra.mxu0 0.0
    %223 = vmatprep.subr.mxu0 0.0
    %224 = vmatpush1.msra.mxu0 0.0
    %225 = vmatprep.subr.mxu0 0.0
    %226 = vmatpush1.msra.mxu0 0.0
    %227 = vmatprep.subr.mxu0 0.0
    %228 = vmatpush1.msra.mxu0 0.0
    %229 = vmatprep.subr.mxu0 0.0
    %230 = vmatpush1.msra.mxu0 0.0
    %231 = vmatprep.subr.mxu0 0.0
    %232 = vmatpush1.msra.mxu0 0.0
    %233 = vmatprep.subr.mxu0 0.0
    %234 = vmatpush1.msra.mxu0 0.0
    %235 = vmatprep.subr.mxu0 0.0
    %236 = vmatpush1.msra.mxu0 0.0
    %237 = vmatprep.subr.mxu0 0.0
    %238 = vmatpush1.msra.mxu0 0.0
    %239 = vmatprep.subr.mxu0 0.0
    %240 = vmatpush1.msra.mxu0 0.0
    %241 = vmatprep.subr.mxu0 0.0
    %242 = vmatpush1.msra.mxu0 0.0
    %243 = vmatprep.subr.mxu0 0.0
    %244 = vmatpush1.msra.mxu0 0.0
    %245 = vmatprep.subr.mxu0 0.0
    %246 = vmatpush1.msra.mxu0 0.0
    %247 = vmatprep.subr.mxu0 0.0
    %248 = vmatpush1.msra.mxu0 0.0
    %249 = vmatprep.subr.mxu0 0.0
    %250 = vmatpush1.msra.mxu0 0.0
    %251 = vmatprep.mubr.f32.mxu0 0.0
    %252 = vmatmul.mubr.f32.gmra.mrb[0].mxu0 %v182
    %v253 = vpop.f32.mrb[0].mxu0
    %v254 = vadd.f32 %v178, %v253
    %v255 = vpop.f32.mrb[0].mxu0
    %256 = vmatprep.mubr.f32.mxu0 0.0
    %257 = vmatmul.mubr.f32.gmra.mrb[0].mxu0 %v185
    %v258 = vpop.f32.mrb[0].mxu0
    %v259 = vadd.f32 %v178, %v258
    %v260 = vpop.f32.mrb[0].mxu0
    %261 = vdwg.mxu0
    %v262 = vlaneseq
    %v263 = vshrl.u32 %v262, 7
    %v264 = vsub.s32 0, %v263
    %v265 = vrot.slane %v43, %v264
    %267 = vrot.lane.b32.xlu0 %v265, 64
    %v268 = vpop.permute.xlu0 %267
    %270 = vmatprep.subr.mxu0 0.0
    %271 = vmatpush1.msra.mxu0 %v53
    %272 = vmatprep.subr.mxu0 0.0
    %273 = vmatpush1.msra.mxu0 %v54
    %274 = vmatprep.subr.mxu0 0.0
    %275 = vmatpush1.msra.mxu0 0.0
    %276 = vmatprep.subr.mxu0 0.0
    %277 = vmatpush1.msra.mxu0 0.0
    %278 = vmatprep.subr.mxu0 0.0
    %279 = vmatpush1.msra.mxu0 0.0
    %280 = vmatprep.subr.mxu0 0.0
    %281 = vmatpush1.msra.mxu0 0.0
    %282 = vmatprep.subr.mxu0 0.0
    %283 = vmatpush1.msra.mxu0 0.0
    %284 = vmatprep.subr.mxu0 0.0
    %285 = vmatpush1.msra.mxu0 0.0
    %286 = vmatprep.subr.mxu0 0.0
    %287 = vmatpush1.msra.mxu0 0.0
    %288 = vmatprep.subr.mxu0 0.0
    %289 = vmatpush1.msra.mxu0 0.0
    %290 = vmatprep.subr.mxu0 0.0
    %291 = vmatpush1.msra.mxu0 0.0
    %292 = vmatprep.subr.mxu0 0.0
    %293 = vmatpush1.msra.mxu0 0.0
    %294 = vmatprep.subr.mxu0 0.0
    %295 = vmatpush1.msra.mxu0 0.0
    %296 = vmatprep.subr.mxu0 0.0
    %297 = vmatpush1.msra.mxu0 0.0
    %298 = vmatprep.subr.mxu0 0.0
    %299 = vmatpush1.msra.mxu0 0.0
    %300 = vmatprep.subr.mxu0 0.0
    %301 = vmatpush1.msra.mxu0 0.0
    %302 = vmatprep.subr.mxu0 0.0
    %303 = vmatpush1.msra.mxu0 0.0
    %304 = vmatprep.subr.mxu0 0.0
    %305 = vmatpush1.msra.mxu0 0.0
    %306 = vmatprep.subr.mxu0 0.0
    %307 = vmatpush1.msra.mxu0 0.0
    %308 = vmatprep.subr.mxu0 0.0
    %309 = vmatpush1.msra.mxu0 0.0
    %310 = vmatprep.subr.mxu0 0.0
    %311 = vmatpush1.msra.mxu0 0.0
    %312 = vmatprep.subr.mxu0 0.0
    %313 = vmatpush1.msra.mxu0 0.0
    %314 = vmatprep.subr.mxu0 0.0
    %315 = vmatpush1.msra.mxu0 0.0
    %316 = vmatprep.subr.mxu0 0.0
    %317 = vmatpush1.msra.mxu0 0.0
    %318 = vmatprep.subr.mxu0 0.0
    %319 = vmatpush1.msra.mxu0 0.0
    %320 = vmatprep.subr.mxu0 0.0
    %321 = vmatpush1.msra.mxu0 0.0
    %322 = vmatprep.subr.mxu0 0.0
    %323 = vmatpush1.msra.mxu0 0.0
    %324 = vmatprep.subr.mxu0 0.0
    %325 = vmatpush1.msra.mxu0 0.0
    %326 = vmatprep.subr.mxu0 0.0
    %327 = vmatpush1.msra.mxu0 0.0
    %328 = vmatprep.subr.mxu0 0.0
    %329 = vmatpush1.msra.mxu0 0.0
    %330 = vmatprep.subr.mxu0 0.0
    %331 = vmatpush1.msra.mxu0 0.0
    %332 = vmatprep.subr.mxu0 0.0
    %333 = vmatpush1.msra.mxu0 0.0
    %334 = vmatprep.mubr.f32.mxu0 0.0
    %335 = vmatmul.mubr.f32.gmra.mrb[0].mxu0 %v182
    %v336 = vpop.f32.mrb[0].mxu0
    %v337 = vadd.f32 %v268, %v336
    %v338 = vpop.f32.mrb[0].mxu0
    %339 = vmatprep.mubr.f32.mxu0 0.0
    %340 = vmatmul.mubr.f32.gmra.mrb[0].mxu0 %v185
    %v341 = vpop.f32.mrb[0].mxu0
    %v342 = vadd.f32 %v268, %v341
    %v343 = vpop.f32.mrb[0].mxu0
    %344 = vdwg.mxu0
    %345 = vrot.lane.b32.xlu0 %v168, 112
    %v346 = vpop.permute.xlu0 %345
    %347 = vrot.lane.b32.xlu0 %v173, 112
    %v348 = vpop.permute.xlu0 %347
    %351 = vrot.lane.b32.xlu0 %v51, 64
    %v352 = vpop.permute.xlu0 %351
    %353 = vrot.lane.b32.xlu0 %v52, 64
    %v354 = vpop.permute.xlu0 %353
    %v357 = vsel %vm180, %v346, 0
    %v359 = vsel %vm180, %v348, 0
    %361 = vmatprep.subr.mxu0 0.0
    %362 = vmatpush1.msra.mxu0 %v352
    %363 = vmatprep.subr.mxu0 0.0
    %364 = vmatpush1.msra.mxu0 %v354
    %365 = vmatprep.subr.mxu0 0.0
    %366 = vmatpush1.msra.mxu0 0.0
    %367 = vmatprep.subr.mxu0 0.0
    %368 = vmatpush1.msra.mxu0 0.0
    %369 = vmatprep.subr.mxu0 0.0
    %370 = vmatpush1.msra.mxu0 0.0
    %371 = vmatprep.subr.mxu0 0.0
    %372 = vmatpush1.msra.mxu0 0.0
    %373 = vmatprep.subr.mxu0 0.0
    %374 = vmatpush1.msra.mxu0 0.0
    %375 = vmatprep.subr.mxu0 0.0
    %376 = vmatpush1.msra.mxu0 0.0
    %377 = vmatprep.subr.mxu0 0.0
    %378 = vmatpush1.msra.mxu0 0.0
    %379 = vmatprep.subr.mxu0 0.0
    %380 = vmatpush1.msra.mxu0 0.0
    %381 = vmatprep.subr.mxu0 0.0
    %382 = vmatpush1.msra.mxu0 0.0
    %383 = vmatprep.subr.mxu0 0.0
    %384 = vmatpush1.msra.mxu0 0.0
    %385 = vmatprep.subr.mxu0 0.0
    %386 = vmatpush1.msra.mxu0 0.0
    %387 = vmatprep.subr.mxu0 0.0
    %388 = vmatpush1.msra.mxu0 0.0
    %389 = vmatprep.subr.mxu0 0.0
    %390 = vmatpush1.msra.mxu0 0.0
    %391 = vmatprep.subr.mxu0 0.0
    %392 = vmatpush1.msra.mxu0 0.0
    %393 = vmatprep.subr.mxu0 0.0
    %394 = vmatpush1.msra.mxu0 0.0
    %395 = vmatprep.subr.mxu0 0.0
    %396 = vmatpush1.msra.mxu0 0.0
    %397 = vmatprep.subr.mxu0 0.0
    %398 = vmatpush1.msra.mxu0 0.0
    %399 = vmatprep.subr.mxu0 0.0
    %400 = vmatpush1.msra.mxu0 0.0
    %401 = vmatprep.subr.mxu0 0.0
    %402 = vmatpush1.msra.mxu0 0.0
    %403 = vmatprep.subr.mxu0 0.0
    %404 = vmatpush1.msra.mxu0 0.0
    %405 = vmatprep.subr.mxu0 0.0
    %406 = vmatpush1.msra.mxu0 0.0
    %407 = vmatprep.subr.mxu0 0.0
    %408 = vmatpush1.msra.mxu0 0.0
    %409 = vmatprep.subr.mxu0 0.0
    %410 = vmatpush1.msra.mxu0 0.0
    %411 = vmatprep.subr.mxu0 0.0
    %412 = vmatpush1.msra.mxu0 0.0
    %413 = vmatprep.subr.mxu0 0.0
    %414 = vmatpush1.msra.mxu0 0.0
    %415 = vmatprep.subr.mxu0 0.0
    %416 = vmatpush1.msra.mxu0 0.0
    %417 = vmatprep.subr.mxu0 0.0
    %418 = vmatpush1.msra.mxu0 0.0
    %419 = vmatprep.subr.mxu0 0.0
    %420 = vmatpush1.msra.mxu0 0.0
    %421 = vmatprep.subr.mxu0 0.0
    %422 = vmatpush1.msra.mxu0 0.0
    %423 = vmatprep.subr.mxu0 0.0
    %424 = vmatpush1.msra.mxu0 0.0
    %425 = vmatprep.mubr.f32.mxu0 0.0
    %426 = vmatmul.mubr.f32.gmra.mrb[0].mxu0 %v357
    %v427 = vpop.f32.mrb[0].mxu0
    %v428 = vadd.f32 %v265, %v427
    %v429 = vpop.f32.mrb[0].mxu0
    %430 = vmatprep.mubr.f32.mxu0 0.0
    %431 = vmatmul.mubr.f32.gmra.mrb[0].mxu0 %v359
    %v432 = vpop.f32.mrb[0].mxu0
    %v433 = vadd.f32 %v265, %v432
    %v434 = vpop.f32.mrb[0].mxu0
    %435 = vdwg.mxu0
    %436 = vrot.lane.b32.xlu0 %v51, 32
    %v437 = vpop.permute.xlu0 %436
    %438 = vrot.lane.b32.xlu0 %v52, 32
    %v439 = vpop.permute.xlu0 %438
    %442 = vrot.lane.b32.xlu0 %v265, 96
    %v443 = vpop.permute.xlu0 %442
    %445 = vmatprep.subr.mxu0 0.0
    %446 = vmatpush1.msra.mxu0 %v437
    %447 = vmatprep.subr.mxu0 0.0
    %448 = vmatpush1.msra.mxu0 %v439
    %449 = vmatprep.subr.mxu0 0.0
    %450 = vmatpush1.msra.mxu0 0.0
    %451 = vmatprep.subr.mxu0 0.0
    %452 = vmatpush1.msra.mxu0 0.0
    %453 = vmatprep.subr.mxu0 0.0
    %454 = vmatpush1.msra.mxu0 0.0
    %455 = vmatprep.subr.mxu0 0.0
    %456 = vmatpush1.msra.mxu0 0.0
    %457 = vmatprep.subr.mxu0 0.0
    %458 = vmatpush1.msra.mxu0 0.0
    %459 = vmatprep.subr.mxu0 0.0
    %460 = vmatpush1.msra.mxu0 0.0
    %461 = vmatprep.subr.mxu0 0.0
    %462 = vmatpush1.msra.mxu0 0.0
    %463 = vmatprep.subr.mxu0 0.0
    %464 = vmatpush1.msra.mxu0 0.0
    %465 = vmatprep.subr.mxu0 0.0
    %466 = vmatpush1.msra.mxu0 0.0
    %467 = vmatprep.subr.mxu0 0.0
    %468 = vmatpush1.msra.mxu0 0.0
    %469 = vmatprep.subr.mxu0 0.0
    %470 = vmatpush1.msra.mxu0 0.0
    %471 = vmatprep.subr.mxu0 0.0
    %472 = vmatpush1.msra.mxu0 0.0
    %473 = vmatprep.subr.mxu0 0.0
    %474 = vmatpush1.msra.mxu0 0.0
    %475 = vmatprep.subr.mxu0 0.0
    %476 = vmatpush1.msra.mxu0 0.0
    %477 = vmatprep.subr.mxu0 0.0
    %478 = vmatpush1.msra.mxu0 0.0
    %479 = vmatprep.subr.mxu0 0.0
    %480 = vmatpush1.msra.mxu0 0.0
    %481 = vmatprep.subr.mxu0 0.0
    %482 = vmatpush1.msra.mxu0 0.0
    %483 = vmatprep.subr.mxu0 0.0
    %484 = vmatpush1.msra.mxu0 0.0
    %485 = vmatprep.subr.mxu0 0.0
    %486 = vmatpush1.msra.mxu0 0.0
    %487 = vmatprep.subr.mxu0 0.0
    %488 = vmatpush1.msra.mxu0 0.0
    %489 = vmatprep.subr.mxu0 0.0
    %490 = vmatpush1.msra.mxu0 0.0
    %491 = vmatprep.subr.mxu0 0.0
    %492 = vmatpush1.msra.mxu0 0.0
    %493 = vmatprep.subr.mxu0 0.0
    %494 = vmatpush1.msra.mxu0 0.0
    %495 = vmatprep.subr.mxu0 0.0
    %496 = vmatpush1.msra.mxu0 0.0
    %497 = vmatprep.subr.mxu0 0.0
    %498 = vmatpush1.msra.mxu0 0.0
    %499 = vmatprep.subr.mxu0 0.0
    %500 = vmatpush1.msra.mxu0 0.0
    %501 = vmatprep.subr.mxu0 0.0
    %502 = vmatpush1.msra.mxu0 0.0
    %503 = vmatprep.subr.mxu0 0.0
    %504 = vmatpush1.msra.mxu0 0.0
    %505 = vmatprep.subr.mxu0 0.0
    %506 = vmatpush1.msra.mxu0 0.0
    %507 = vmatprep.subr.mxu0 0.0
    %508 = vmatpush1.msra.mxu0 0.0
    %509 = vmatprep.mubr.f32.mxu0 0.0
    %510 = vmatmul.mubr.f32.gmra.mrb[0].mxu0 %v357
    %v511 = vpop.f32.mrb[0].mxu0
    %v512 = vadd.f32 %v443, %v511
    %v513 = vpop.f32.mrb[0].mxu0
    %514 = vmatprep.mubr.f32.mxu0 0.0
    %515 = vmatmul.mubr.f32.gmra.mrb[0].mxu0 %v359
    %v516 = vpop.f32.mrb[0].mxu0
    %v517 = vadd.f32 %v443, %v516
    %v518 = vpop.f32.mrb[0].mxu0
    %519 = vdwg.mxu0
    %v520 = vmul.f32 %v428, %v45
    %v521 = vmul.f32 %v433, %v46
    %524 = vrot.lane.b32.xlu0 %v45, 96
    %v525 = vpop.permute.xlu0 %524
    %526 = vrot.lane.b32.xlu0 %v46, 96
    %v527 = vpop.permute.xlu0 %526
    %v530 = vmul.f32 %v512, %v525
    %v531 = vmul.f32 %v517, %v527
    %v532 = vadd.f32 %v520, %v530
    %v533 = vadd.f32 %v521, %v531
    %v534 = vmul.f32 %v254, %v45
    %v535 = vmul.f32 %v259, %v46
    %v536 = vmul.f32 %v337, %v525
    %v537 = vmul.f32 %v342, %v527
    %v538 = vadd.f32 %v534, %v536
    %v539 = vadd.f32 %v535, %v537
    %vm540 = vcmask 64512
    %v542 = vsel %vm540, %v532, 0
    %v545 = vsel %vm540, %v538, 0
    %547 = vmatprep.subr.mxu0 0.0
    %548 = vmatpush1.xpose.msra.mxu0 %v545
    %549 = vmatprep.subr.mxu0 0.0
    %550 = vmatpush1.xpose.msra.mxu0 0.0
    %551 = vmatprep.subr.mxu0 0.0
    %552 = vmatpush1.xpose.msra.mxu0 0.0
    %553 = vmatprep.subr.mxu0 0.0
    %554 = vmatpush1.xpose.msra.mxu0 0.0
    %555 = vmatprep.subr.mxu0 0.0
    %556 = vmatpush1.xpose.msra.mxu0 0.0
    %557 = vmatprep.subr.mxu0 0.0
    %558 = vmatpush1.xpose.msra.mxu0 0.0
    %559 = vmatprep.subr.mxu0 0.0
    %560 = vmatpush1.xpose.msra.mxu0 0.0
    %561 = vmatprep.subr.mxu0 0.0
    %562 = vmatpush1.xpose.msra.mxu0 0.0
    %563 = vmatprep.subr.mxu0 0.0
    %564 = vmatpush1.xpose.msra.mxu0 0.0
    %565 = vmatprep.subr.mxu0 0.0
    %566 = vmatpush1.xpose.msra.mxu0 0.0
    %567 = vmatprep.subr.mxu0 0.0
    %568 = vmatpush1.xpose.msra.mxu0 0.0
    %569 = vmatprep.subr.mxu0 0.0
    %570 = vmatpush1.xpose.msra.mxu0 0.0
    %571 = vmatprep.subr.mxu0 0.0
    %572 = vmatpush1.xpose.msra.mxu0 0.0
    %573 = vmatprep.subr.mxu0 0.0
    %574 = vmatpush1.xpose.msra.mxu0 0.0
    %575 = vmatprep.subr.mxu0 0.0
    %576 = vmatpush1.xpose.msra.mxu0 0.0
    %577 = vmatprep.subr.mxu0 0.0
    %578 = vmatpush1.xpose.msra.mxu0 0.0
    %579 = vmatprep.subr.mxu0 0.0
    %580 = vmatpush1.xpose.msra.mxu0 0.0
    %581 = vmatprep.subr.mxu0 0.0
    %582 = vmatpush1.xpose.msra.mxu0 0.0
    %583 = vmatprep.subr.mxu0 0.0
    %584 = vmatpush1.xpose.msra.mxu0 0.0
    %585 = vmatprep.subr.mxu0 0.0
    %586 = vmatpush1.xpose.msra.mxu0 0.0
    %587 = vmatprep.subr.mxu0 0.0
    %588 = vmatpush1.xpose.msra.mxu0 0.0
    %589 = vmatprep.subr.mxu0 0.0
    %590 = vmatpush1.xpose.msra.mxu0 0.0
    %591 = vmatprep.subr.mxu0 0.0
    %592 = vmatpush1.xpose.msra.mxu0 0.0
    %593 = vmatprep.subr.mxu0 0.0
    %594 = vmatpush1.xpose.msra.mxu0 0.0
    %595 = vmatprep.subr.mxu0 0.0
    %596 = vmatpush1.xpose.msra.mxu0 0.0
    %597 = vmatprep.subr.mxu0 0.0
    %598 = vmatpush1.xpose.msra.mxu0 0.0
    %599 = vmatprep.subr.mxu0 0.0
    %600 = vmatpush1.xpose.msra.mxu0 0.0
    %601 = vmatprep.subr.mxu0 0.0
    %602 = vmatpush1.xpose.msra.mxu0 0.0
    %603 = vmatprep.subr.mxu0 0.0
    %604 = vmatpush1.xpose.msra.mxu0 0.0
    %605 = vmatprep.subr.mxu0 0.0
    %606 = vmatpush1.xpose.msra.mxu0 0.0
    %607 = vmatprep.subr.mxu0 0.0
    %608 = vmatpush1.xpose.msra.mxu0 0.0
    %609 = vmatprep.subr.mxu0 0.0
    %610 = vmatpush1.xpose.msra.mxu0 0.0
    %611 = vmatprep.mubr.f32.mxu0 0.0
    %612 = vmatmul.mubr.f32.gmra.mrb[0].mxu0 %v542
    %v613 = vpop.f32.mrb[0].mxu0
    %v614 = vadd.f32 0.0, %v613
    %v615 = vpop.f32.mrb[0].mxu0
    %616 = vdwg.mxu0
    %v617 = vsel %vm540, %v614, -inf
    %618 = vmax.xlane.f32.xlu0 %v617
    %v619 = vpop.xlane.xlu0 %618
    %v620 = vsub.f32 %v614, %v619
    %v621 = vmul.f32 %v620, 1.442695
    %v622 = vpow.pop %v621
    %v623 = vsel %vm540, %v622, 0.0
    %624 = vadd.xlane.f32.xlu0 %v623
    %v625 = vpop.xlane.xlu0 %624
    %v626 = vrcp.pop %v625
    %v627 = vmul.f32 %v622, %v626
    %629 = vrot.lane.b32.xlu0 %v254, 96
    %v630 = vpop.permute.xlu0 %629
    %v633 = vsel %vm540, %v627, 0
    %635 = vmatprep.subr.mxu0 0.0
    %636 = vmatpush1.msra.mxu0 %v630
    %637 = vmatprep.subr.mxu0 0.0
    %638 = vmatpush1.msra.mxu0 0.0
    %639 = vmatprep.subr.mxu0 0.0
    %640 = vmatpush1.msra.mxu0 0.0
    %641 = vmatprep.subr.mxu0 0.0
    %642 = vmatpush1.msra.mxu0 0.0
    %643 = vmatprep.subr.mxu0 0.0
    %644 = vmatpush1.msra.mxu0 0.0
    %645 = vmatprep.subr.mxu0 0.0
    %646 = vmatpush1.msra.mxu0 0.0
    %647 = vmatprep.subr.mxu0 0.0
    %648 = vmatpush1.msra.mxu0 0.0
    %649 = vmatprep.subr.mxu0 0.0
    %650 = vmatpush1.msra.mxu0 0.0
    %651 = vmatprep.subr.mxu0 0.0
    %652 = vmatpush1.msra.mxu0 0.0
    %653 = vmatprep.subr.mxu0 0.0
    %654 = vmatpush1.msra.mxu0 0.0
    %655 = vmatprep.subr.mxu0 0.0
    %656 = vmatpush1.msra.mxu0 0.0
    %657 = vmatprep.subr.mxu0 0.0
    %658 = vmatpush1.msra.mxu0 0.0
    %659 = vmatprep.subr.mxu0 0.0
    %660 = vmatpush1.msra.mxu0 0.0
    %661 = vmatprep.subr.mxu0 0.0
    %662 = vmatpush1.msra.mxu0 0.0
    %663 = vmatprep.subr.mxu0 0.0
    %664 = vmatpush1.msra.mxu0 0.0
    %665 = vmatprep.subr.mxu0 0.0
    %666 = vmatpush1.msra.mxu0 0.0
    %667 = vmatprep.subr.mxu0 0.0
    %668 = vmatpush1.msra.mxu0 0.0
    %669 = vmatprep.subr.mxu0 0.0
    %670 = vmatpush1.msra.mxu0 0.0
    %671 = vmatprep.subr.mxu0 0.0
    %672 = vmatpush1.msra.mxu0 0.0
    %673 = vmatprep.subr.mxu0 0.0
    %674 = vmatpush1.msra.mxu0 0.0
    %675 = vmatprep.subr.mxu0 0.0
    %676 = vmatpush1.msra.mxu0 0.0
    %677 = vmatprep.subr.mxu0 0.0
    %678 = vmatpush1.msra.mxu0 0.0
    %679 = vmatprep.subr.mxu0 0.0
    %680 = vmatpush1.msra.mxu0 0.0
    %681 = vmatprep.subr.mxu0 0.0
    %682 = vmatpush1.msra.mxu0 0.0
    %683 = vmatprep.subr.mxu0 0.0
    %684 = vmatpush1.msra.mxu0 0.0
    %685 = vmatprep.subr.mxu0 0.0
    %686 = vmatpush1.msra.mxu0 0.0
    %687 = vmatprep.subr.mxu0 0.0
    %688 = vmatpush1.msra.mxu0 0.0
    %689 = vmatprep.subr.mxu0 0.0
    %690 = vmatpush1.msra.mxu0 0.0
    %691 = vmatprep.subr.mxu0 0.0
    %692 = vmatpush1.msra.mxu0 0.0
    %693 = vmatprep.subr.mxu0 0.0
    %694 = vmatpush1.msra.mxu0 0.0
    %695 = vmatprep.subr.mxu0 0.0
    %696 = vmatpush1.msra.mxu0 0.0
    %697 = vmatprep.subr.mxu0 0.0
    %698 = vmatpush1.msra.mxu0 0.0
    %699 = vmatprep.mubr.f32.mxu0 0.0
    %700 = vmatmul.mubr.f32.gmra.mrb[0].mxu0 %v633
    %v701 = vpop.f32.mrb[0].mxu0
    %v702 = vadd.f32 0.0, %v701
    %v703 = vpop.f32.mrb[0].mxu0
    %704 = vdwg.mxu0
    %705 = vrot.lane.b32.xlu0 %v532, 120
    %v706 = vpop.permute.xlu0 %705
    %707 = vrot.lane.b32.xlu0 %v538, 120
    %v708 = vpop.permute.xlu0 %707
    %v709 = vsel %vm540, %v706, 0
    %v711 = vsel %vm540, %v708, 0
    %713 = vmatprep.subr.mxu0 0.0
    %714 = vmatpush1.xpose.msra.mxu0 %v711
    %715 = vmatprep.subr.mxu0 0.0
    %716 = vmatpush1.xpose.msra.mxu0 0.0
    %717 = vmatprep.subr.mxu0 0.0
    %718 = vmatpush1.xpose.msra.mxu0 0.0
    %719 = vmatprep.subr.mxu0 0.0
    %720 = vmatpush1.xpose.msra.mxu0 0.0
    %721 = vmatprep.subr.mxu0 0.0
    %722 = vmatpush1.xpose.msra.mxu0 0.0
    %723 = vmatprep.subr.mxu0 0.0
    %724 = vmatpush1.xpose.msra.mxu0 0.0
    %725 = vmatprep.subr.mxu0 0.0
    %726 = vmatpush1.xpose.msra.mxu0 0.0
    %727 = vmatprep.subr.mxu0 0.0
    %728 = vmatpush1.xpose.msra.mxu0 0.0
    %729 = vmatprep.subr.mxu0 0.0
    %730 = vmatpush1.xpose.msra.mxu0 0.0
    %731 = vmatprep.subr.mxu0 0.0
    %732 = vmatpush1.xpose.msra.mxu0 0.0
    %733 = vmatprep.subr.mxu0 0.0
    %734 = vmatpush1.xpose.msra.mxu0 0.0
    %735 = vmatprep.subr.mxu0 0.0
    %736 = vmatpush1.xpose.msra.mxu0 0.0
    %737 = vmatprep.subr.mxu0 0.0
    %738 = vmatpush1.xpose.msra.mxu0 0.0
    %739 = vmatprep.subr.mxu0 0.0
    %740 = vmatpush1.xpose.msra.mxu0 0.0
    %741 = vmatprep.subr.mxu0 0.0
    %742 = vmatpush1.xpose.msra.mxu0 0.0
    %743 = vmatprep.subr.mxu0 0.0
    %744 = vmatpush1.xpose.msra.mxu0 0.0
    %745 = vmatprep.subr.mxu0 0.0
    %746 = vmatpush1.xpose.msra.mxu0 0.0
    %747 = vmatprep.subr.mxu0 0.0
    %748 = vmatpush1.xpose.msra.mxu0 0.0
    %749 = vmatprep.subr.mxu0 0.0
    %750 = vmatpush1.xpose.msra.mxu0 0.0
    %751 = vmatprep.subr.mxu0 0.0
    %752 = vmatpush1.xpose.msra.mxu0 0.0
    %753 = vmatprep.subr.mxu0 0.0
    %754 = vmatpush1.xpose.msra.mxu0 0.0
    %755 = vmatprep.subr.mxu0 0.0
    %756 = vmatpush1.xpose.msra.mxu0 0.0
    %757 = vmatprep.subr.mxu0 0.0
    %758 = vmatpush1.xpose.msra.mxu0 0.0
    %759 = vmatprep.subr.mxu0 0.0
    %760 = vmatpush1.xpose.msra.mxu0 0.0
    %761 = vmatprep.subr.mxu0 0.0
    %762 = vmatpush1.xpose.msra.mxu0 0.0
    %763 = vmatprep.subr.mxu0 0.0
    %764 = vmatpush1.xpose.msra.mxu0 0.0
    %765 = vmatprep.subr.mxu0 0.0
    %766 = vmatpush1.xpose.msra.mxu0 0.0
    %767 = vmatprep.subr.mxu0 0.0
    %768 = vmatpush1.xpose.msra.mxu0 0.0
    %769 = vmatprep.subr.mxu0 0.0
    %770 = vmatpush1.xpose.msra.mxu0 0.0
    %771 = vmatprep.subr.mxu0 0.0
    %772 = vmatpush1.xpose.msra.mxu0 0.0
    %773 = vmatprep.subr.mxu0 0.0
    %774 = vmatpush1.xpose.msra.mxu0 0.0
    %775 = vmatprep.subr.mxu0 0.0
    %776 = vmatpush1.xpose.msra.mxu0 0.0
    %777 = vmatprep.mubr.f32.mxu0 0.0
    %778 = vmatmul.mubr.f32.gmra.mrb[0].mxu0 %v709
    %v779 = vpop.f32.mrb[0].mxu0
    %v780 = vadd.f32 0.0, %v779
    %v781 = vpop.f32.mrb[0].mxu0
    %782 = vdwg.mxu0
    %v783 = vsel %vm540, %v780, -inf
    %784 = vmax.xlane.f32.xlu0 %v783
    %v785 = vpop.xlane.xlu0 %784
    %v786 = vsub.f32 %v780, %v785
    %v787 = vmul.f32 %v786, 1.442695
    %v788 = vpow.pop %v787
    %v789 = vsel %vm540, %v788, 0.0
    %790 = vadd.xlane.f32.xlu0 %v789
    %v791 = vpop.xlane.xlu0 %790
    %v792 = vrcp.pop %v791
    %v793 = vmul.f32 %v788, %v792
    %794 = vrot.lane.b32.xlu0 %v254, 88
    %v795 = vpop.permute.xlu0 %794
    %v798 = vsel %vm540, %v793, 0
    %800 = vmatprep.subr.mxu0 0.0
    %801 = vmatpush1.msra.mxu0 %v795
    %802 = vmatprep.subr.mxu0 0.0
    %803 = vmatpush1.msra.mxu0 0.0
    %804 = vmatprep.subr.mxu0 0.0
    %805 = vmatpush1.msra.mxu0 0.0
    %806 = vmatprep.subr.mxu0 0.0
    %807 = vmatpush1.msra.mxu0 0.0
    %808 = vmatprep.subr.mxu0 0.0
    %809 = vmatpush1.msra.mxu0 0.0
    %810 = vmatprep.subr.mxu0 0.0
    %811 = vmatpush1.msra.mxu0 0.0
    %812 = vmatprep.subr.mxu0 0.0
    %813 = vmatpush1.msra.mxu0 0.0
    %814 = vmatprep.subr.mxu0 0.0
    %815 = vmatpush1.msra.mxu0 0.0
    %816 = vmatprep.subr.mxu0 0.0
    %817 = vmatpush1.msra.mxu0 0.0
    %818 = vmatprep.subr.mxu0 0.0
    %819 = vmatpush1.msra.mxu0 0.0
    %820 = vmatprep.subr.mxu0 0.0
    %821 = vmatpush1.msra.mxu0 0.0
    %822 = vmatprep.subr.mxu0 0.0
    %823 = vmatpush1.msra.mxu0 0.0
    %824 = vmatprep.subr.mxu0 0.0
    %825 = vmatpush1.msra.mxu0 0.0
    %826 = vmatprep.subr.mxu0 0.0
    %827 = vmatpush1.msra.mxu0 0.0
    %828 = vmatprep.subr.mxu0 0.0
    %829 = vmatpush1.msra.mxu0 0.0
    %830 = vmatprep.subr.mxu0 0.0
    %831 = vmatpush1.msra.mxu0 0.0
    %832 = vmatprep.subr.mxu0 0.0
    %833 = vmatpush1.msra.mxu0 0.0
    %834 = vmatprep.subr.mxu0 0.0
    %835 = vmatpush1.msra.mxu0 0.0
    %836 = vmatprep.subr.mxu0 0.0
    %837 = vmatpush1.msra.mxu0 0.0
    %838 = vmatprep.subr.mxu0 0.0
    %839 = vmatpush1.msra.mxu0 0.0
    %840 = vmatprep.subr.mxu0 0.0
    %841 = vmatpush1.msra.mxu0 0.0
    %842 = vmatprep.subr.mxu0 0.0
    %843 = vmatpush1.msra.mxu0 0.0
    %844 = vmatprep.subr.mxu0 0.0
    %845 = vmatpush1.msra.mxu0 0.0
    %846 = vmatprep.subr.mxu0 0.0
    %847 = vmatpush1.msra.mxu0 0.0
    %848 = vmatprep.subr.mxu0 0.0
    %849 = vmatpush1.msra.mxu0 0.0
    %850 = vmatprep.subr.mxu0 0.0
    %851 = vmatpush1.msra.mxu0 0.0
    %852 = vmatprep.subr.mxu0 0.0
    %853 = vmatpush1.msra.mxu0 0.0
    %854 = vmatprep.subr.mxu0 0.0
    %855 = vmatpush1.msra.mxu0 0.0
    %856 = vmatprep.subr.mxu0 0.0
    %857 = vmatpush1.msra.mxu0 0.0
    %858 = vmatprep.subr.mxu0 0.0
    %859 = vmatpush1.msra.mxu0 0.0
    %860 = vmatprep.subr.mxu0 0.0
    %861 = vmatpush1.msra.mxu0 0.0
    %862 = vmatprep.subr.mxu0 0.0
    %863 = vmatpush1.msra.mxu0 0.0
    %864 = vmatprep.mubr.f32.mxu0 0.0
    %865 = vmatmul.mubr.f32.gmra.mrb[0].mxu0 %v798
    %v866 = vpop.f32.mrb[0].mxu0
    %v867 = vadd.f32 0.0, %v866
    %v868 = vpop.f32.mrb[0].mxu0
    %869 = vdwg.mxu0
    %871 = vrot.lane.b32.xlu0 %v48, 96
    %v872 = vpop.permute.xlu0 %871
    %v875 = vsel %vm540, %v867, 0
    %877 = vmatprep.subr.mxu0 0.0
    %878 = vmatpush1.msra.mxu0 %v872
    %879 = vmatprep.subr.mxu0 0.0
    %880 = vmatpush1.msra.mxu0 0.0
    %881 = vmatprep.subr.mxu0 0.0
    %882 = vmatpush1.msra.mxu0 0.0
    %883 = vmatprep.subr.mxu0 0.0
    %884 = vmatpush1.msra.mxu0 0.0
    %885 = vmatprep.subr.mxu0 0.0
    %886 = vmatpush1.msra.mxu0 0.0
    %887 = vmatprep.subr.mxu0 0.0
    %888 = vmatpush1.msra.mxu0 0.0
    %889 = vmatprep.subr.mxu0 0.0
    %890 = vmatpush1.msra.mxu0 0.0
    %891 = vmatprep.subr.mxu0 0.0
    %892 = vmatpush1.msra.mxu0 0.0
    %893 = vmatprep.subr.mxu0 0.0
    %894 = vmatpush1.msra.mxu0 0.0
    %895 = vmatprep.subr.mxu0 0.0
    %896 = vmatpush1.msra.mxu0 0.0
    %897 = vmatprep.subr.mxu0 0.0
    %898 = vmatpush1.msra.mxu0 0.0
    %899 = vmatprep.subr.mxu0 0.0
    %900 = vmatpush1.msra.mxu0 0.0
    %901 = vmatprep.subr.mxu0 0.0
    %902 = vmatpush1.msra.mxu0 0.0
    %903 = vmatprep.subr.mxu0 0.0
    %904 = vmatpush1.msra.mxu0 0.0
    %905 = vmatprep.subr.mxu0 0.0
    %906 = vmatpush1.msra.mxu0 0.0
    %907 = vmatprep.subr.mxu0 0.0
    %908 = vmatpush1.msra.mxu0 0.0
    %909 = vmatprep.subr.mxu0 0.0
    %910 = vmatpush1.msra.mxu0 0.0
    %911 = vmatprep.subr.mxu0 0.0
    %912 = vmatpush1.msra.mxu0 0.0
    %913 = vmatprep.subr.mxu0 0.0
    %914 = vmatpush1.msra.mxu0 0.0
    %915 = vmatprep.subr.mxu0 0.0
    %916 = vmatpush1.msra.mxu0 0.0
    %917 = vmatprep.subr.mxu0 0.0
    %918 = vmatpush1.msra.mxu0 0.0
    %919 = vmatprep.subr.mxu0 0.0
    %920 = vmatpush1.msra.mxu0 0.0
    %921 = vmatprep.subr.mxu0 0.0
    %922 = vmatpush1.msra.mxu0 0.0
    %923 = vmatprep.subr.mxu0 0.0
    %924 = vmatpush1.msra.mxu0 0.0
    %925 = vmatprep.subr.mxu0 0.0
    %926 = vmatpush1.msra.mxu0 0.0
    %927 = vmatprep.subr.mxu0 0.0
    %928 = vmatpush1.msra.mxu0 0.0
    %929 = vmatprep.subr.mxu0 0.0
    %930 = vmatpush1.msra.mxu0 0.0
    %931 = vmatprep.subr.mxu0 0.0
    %932 = vmatpush1.msra.mxu0 0.0
    %933 = vmatprep.subr.mxu0 0.0
    %934 = vmatpush1.msra.mxu0 0.0
    %935 = vmatprep.subr.mxu0 0.0
    %936 = vmatpush1.msra.mxu0 0.0
    %937 = vmatprep.subr.mxu0 0.0
    %938 = vmatpush1.msra.mxu0 0.0
    %939 = vmatprep.subr.mxu0 0.0
    %940 = vmatpush1.msra.mxu0 0.0
    %941 = vmatprep.mubr.f32.mxu0 0.0
    %942 = vmatmul.mubr.f32.gmra.mrb[0].mxu0 %v875
    %v943 = vpop.f32.mrb[0].mxu0
    %v944 = vadd.f32 0.0, %v943
    %v945 = vpop.f32.mrb[0].mxu0
    %946 = vdwg.mxu0
    %948 = vrot.lane.b32.xlu0 %v47, 96
    %v949 = vpop.permute.xlu0 %948
    %v952 = vsel %vm540, %v702, 0
    %954 = vmatprep.subr.mxu0 0.0
    %955 = vmatpush1.msra.mxu0 %v949
    %956 = vmatprep.subr.mxu0 0.0
    %957 = vmatpush1.msra.mxu0 0.0
    %958 = vmatprep.subr.mxu0 0.0
    %959 = vmatpush1.msra.mxu0 0.0
    %960 = vmatprep.subr.mxu0 0.0
    %961 = vmatpush1.msra.mxu0 0.0
    %962 = vmatprep.subr.mxu0 0.0
    %963 = vmatpush1.msra.mxu0 0.0
    %964 = vmatprep.subr.mxu0 0.0
    %965 = vmatpush1.msra.mxu0 0.0
    %966 = vmatprep.subr.mxu0 0.0
    %967 = vmatpush1.msra.mxu0 0.0
    %968 = vmatprep.subr.mxu0 0.0
    %969 = vmatpush1.msra.mxu0 0.0
    %970 = vmatprep.subr.mxu0 0.0
    %971 = vmatpush1.msra.mxu0 0.0
    %972 = vmatprep.subr.mxu0 0.0
    %973 = vmatpush1.msra.mxu0 0.0
    %974 = vmatprep.subr.mxu0 0.0
    %975 = vmatpush1.msra.mxu0 0.0
    %976 = vmatprep.subr.mxu0 0.0
    %977 = vmatpush1.msra.mxu0 0.0
    %978 = vmatprep.subr.mxu0 0.0
    %979 = vmatpush1.msra.mxu0 0.0
    %980 = vmatprep.subr.mxu0 0.0
    %981 = vmatpush1.msra.mxu0 0.0
    %982 = vmatprep.subr.mxu0 0.0
    %983 = vmatpush1.msra.mxu0 0.0
    %984 = vmatprep.subr.mxu0 0.0
    %985 = vmatpush1.msra.mxu0 0.0
    %986 = vmatprep.subr.mxu0 0.0
    %987 = vmatpush1.msra.mxu0 0.0
    %988 = vmatprep.subr.mxu0 0.0
    %989 = vmatpush1.msra.mxu0 0.0
    %990 = vmatprep.subr.mxu0 0.0
    %991 = vmatpush1.msra.mxu0 0.0
    %992 = vmatprep.subr.mxu0 0.0
    %993 = vmatpush1.msra.mxu0 0.0
    %994 = vmatprep.subr.mxu0 0.0
    %995 = vmatpush1.msra.mxu0 0.0
    %996 = vmatprep.subr.mxu0 0.0
    %997 = vmatpush1.msra.mxu0 0.0
    %998 = vmatprep.subr.mxu0 0.0
    %999 = vmatpush1.msra.mxu0 0.0
    %1000 = vmatprep.subr.mxu0 0.0
    %1001 = vmatpush1.msra.mxu0 0.0
    %1002 = vmatprep.subr.mxu0 0.0
    %1003 = vmatpush1.msra.mxu0 0.0
    %1004 = vmatprep.subr.mxu0 0.0
    %1005 = vmatpush1.msra.mxu0 0.0
    %1006 = vmatprep.subr.mxu0 0.0
    %1007 = vmatpush1.msra.mxu0 0.0
    %1008 = vmatprep.subr.mxu0 0.0
    %1009 = vmatpush1.msra.mxu0 0.0
    %1010 = vmatprep.subr.mxu0 0.0
    %1011 = vmatpush1.msra.mxu0 0.0
    %1012 = vmatprep.subr.mxu0 0.0
    %1013 = vmatpush1.msra.mxu0 0.0
    %1014 = vmatprep.subr.mxu0 0.0
    %1015 = vmatpush1.msra.mxu0 0.0
    %1016 = vmatprep.subr.mxu0 0.0
    %1017 = vmatpush1.msra.mxu0 0.0
    %1018 = vmatprep.mubr.f32.mxu0 0.0
    %1019 = vmatmul.mubr.f32.gmra.mrb[0].mxu0 %v952
    %v1020 = vpop.f32.mrb[0].mxu0
    %v1021 = vadd.f32 %v944, %v1020
    %v1022 = vpop.f32.mrb[0].mxu0
    %1023 = vdwg.mxu0
    %1024 = vrot.lane.b32.xlu0 %v532, 112
    %v1025 = vpop.permute.xlu0 %1024
    %1026 = vrot.lane.b32.xlu0 %v538, 112
    %v1027 = vpop.permute.xlu0 %1026
    %v1028 = vsel %vm540, %v1025, 0
    %v1030 = vsel %vm540, %v1027, 0
    %1032 = vmatprep.subr.mxu0 0.0
    %1033 = vmatpush1.xpose.msra.mxu0 %v1030
    %1034 = vmatprep.subr.mxu0 0.0
    %1035 = vmatpush1.xpose.msra.mxu0 0.0
    %1036 = vmatprep.subr.mxu0 0.0
    %1037 = vmatpush1.xpose.msra.mxu0 0.0
    %1038 = vmatprep.subr.mxu0 0.0
    %1039 = vmatpush1.xpose.msra.mxu0 0.0
    %1040 = vmatprep.subr.mxu0 0.0
    %1041 = vmatpush1.xpose.msra.mxu0 0.0
    %1042 = vmatprep.subr.mxu0 0.0
    %1043 = vmatpush1.xpose.msra.mxu0 0.0
    %1044 = vmatprep.subr.mxu0 0.0
    %1045 = vmatpush1.xpose.msra.mxu0 0.0
    %1046 = vmatprep.subr.mxu0 0.0
    %1047 = vmatpush1.xpose.msra.mxu0 0.0
    %1048 = vmatprep.subr.mxu0 0.0
    %1049 = vmatpush1.xpose.msra.mxu0 0.0
    %1050 = vmatprep.subr.mxu0 0.0
    %1051 = vmatpush1.xpose.msra.mxu0 0.0
    %1052 = vmatprep.subr.mxu0 0.0
    %1053 = vmatpush1.xpose.msra.mxu0 0.0
    %1054 = vmatprep.subr.mxu0 0.0
    %1055 = vmatpush1.xpose.msra.mxu0 0.0
    %1056 = vmatprep.subr.mxu0 0.0
    %1057 = vmatpush1.xpose.msra.mxu0 0.0
    %1058 = vmatprep.subr.mxu0 0.0
    %1059 = vmatpush1.xpose.msra.mxu0 0.0
    %1060 = vmatprep.subr.mxu0 0.0
    %1061 = vmatpush1.xpose.msra.mxu0 0.0
    %1062 = vmatprep.subr.mxu0 0.0
    %1063 = vmatpush1.xpose.msra.mxu0 0.0
    %1064 = vmatprep.subr.mxu0 0.0
    %1065 = vmatpush1.xpose.msra.mxu0 0.0
    %1066 = vmatprep.subr.mxu0 0.0
    %1067 = vmatpush1.xpose.msra.mxu0 0.0
    %1068 = vmatprep.subr.mxu0 0.0
    %1069 = vmatpush1.xpose.msra.mxu0 0.0
    %1070 = vmatprep.subr.mxu0 0.0
    %1071 = vmatpush1.xpose.msra.mxu0 0.0
    %1072 = vmatprep.subr.mxu0 0.0
    %1073 = vmatpush1.xpose.msra.mxu0 0.0
    %1074 = vmatprep.subr.mxu0 0.0
    %1075 = vmatpush1.xpose.msra.mxu0 0.0
    %1076 = vmatprep.subr.mxu0 0.0
    %1077 = vmatpush1.xpose.msra.mxu0 0.0
    %1078 = vmatprep.subr.mxu0 0.0
    %1079 = vmatpush1.xpose.msra.mxu0 0.0
    %1080 = vmatprep.subr.mxu0 0.0
    %1081 = vmatpush1.xpose.msra.mxu0 0.0
    %1082 = vmatprep.subr.mxu0 0.0
    %1083 = vmatpush1.xpose.msra.mxu0 0.0
    %1084 = vmatprep.subr.mxu0 0.0
    %1085 = vmatpush1.xpose.msra.mxu0 0.0
    %1086 = vmatprep.subr.mxu0 0.0
    %1087 = vmatpush1.xpose.msra.mxu0 0.0
    %1088 = vmatprep.subr.mxu0 0.0
    %1089 = vmatpush1.xpose.msra.mxu0 0.0
    %1090 = vmatprep.subr.mxu0 0.0
    %1091 = vmatpush1.xpose.msra.mxu0 0.0
    %1092 = vmatprep.subr.mxu0 0.0
    %1093 = vmatpush1.xpose.msra.mxu0 0.0
    %1094 = vmatprep.subr.mxu0 0.0
    %1095 = vmatpush1.xpose.msra.mxu0 0.0
    %1096 = vmatprep.mubr.f32.mxu0 0.0
    %1097 = vmatmul.mubr.f32.gmra.mrb[0].mxu0 %v1028
    %v1098 = vpop.f32.mrb[0].mxu0
    %v1099 = vadd.f32 0.0, %v1098
    %v1100 = vpop.f32.mrb[0].mxu0
    %1101 = vdwg.mxu0
    %v1102 = vsel %vm540, %v1099, -inf
    %1103 = vmax.xlane.f32.xlu0 %v1102
    %v1104 = vpop.xlane.xlu0 %1103
    %v1105 = vsub.f32 %v1099, %v1104
    %v1106 = vmul.f32 %v1105, 1.442695
    %v1107 = vpow.pop %v1106
    %v1108 = vsel %vm540, %v1107, 0.0
    %1109 = vadd.xlane.f32.xlu0 %v1108
    %v1110 = vpop.xlane.xlu0 %1109
    %v1111 = vrcp.pop %v1110
    %v1112 = vmul.f32 %v1107, %v1111
    %1113 = vrot.lane.b32.xlu0 %v254, 80
    %v1114 = vpop.permute.xlu0 %1113
    %v1117 = vsel %vm540, %v1112, 0
    %1119 = vmatprep.subr.mxu0 0.0
    %1120 = vmatpush1.msra.mxu0 %v1114
    %1121 = vmatprep.subr.mxu0 0.0
    %1122 = vmatpush1.msra.mxu0 0.0
    %1123 = vmatprep.subr.mxu0 0.0
    %1124 = vmatpush1.msra.mxu0 0.0
    %1125 = vmatprep.subr.mxu0 0.0
    %1126 = vmatpush1.msra.mxu0 0.0
    %1127 = vmatprep.subr.mxu0 0.0
    %1128 = vmatpush1.msra.mxu0 0.0
    %1129 = vmatprep.subr.mxu0 0.0
    %1130 = vmatpush1.msra.mxu0 0.0
    %1131 = vmatprep.subr.mxu0 0.0
    %1132 = vmatpush1.msra.mxu0 0.0
    %1133 = vmatprep.subr.mxu0 0.0
    %1134 = vmatpush1.msra.mxu0 0.0
    %1135 = vmatprep.subr.mxu0 0.0
    %1136 = vmatpush1.msra.mxu0 0.0
    %1137 = vmatprep.subr.mxu0 0.0
    %1138 = vmatpush1.msra.mxu0 0.0
    %1139 = vmatprep.subr.mxu0 0.0
    %1140 = vmatpush1.msra.mxu0 0.0
    %1141 = vmatprep.subr.mxu0 0.0
    %1142 = vmatpush1.msra.mxu0 0.0
    %1143 = vmatprep.subr.mxu0 0.0
    %1144 = vmatpush1.msra.mxu0 0.0
    %1145 = vmatprep.subr.mxu0 0.0
    %1146 = vmatpush1.msra.mxu0 0.0
    %1147 = vmatprep.subr.mxu0 0.0
    %1148 = vmatpush1.msra.mxu0 0.0
    %1149 = vmatprep.subr.mxu0 0.0
    %1150 = vmatpush1.msra.mxu0 0.0
    %1151 = vmatprep.subr.mxu0 0.0
    %1152 = vmatpush1.msra.mxu0 0.0
    %1153 = vmatprep.subr.mxu0 0.0
    %1154 = vmatpush1.msra.mxu0 0.0
    %1155 = vmatprep.subr.mxu0 0.0
    %1156 = vmatpush1.msra.mxu0 0.0
    %1157 = vmatprep.subr.mxu0 0.0
    %1158 = vmatpush1.msra.mxu0 0.0
    %1159 = vmatprep.subr.mxu0 0.0
    %1160 = vmatpush1.msra.mxu0 0.0
    %1161 = vmatprep.subr.mxu0 0.0
    %1162 = vmatpush1.msra.mxu0 0.0
    %1163 = vmatprep.subr.mxu0 0.0
    %1164 = vmatpush1.msra.mxu0 0.0
    %1165 = vmatprep.subr.mxu0 0.0
    %1166 = vmatpush1.msra.mxu0 0.0
    %1167 = vmatprep.subr.mxu0 0.0
    %1168 = vmatpush1.msra.mxu0 0.0
    %1169 = vmatprep.subr.mxu0 0.0
    %1170 = vmatpush1.msra.mxu0 0.0
    %1171 = vmatprep.subr.mxu0 0.0
    %1172 = vmatpush1.msra.mxu0 0.0
    %1173 = vmatprep.subr.mxu0 0.0
    %1174 = vmatpush1.msra.mxu0 0.0
    %1175 = vmatprep.subr.mxu0 0.0
    %1176 = vmatpush1.msra.mxu0 0.0
    %1177 = vmatprep.subr.mxu0 0.0
    %1178 = vmatpush1.msra.mxu0 0.0
    %1179 = vmatprep.subr.mxu0 0.0
    %1180 = vmatpush1.msra.mxu0 0.0
    %1181 = vmatprep.subr.mxu0 0.0
    %1182 = vmatpush1.msra.mxu0 0.0
    %1183 = vmatprep.mubr.f32.mxu0 0.0
    %1184 = vmatmul.mubr.f32.gmra.mrb[0].mxu0 %v1117
    %v1185 = vpop.f32.mrb[0].mxu0
    %v1186 = vadd.f32 0.0, %v1185
    %v1187 = vpop.f32.mrb[0].mxu0
    %1188 = vdwg.mxu0
    %1190 = vrot.lane.b32.xlu0 %v49, 96
    %v1191 = vpop.permute.xlu0 %1190
    %v1194 = vsel %vm540, %v1186, 0
    %1196 = vmatprep.subr.mxu0 0.0
    %1197 = vmatpush1.msra.mxu0 %v1191
    %1198 = vmatprep.subr.mxu0 0.0
    %1199 = vmatpush1.msra.mxu0 0.0
    %1200 = vmatprep.subr.mxu0 0.0
    %1201 = vmatpush1.msra.mxu0 0.0
    %1202 = vmatprep.subr.mxu0 0.0
    %1203 = vmatpush1.msra.mxu0 0.0
    %1204 = vmatprep.subr.mxu0 0.0
    %1205 = vmatpush1.msra.mxu0 0.0
    %1206 = vmatprep.subr.mxu0 0.0
    %1207 = vmatpush1.msra.mxu0 0.0
    %1208 = vmatprep.subr.mxu0 0.0
    %1209 = vmatpush1.msra.mxu0 0.0
    %1210 = vmatprep.subr.mxu0 0.0
    %1211 = vmatpush1.msra.mxu0 0.0
    %1212 = vmatprep.subr.mxu0 0.0
    %1213 = vmatpush1.msra.mxu0 0.0
    %1214 = vmatprep.subr.mxu0 0.0
    %1215 = vmatpush1.msra.mxu0 0.0
    %1216 = vmatprep.subr.mxu0 0.0
    %1217 = vmatpush1.msra.mxu0 0.0
    %1218 = vmatprep.subr.mxu0 0.0
    %1219 = vmatpush1.msra.mxu0 0.0
    %1220 = vmatprep.subr.mxu0 0.0
    %1221 = vmatpush1.msra.mxu0 0.0
    %1222 = vmatprep.subr.mxu0 0.0
    %1223 = vmatpush1.msra.mxu0 0.0
    %1224 = vmatprep.subr.mxu0 0.0
    %1225 = vmatpush1.msra.mxu0 0.0
    %1226 = vmatprep.subr.mxu0 0.0
    %1227 = vmatpush1.msra.mxu0 0.0
    %1228 = vmatprep.subr.mxu0 0.0
    %1229 = vmatpush1.msra.mxu0 0.0
    %1230 = vmatprep.subr.mxu0 0.0
    %1231 = vmatpush1.msra.mxu0 0.0
    %1232 = vmatprep.subr.mxu0 0.0
    %1233 = vmatpush1.msra.mxu0 0.0
    %1234 = vmatprep.subr.mxu0 0.0
    %1235 = vmatpush1.msra.mxu0 0.0
    %1236 = vmatprep.subr.mxu0 0.0
    %1237 = vmatpush1.msra.mxu0 0.0
    %1238 = vmatprep.subr.mxu0 0.0
    %1239 = vmatpush1.msra.mxu0 0.0
    %1240 = vmatprep.subr.mxu0 0.0
    %1241 = vmatpush1.msra.mxu0 0.0
    %1242 = vmatprep.subr.mxu0 0.0
    %1243 = vmatpush1.msra.mxu0 0.0
    %1244 = vmatprep.subr.mxu0 0.0
    %1245 = vmatpush1.msra.mxu0 0.0
    %1246 = vmatprep.subr.mxu0 0.0
    %1247 = vmatpush1.msra.mxu0 0.0
    %1248 = vmatprep.subr.mxu0 0.0
    %1249 = vmatpush1.msra.mxu0 0.0
    %1250 = vmatprep.subr.mxu0 0.0
    %1251 = vmatpush1.msra.mxu0 0.0
    %1252 = vmatprep.subr.mxu0 0.0
    %1253 = vmatpush1.msra.mxu0 0.0
    %1254 = vmatprep.subr.mxu0 0.0
    %1255 = vmatpush1.msra.mxu0 0.0
    %1256 = vmatprep.subr.mxu0 0.0
    %1257 = vmatpush1.msra.mxu0 0.0
    %1258 = vmatprep.subr.mxu0 0.0
    %1259 = vmatpush1.msra.mxu0 0.0
    %1260 = vmatprep.mubr.f32.mxu0 0.0
    %1261 = vmatmul.mubr.f32.gmra.mrb[0].mxu0 %v1194
    %v1262 = vpop.f32.mrb[0].mxu0
    %v1263 = vadd.f32 0.0, %v1262
    %v1264 = vpop.f32.mrb[0].mxu0
    %1265 = vdwg.mxu0
    %v1266 = vadd.f32 %v1021, %v1263
    %1267 = vrot.lane.b32.xlu0 %v532, 104
    %v1268 = vpop.permute.xlu0 %1267
    %1269 = vrot.lane.b32.xlu0 %v538, 104
    %v1270 = vpop.permute.xlu0 %1269
    %v1271 = vsel %vm540, %v1268, 0
    %v1273 = vsel %vm540, %v1270, 0
    %1275 = vmatprep.subr.mxu0 0.0
    %1276 = vmatpush1.xpose.msra.mxu0 %v1273
    %1277 = vmatprep.subr.mxu0 0.0
    %1278 = vmatpush1.xpose.msra.mxu0 0.0
    %1279 = vmatprep.subr.mxu0 0.0
    %1280 = vmatpush1.xpose.msra.mxu0 0.0
    %1281 = vmatprep.subr.mxu0 0.0
    %1282 = vmatpush1.xpose.msra.mxu0 0.0
    %1283 = vmatprep.subr.mxu0 0.0
    %1284 = vmatpush1.xpose.msra.mxu0 0.0
    %1285 = vmatprep.subr.mxu0 0.0
    %1286 = vmatpush1.xpose.msra.mxu0 0.0
    %1287 = vmatprep.subr.mxu0 0.0
    %1288 = vmatpush1.xpose.msra.mxu0 0.0
    %1289 = vmatprep.subr.mxu0 0.0
    %1290 = vmatpush1.xpose.msra.mxu0 0.0
    %1291 = vmatprep.subr.mxu0 0.0
    %1292 = vmatpush1.xpose.msra.mxu0 0.0
    %1293 = vmatprep.subr.mxu0 0.0
    %1294 = vmatpush1.xpose.msra.mxu0 0.0
    %1295 = vmatprep.subr.mxu0 0.0
    %1296 = vmatpush1.xpose.msra.mxu0 0.0
    %1297 = vmatprep.subr.mxu0 0.0
    %1298 = vmatpush1.xpose.msra.mxu0 0.0
    %1299 = vmatprep.subr.mxu0 0.0
    %1300 = vmatpush1.xpose.msra.mxu0 0.0
    %1301 = vmatprep.subr.mxu0 0.0
    %1302 = vmatpush1.xpose.msra.mxu0 0.0
    %1303 = vmatprep.subr.mxu0 0.0
    %1304 = vmatpush1.xpose.msra.mxu0 0.0
    %1305 = vmatprep.subr.mxu0 0.0
    %1306 = vmatpush1.xpose.msra.mxu0 0.0
    %1307 = vmatprep.subr.mxu0 0.0
    %1308 = vmatpush1.xpose.msra.mxu0 0.0
    %1309 = vmatprep.subr.mxu0 0.0
    %1310 = vmatpush1.xpose.msra.mxu0 0.0
    %1311 = vmatprep.subr.mxu0 0.0
    %1312 = vmatpush1.xpose.msra.mxu0 0.0
    %1313 = vmatprep.subr.mxu0 0.0
    %1314 = vmatpush1.xpose.msra.mxu0 0.0
    %1315 = vmatprep.subr.mxu0 0.0
    %1316 = vmatpush1.xpose.msra.mxu0 0.0
    %1317 = vmatprep.subr.mxu0 0.0
    %1318 = vmatpush1.xpose.msra.mxu0 0.0
    %1319 = vmatprep.subr.mxu0 0.0
    %1320 = vmatpush1.xpose.msra.mxu0 0.0
    %1321 = vmatprep.subr.mxu0 0.0
    %1322 = vmatpush1.xpose.msra.mxu0 0.0
    %1323 = vmatprep.subr.mxu0 0.0
    %1324 = vmatpush1.xpose.msra.mxu0 0.0
    %1325 = vmatprep.subr.mxu0 0.0
    %1326 = vmatpush1.xpose.msra.mxu0 0.0
    %1327 = vmatprep.subr.mxu0 0.0
    %1328 = vmatpush1.xpose.msra.mxu0 0.0
    %1329 = vmatprep.subr.mxu0 0.0
    %1330 = vmatpush1.xpose.msra.mxu0 0.0
    %1331 = vmatprep.subr.mxu0 0.0
    %1332 = vmatpush1.xpose.msra.mxu0 0.0
    %1333 = vmatprep.subr.mxu0 0.0
    %1334 = vmatpush1.xpose.msra.mxu0 0.0
    %1335 = vmatprep.subr.mxu0 0.0
    %1336 = vmatpush1.xpose.msra.mxu0 0.0
    %1337 = vmatprep.subr.mxu0 0.0
    %1338 = vmatpush1.xpose.msra.mxu0 0.0
    %1339 = vmatprep.mubr.f32.mxu0 0.0
    %1340 = vmatmul.mubr.f32.gmra.mrb[0].mxu0 %v1271
    %v1341 = vpop.f32.mrb[0].mxu0
    %v1342 = vadd.f32 0.0, %v1341
    %v1343 = vpop.f32.mrb[0].mxu0
    %1344 = vdwg.mxu0
    %v1345 = vsel %vm540, %v1342, -inf
    %1346 = vmax.xlane.f32.xlu0 %v1345
    %v1347 = vpop.xlane.xlu0 %1346
    %v1348 = vsub.f32 %v1342, %v1347
    %v1349 = vmul.f32 %v1348, 1.442695
    %v1350 = vpow.pop %v1349
    %v1351 = vsel %vm540, %v1350, 0.0
    %1352 = vadd.xlane.f32.xlu0 %v1351
    %v1353 = vpop.xlane.xlu0 %1352
    %v1354 = vrcp.pop %v1353
    %v1355 = vmul.f32 %v1350, %v1354
    %1356 = vrot.lane.b32.xlu0 %v254, 72
    %v1357 = vpop.permute.xlu0 %1356
    %v1360 = vsel %vm540, %v1355, 0
    %1362 = vmatprep.subr.mxu0 0.0
    %1363 = vmatpush1.msra.mxu0 %v1357
    %1364 = vmatprep.subr.mxu0 0.0
    %1365 = vmatpush1.msra.mxu0 0.0
    %1366 = vmatprep.subr.mxu0 0.0
    %1367 = vmatpush1.msra.mxu0 0.0
    %1368 = vmatprep.subr.mxu0 0.0
    %1369 = vmatpush1.msra.mxu0 0.0
    %1370 = vmatprep.subr.mxu0 0.0
    %1371 = vmatpush1.msra.mxu0 0.0
    %1372 = vmatprep.subr.mxu0 0.0
    %1373 = vmatpush1.msra.mxu0 0.0
    %1374 = vmatprep.subr.mxu0 0.0
    %1375 = vmatpush1.msra.mxu0 0.0
    %1376 = vmatprep.subr.mxu0 0.0
    %1377 = vmatpush1.msra.mxu0 0.0
    %1378 = vmatprep.subr.mxu0 0.0
    %1379 = vmatpush1.msra.mxu0 0.0
    %1380 = vmatprep.subr.mxu0 0.0
    %1381 = vmatpush1.msra.mxu0 0.0
    %1382 = vmatprep.subr.mxu0 0.0
    %1383 = vmatpush1.msra.mxu0 0.0
    %1384 = vmatprep.subr.mxu0 0.0
    %1385 = vmatpush1.msra.mxu0 0.0
    %1386 = vmatprep.subr.mxu0 0.0
    %1387 = vmatpush1.msra.mxu0 0.0
    %1388 = vmatprep.subr.mxu0 0.0
    %1389 = vmatpush1.msra.mxu0 0.0
    %1390 = vmatprep.subr.mxu0 0.0
    %1391 = vmatpush1.msra.mxu0 0.0
    %1392 = vmatprep.subr.mxu0 0.0
    %1393 = vmatpush1.msra.mxu0 0.0
    %1394 = vmatprep.subr.mxu0 0.0
    %1395 = vmatpush1.msra.mxu0 0.0
    %1396 = vmatprep.subr.mxu0 0.0
    %1397 = vmatpush1.msra.mxu0 0.0
    %1398 = vmatprep.subr.mxu0 0.0
    %1399 = vmatpush1.msra.mxu0 0.0
    %1400 = vmatprep.subr.mxu0 0.0
    %1401 = vmatpush1.msra.mxu0 0.0
    %1402 = vmatprep.subr.mxu0 0.0
    %1403 = vmatpush1.msra.mxu0 0.0
    %1404 = vmatprep.subr.mxu0 0.0
    %1405 = vmatpush1.msra.mxu0 0.0
    %1406 = vmatprep.subr.mxu0 0.0
    %1407 = vmatpush1.msra.mxu0 0.0
    %1408 = vmatprep.subr.mxu0 0.0
    %1409 = vmatpush1.msra.mxu0 0.0
    %1410 = vmatprep.subr.mxu0 0.0
    %1411 = vmatpush1.msra.mxu0 0.0
    %1412 = vmatprep.subr.mxu0 0.0
    %1413 = vmatpush1.msra.mxu0 0.0
    %1414 = vmatprep.subr.mxu0 0.0
    %1415 = vmatpush1.msra.mxu0 0.0
    %1416 = vmatprep.subr.mxu0 0.0
    %1417 = vmatpush1.msra.mxu0 0.0
    %1418 = vmatprep.subr.mxu0 0.0
    %1419 = vmatpush1.msra.mxu0 0.0
    %1420 = vmatprep.subr.mxu0 0.0
    %1421 = vmatpush1.msra.mxu0 0.0
    %1422 = vmatprep.subr.mxu0 0.0
    %1423 = vmatpush1.msra.mxu0 0.0
    %1424 = vmatprep.subr.mxu0 0.0
    %1425 = vmatpush1.msra.mxu0 0.0
    %1426 = vmatprep.mubr.f32.mxu0 0.0
    %1427 = vmatmul.mubr.f32.gmra.mrb[0].mxu0 %v1360
    %v1428 = vpop.f32.mrb[0].mxu0
    %v1429 = vadd.f32 0.0, %v1428
    %v1430 = vpop.f32.mrb[0].mxu0
    %1431 = vdwg.mxu0
    %1433 = vrot.lane.b32.xlu0 %v50, 96
    %v1434 = vpop.permute.xlu0 %1433
    %v1437 = vsel %vm540, %v1429, 0
    %1439 = vmatprep.subr.mxu0 0.0
    %1440 = vmatpush1.msra.mxu0 %v1434
    %1441 = vmatprep.subr.mxu0 0.0
    %1442 = vmatpush1.msra.mxu0 0.0
    %1443 = vmatprep.subr.mxu0 0.0
    %1444 = vmatpush1.msra.mxu0 0.0
    %1445 = vmatprep.subr.mxu0 0.0
    %1446 = vmatpush1.msra.mxu0 0.0
    %1447 = vmatprep.subr.mxu0 0.0
    %1448 = vmatpush1.msra.mxu0 0.0
    %1449 = vmatprep.subr.mxu0 0.0
    %1450 = vmatpush1.msra.mxu0 0.0
    %1451 = vmatprep.subr.mxu0 0.0
    %1452 = vmatpush1.msra.mxu0 0.0
    %1453 = vmatprep.subr.mxu0 0.0
    %1454 = vmatpush1.msra.mxu0 0.0
    %1455 = vmatprep.subr.mxu0 0.0
    %1456 = vmatpush1.msra.mxu0 0.0
    %1457 = vmatprep.subr.mxu0 0.0
    %1458 = vmatpush1.msra.mxu0 0.0
    %1459 = vmatprep.subr.mxu0 0.0
    %1460 = vmatpush1.msra.mxu0 0.0
    %1461 = vmatprep.subr.mxu0 0.0
    %1462 = vmatpush1.msra.mxu0 0.0
    %1463 = vmatprep.subr.mxu0 0.0
    %1464 = vmatpush1.msra.mxu0 0.0
    %1465 = vmatprep.subr.mxu0 0.0
    %1466 = vmatpush1.msra.mxu0 0.0
    %1467 = vmatprep.subr.mxu0 0.0
    %1468 = vmatpush1.msra.mxu0 0.0
    %1469 = vmatprep.subr.mxu0 0.0
    %1470 = vmatpush1.msra.mxu0 0.0
    %1471 = vmatprep.subr.mxu0 0.0
    %1472 = vmatpush1.msra.mxu0 0.0
    %1473 = vmatprep.subr.mxu0 0.0
    %1474 = vmatpush1.msra.mxu0 0.0
    %1475 = vmatprep.subr.mxu0 0.0
    %1476 = vmatpush1.msra.mxu0 0.0
    %1477 = vmatprep.subr.mxu0 0.0
    %1478 = vmatpush1.msra.mxu0 0.0
    %1479 = vmatprep.subr.mxu0 0.0
    %1480 = vmatpush1.msra.mxu0 0.0
    %1481 = vmatprep.subr.mxu0 0.0
    %1482 = vmatpush1.msra.mxu0 0.0
    %1483 = vmatprep.subr.mxu0 0.0
    %1484 = vmatpush1.msra.mxu0 0.0
    %1485 = vmatprep.subr.mxu0 0.0
    %1486 = vmatpush1.msra.mxu0 0.0
    %1487 = vmatprep.subr.mxu0 0.0
    %1488 = vmatpush1.msra.mxu0 0.0
    %1489 = vmatprep.subr.mxu0 0.0
    %1490 = vmatpush1.msra.mxu0 0.0
    %1491 = vmatprep.subr.mxu0 0.0
    %1492 = vmatpush1.msra.mxu0 0.0
    %1493 = vmatprep.subr.mxu0 0.0
    %1494 = vmatpush1.msra.mxu0 0.0
    %1495 = vmatprep.subr.mxu0 0.0
    %1496 = vmatpush1.msra.mxu0 0.0
    %1497 = vmatprep.subr.mxu0 0.0
    %1498 = vmatpush1.msra.mxu0 0.0
    %1499 = vmatprep.subr.mxu0 0.0
    %1500 = vmatpush1.msra.mxu0 0.0
    %1501 = vmatprep.subr.mxu0 0.0
    %1502 = vmatpush1.msra.mxu0 0.0
    %1503 = vmatprep.mubr.f32.mxu0 0.0
    %1504 = vmatmul.mubr.f32.gmra.mrb[0].mxu0 %v1437
    %v1505 = vpop.f32.mrb[0].mxu0
    %v1506 = vadd.f32 0.0, %v1505
    %v1507 = vpop.f32.mrb[0].mxu0
    %1508 = vdwg.mxu0
    %v1509 = vadd.f32 %v1266, %v1506
    %v1511 = vsel %vm540, %v533, 0
    %v1514 = vsel %vm540, %v539, 0
    %1516 = vmatprep.subr.mxu0 0.0
    %1517 = vmatpush1.xpose.msra.mxu0 %v1514
    %1518 = vmatprep.subr.mxu0 0.0
    %1519 = vmatpush1.xpose.msra.mxu0 0.0
    %1520 = vmatprep.subr.mxu0 0.0
    %1521 = vmatpush1.xpose.msra.mxu0 0.0
    %1522 = vmatprep.subr.mxu0 0.0
    %1523 = vmatpush1.xpose.msra.mxu0 0.0
    %1524 = vmatprep.subr.mxu0 0.0
    %1525 = vmatpush1.xpose.msra.mxu0 0.0
    %1526 = vmatprep.subr.mxu0 0.0
    %1527 = vmatpush1.xpose.msra.mxu0 0.0
    %1528 = vmatprep.subr.mxu0 0.0
    %1529 = vmatpush1.xpose.msra.mxu0 0.0
    %1530 = vmatprep.subr.mxu0 0.0
    %1531 = vmatpush1.xpose.msra.mxu0 0.0
    %1532 = vmatprep.subr.mxu0 0.0
    %1533 = vmatpush1.xpose.msra.mxu0 0.0
    %1534 = vmatprep.subr.mxu0 0.0
    %1535 = vmatpush1.xpose.msra.mxu0 0.0
    %1536 = vmatprep.subr.mxu0 0.0
    %1537 = vmatpush1.xpose.msra.mxu0 0.0
    %1538 = vmatprep.subr.mxu0 0.0
    %1539 = vmatpush1.xpose.msra.mxu0 0.0
    %1540 = vmatprep.subr.mxu0 0.0
    %1541 = vmatpush1.xpose.msra.mxu0 0.0
    %1542 = vmatprep.subr.mxu0 0.0
    %1543 = vmatpush1.xpose.msra.mxu0 0.0
    %1544 = vmatprep.subr.mxu0 0.0
    %1545 = vmatpush1.xpose.msra.mxu0 0.0
    %1546 = vmatprep.subr.mxu0 0.0
    %1547 = vmatpush1.xpose.msra.mxu0 0.0
    %1548 = vmatprep.subr.mxu0 0.0
    %1549 = vmatpush1.xpose.msra.mxu0 0.0
    %1550 = vmatprep.subr.mxu0 0.0
    %1551 = vmatpush1.xpose.msra.mxu0 0.0
    %1552 = vmatprep.subr.mxu0 0.0
    %1553 = vmatpush1.xpose.msra.mxu0 0.0
    %1554 = vmatprep.subr.mxu0 0.0
    %1555 = vmatpush1.xpose.msra.mxu0 0.0
    %1556 = vmatprep.subr.mxu0 0.0
    %1557 = vmatpush1.xpose.msra.mxu0 0.0
    %1558 = vmatprep.subr.mxu0 0.0
    %1559 = vmatpush1.xpose.msra.mxu0 0.0
    %1560 = vmatprep.subr.mxu0 0.0
    %1561 = vmatpush1.xpose.msra.mxu0 0.0
    %1562 = vmatprep.subr.mxu0 0.0
    %1563 = vmatpush1.xpose.msra.mxu0 0.0
    %1564 = vmatprep.subr.mxu0 0.0
    %1565 = vmatpush1.xpose.msra.mxu0 0.0
    %1566 = vmatprep.subr.mxu0 0.0
    %1567 = vmatpush1.xpose.msra.mxu0 0.0
    %1568 = vmatprep.subr.mxu0 0.0
    %1569 = vmatpush1.xpose.msra.mxu0 0.0
    %1570 = vmatprep.subr.mxu0 0.0
    %1571 = vmatpush1.xpose.msra.mxu0 0.0
    %1572 = vmatprep.subr.mxu0 0.0
    %1573 = vmatpush1.xpose.msra.mxu0 0.0
    %1574 = vmatprep.subr.mxu0 0.0
    %1575 = vmatpush1.xpose.msra.mxu0 0.0
    %1576 = vmatprep.subr.mxu0 0.0
    %1577 = vmatpush1.xpose.msra.mxu0 0.0
    %1578 = vmatprep.subr.mxu0 0.0
    %1579 = vmatpush1.xpose.msra.mxu0 0.0
    %1580 = vmatprep.mubr.f32.mxu0 0.0
    %1581 = vmatmul.mubr.f32.gmra.mrb[0].mxu0 %v1511
    %v1582 = vpop.f32.mrb[0].mxu0
    %v1583 = vadd.f32 0.0, %v1582
    %v1584 = vpop.f32.mrb[0].mxu0
    %1585 = vdwg.mxu0
    %v1586 = vsel %vm540, %v1583, -inf
    %1587 = vmax.xlane.f32.xlu0 %v1586
    %v1588 = vpop.xlane.xlu0 %1587
    %v1589 = vsub.f32 %v1583, %v1588
    %v1590 = vmul.f32 %v1589, 1.442695
    %v1591 = vpow.pop %v1590
    %v1592 = vsel %vm540, %v1591, 0.0
    %1593 = vadd.xlane.f32.xlu0 %v1592
    %v1594 = vpop.xlane.xlu0 %1593
    %v1595 = vrcp.pop %v1594
    %v1596 = vmul.f32 %v1591, %v1595
    %1598 = vrot.lane.b32.xlu0 %v259, 96
    %v1599 = vpop.permute.xlu0 %1598
    %v1602 = vsel %vm540, %v1596, 0
    %1604 = vmatprep.subr.mxu0 0.0
    %1605 = vmatpush1.msra.mxu0 %v1599
    %1606 = vmatprep.subr.mxu0 0.0
    %1607 = vmatpush1.msra.mxu0 0.0
    %1608 = vmatprep.subr.mxu0 0.0
    %1609 = vmatpush1.msra.mxu0 0.0
    %1610 = vmatprep.subr.mxu0 0.0
    %1611 = vmatpush1.msra.mxu0 0.0
    %1612 = vmatprep.subr.mxu0 0.0
    %1613 = vmatpush1.msra.mxu0 0.0
    %1614 = vmatprep.subr.mxu0 0.0
    %1615 = vmatpush1.msra.mxu0 0.0
    %1616 = vmatprep.subr.mxu0 0.0
    %1617 = vmatpush1.msra.mxu0 0.0
    %1618 = vmatprep.subr.mxu0 0.0
    %1619 = vmatpush1.msra.mxu0 0.0
    %1620 = vmatprep.subr.mxu0 0.0
    %1621 = vmatpush1.msra.mxu0 0.0
    %1622 = vmatprep.subr.mxu0 0.0
    %1623 = vmatpush1.msra.mxu0 0.0
    %1624 = vmatprep.subr.mxu0 0.0
    %1625 = vmatpush1.msra.mxu0 0.0
    %1626 = vmatprep.subr.mxu0 0.0
    %1627 = vmatpush1.msra.mxu0 0.0
    %1628 = vmatprep.subr.mxu0 0.0
    %1629 = vmatpush1.msra.mxu0 0.0
    %1630 = vmatprep.subr.mxu0 0.0
    %1631 = vmatpush1.msra.mxu0 0.0
    %1632 = vmatprep.subr.mxu0 0.0
    %1633 = vmatpush1.msra.mxu0 0.0
    %1634 = vmatprep.subr.mxu0 0.0
    %1635 = vmatpush1.msra.mxu0 0.0
    %1636 = vmatprep.subr.mxu0 0.0
    %1637 = vmatpush1.msra.mxu0 0.0
    %1638 = vmatprep.subr.mxu0 0.0
    %1639 = vmatpush1.msra.mxu0 0.0
    %1640 = vmatprep.subr.mxu0 0.0
    %1641 = vmatpush1.msra.mxu0 0.0
    %1642 = vmatprep.subr.mxu0 0.0
    %1643 = vmatpush1.msra.mxu0 0.0
    %1644 = vmatprep.subr.mxu0 0.0
    %1645 = vmatpush1.msra.mxu0 0.0
    %1646 = vmatprep.subr.mxu0 0.0
    %1647 = vmatpush1.msra.mxu0 0.0
    %1648 = vmatprep.subr.mxu0 0.0
    %1649 = vmatpush1.msra.mxu0 0.0
    %1650 = vmatprep.subr.mxu0 0.0
    %1651 = vmatpush1.msra.mxu0 0.0
    %1652 = vmatprep.subr.mxu0 0.0
    %1653 = vmatpush1.msra.mxu0 0.0
    %1654 = vmatprep.subr.mxu0 0.0
    %1655 = vmatpush1.msra.mxu0 0.0
    %1656 = vmatprep.subr.mxu0 0.0
    %1657 = vmatpush1.msra.mxu0 0.0
    %1658 = vmatprep.subr.mxu0 0.0
    %1659 = vmatpush1.msra.mxu0 0.0
    %1660 = vmatprep.subr.mxu0 0.0
    %1661 = vmatpush1.msra.mxu0 0.0
    %1662 = vmatprep.subr.mxu0 0.0
    %1663 = vmatpush1.msra.mxu0 0.0
    %1664 = vmatprep.subr.mxu0 0.0
    %1665 = vmatpush1.msra.mxu0 0.0
    %1666 = vmatprep.subr.mxu0 0.0
    %1667 = vmatpush1.msra.mxu0 0.0
    %1668 = vmatprep.mubr.f32.mxu0 0.0
    %1669 = vmatmul.mubr.f32.gmra.mrb[0].mxu0 %v1602
    %v1670 = vpop.f32.mrb[0].mxu0
    %v1671 = vadd.f32 0.0, %v1670
    %v1672 = vpop.f32.mrb[0].mxu0
    %1673 = vdwg.mxu0
    %1674 = vrot.lane.b32.xlu0 %v533, 120
    %v1675 = vpop.permute.xlu0 %1674
    %1676 = vrot.lane.b32.xlu0 %v539, 120
    %v1677 = vpop.permute.xlu0 %1676
    %v1678 = vsel %vm540, %v1675, 0
    %v1680 = vsel %vm540, %v1677, 0
    %1682 = vmatprep.subr.mxu0 0.0
    %1683 = vmatpush1.xpose.msra.mxu0 %v1680
    %1684 = vmatprep.subr.mxu0 0.0
    %1685 = vmatpush1.xpose.msra.mxu0 0.0
    %1686 = vmatprep.subr.mxu0 0.0
    %1687 = vmatpush1.xpose.msra.mxu0 0.0
    %1688 = vmatprep.subr.mxu0 0.0
    %1689 = vmatpush1.xpose.msra.mxu0 0.0
    %1690 = vmatprep.subr.mxu0 0.0
    %1691 = vmatpush1.xpose.msra.mxu0 0.0
    %1692 = vmatprep.subr.mxu0 0.0
    %1693 = vmatpush1.xpose.msra.mxu0 0.0
    %1694 = vmatprep.subr.mxu0 0.0
    %1695 = vmatpush1.xpose.msra.mxu0 0.0
    %1696 = vmatprep.subr.mxu0 0.0
    %1697 = vmatpush1.xpose.msra.mxu0 0.0
    %1698 = vmatprep.subr.mxu0 0.0
    %1699 = vmatpush1.xpose.msra.mxu0 0.0
    %1700 = vmatprep.subr.mxu0 0.0
    %1701 = vmatpush1.xpose.msra.mxu0 0.0
    %1702 = vmatprep.subr.mxu0 0.0
    %1703 = vmatpush1.xpose.msra.mxu0 0.0
    %1704 = vmatprep.subr.mxu0 0.0
    %1705 = vmatpush1.xpose.msra.mxu0 0.0
    %1706 = vmatprep.subr.mxu0 0.0
    %1707 = vmatpush1.xpose.msra.mxu0 0.0
    %1708 = vmatprep.subr.mxu0 0.0
    %1709 = vmatpush1.xpose.msra.mxu0 0.0
    %1710 = vmatprep.subr.mxu0 0.0
    %1711 = vmatpush1.xpose.msra.mxu0 0.0
    %1712 = vmatprep.subr.mxu0 0.0
    %1713 = vmatpush1.xpose.msra.mxu0 0.0
    %1714 = vmatprep.subr.mxu0 0.0
    %1715 = vmatpush1.xpose.msra.mxu0 0.0
    %1716 = vmatprep.subr.mxu0 0.0
    %1717 = vmatpush1.xpose.msra.mxu0 0.0
    %1718 = vmatprep.subr.mxu0 0.0
    %1719 = vmatpush1.xpose.msra.mxu0 0.0
    %1720 = vmatprep.subr.mxu0 0.0
    %1721 = vmatpush1.xpose.msra.mxu0 0.0
    %1722 = vmatprep.subr.mxu0 0.0
    %1723 = vmatpush1.xpose.msra.mxu0 0.0
    %1724 = vmatprep.subr.mxu0 0.0
    %1725 = vmatpush1.xpose.msra.mxu0 0.0
    %1726 = vmatprep.subr.mxu0 0.0
    %1727 = vmatpush1.xpose.msra.mxu0 0.0
    %1728 = vmatprep.subr.mxu0 0.0
    %1729 = vmatpush1.xpose.msra.mxu0 0.0
    %1730 = vmatprep.subr.mxu0 0.0
    %1731 = vmatpush1.xpose.msra.mxu0 0.0
    %1732 = vmatprep.subr.mxu0 0.0
    %1733 = vmatpush1.xpose.msra.mxu0 0.0
    %1734 = vmatprep.subr.mxu0 0.0
    %1735 = vmatpush1.xpose.msra.mxu0 0.0
    %1736 = vmatprep.subr.mxu0 0.0
    %1737 = vmatpush1.xpose.msra.mxu0 0.0
    %1738 = vmatprep.subr.mxu0 0.0
    %1739 = vmatpush1.xpose.msra.mxu0 0.0
    %1740 = vmatprep.subr.mxu0 0.0
    %1741 = vmatpush1.xpose.msra.mxu0 0.0
    %1742 = vmatprep.subr.mxu0 0.0
    %1743 = vmatpush1.xpose.msra.mxu0 0.0
    %1744 = vmatprep.subr.mxu0 0.0
    %1745 = vmatpush1.xpose.msra.mxu0 0.0
    %1746 = vmatprep.mubr.f32.mxu0 0.0
    %1747 = vmatmul.mubr.f32.gmra.mrb[0].mxu0 %v1678
    %v1748 = vpop.f32.mrb[0].mxu0
    %v1749 = vadd.f32 0.0, %v1748
    %v1750 = vpop.f32.mrb[0].mxu0
    %1751 = vdwg.mxu0
    %v1752 = vsel %vm540, %v1749, -inf
    %1753 = vmax.xlane.f32.xlu0 %v1752
    %v1754 = vpop.xlane.xlu0 %1753
    %v1755 = vsub.f32 %v1749, %v1754
    %v1756 = vmul.f32 %v1755, 1.442695
    %v1757 = vpow.pop %v1756
    %v1758 = vsel %vm540, %v1757, 0.0
    %1759 = vadd.xlane.f32.xlu0 %v1758
    %v1760 = vpop.xlane.xlu0 %1759
    %v1761 = vrcp.pop %v1760
    %v1762 = vmul.f32 %v1757, %v1761
    %1763 = vrot.lane.b32.xlu0 %v259, 88
    %v1764 = vpop.permute.xlu0 %1763
    %v1767 = vsel %vm540, %v1762, 0
    %1769 = vmatprep.subr.mxu0 0.0
    %1770 = vmatpush1.msra.mxu0 %v1764
    %1771 = vmatprep.subr.mxu0 0.0
    %1772 = vmatpush1.msra.mxu0 0.0
    %1773 = vmatprep.subr.mxu0 0.0
    %1774 = vmatpush1.msra.mxu0 0.0
    %1775 = vmatprep.subr.mxu0 0.0
    %1776 = vmatpush1.msra.mxu0 0.0
    %1777 = vmatprep.subr.mxu0 0.0
    %1778 = vmatpush1.msra.mxu0 0.0
    %1779 = vmatprep.subr.mxu0 0.0
    %1780 = vmatpush1.msra.mxu0 0.0
    %1781 = vmatprep.subr.mxu0 0.0
    %1782 = vmatpush1.msra.mxu0 0.0
    %1783 = vmatprep.subr.mxu0 0.0
    %1784 = vmatpush1.msra.mxu0 0.0
    %1785 = vmatprep.subr.mxu0 0.0
    %1786 = vmatpush1.msra.mxu0 0.0
    %1787 = vmatprep.subr.mxu0 0.0
    %1788 = vmatpush1.msra.mxu0 0.0
    %1789 = vmatprep.subr.mxu0 0.0
    %1790 = vmatpush1.msra.mxu0 0.0
    %1791 = vmatprep.subr.mxu0 0.0
    %1792 = vmatpush1.msra.mxu0 0.0
    %1793 = vmatprep.subr.mxu0 0.0
    %1794 = vmatpush1.msra.mxu0 0.0
    %1795 = vmatprep.subr.mxu0 0.0
    %1796 = vmatpush1.msra.mxu0 0.0
    %1797 = vmatprep.subr.mxu0 0.0
    %1798 = vmatpush1.msra.mxu0 0.0
    %1799 = vmatprep.subr.mxu0 0.0
    %1800 = vmatpush1.msra.mxu0 0.0
    %1801 = vmatprep.subr.mxu0 0.0
    %1802 = vmatpush1.msra.mxu0 0.0
    %1803 = vmatprep.subr.mxu0 0.0
    %1804 = vmatpush1.msra.mxu0 0.0
    %1805 = vmatprep.subr.mxu0 0.0
    %1806 = vmatpush1.msra.mxu0 0.0
    %1807 = vmatprep.subr.mxu0 0.0
    %1808 = vmatpush1.msra.mxu0 0.0
    %1809 = vmatprep.subr.mxu0 0.0
    %1810 = vmatpush1.msra.mxu0 0.0
    %1811 = vmatprep.subr.mxu0 0.0
    %1812 = vmatpush1.msra.mxu0 0.0
    %1813 = vmatprep.subr.mxu0 0.0
    %1814 = vmatpush1.msra.mxu0 0.0
    %1815 = vmatprep.subr.mxu0 0.0
    %1816 = vmatpush1.msra.mxu0 0.0
    %1817 = vmatprep.subr.mxu0 0.0
    %1818 = vmatpush1.msra.mxu0 0.0
    %1819 = vmatprep.subr.mxu0 0.0
    %1820 = vmatpush1.msra.mxu0 0.0
    %1821 = vmatprep.subr.mxu0 0.0
    %1822 = vmatpush1.msra.mxu0 0.0
    %1823 = vmatprep.subr.mxu0 0.0
    %1824 = vmatpush1.msra.mxu0 0.0
    %1825 = vmatprep.subr.mxu0 0.0
    %1826 = vmatpush1.msra.mxu0 0.0
    %1827 = vmatprep.subr.mxu0 0.0
    %1828 = vmatpush1.msra.mxu0 0.0
    %1829 = vmatprep.subr.mxu0 0.0
    %1830 = vmatpush1.msra.mxu0 0.0
    %1831 = vmatprep.subr.mxu0 0.0
    %1832 = vmatpush1.msra.mxu0 0.0
    %1833 = vmatprep.mubr.f32.mxu0 0.0
    %1834 = vmatmul.mubr.f32.gmra.mrb[0].mxu0 %v1767
    %v1835 = vpop.f32.mrb[0].mxu0
    %v1836 = vadd.f32 0.0, %v1835
    %v1837 = vpop.f32.mrb[0].mxu0
    %1838 = vdwg.mxu0
    %v1840 = vsel %vm540, %v1836, 0
    %1842 = vmatprep.subr.mxu0 0.0
    %1843 = vmatpush1.msra.mxu0 %v872
    %1844 = vmatprep.subr.mxu0 0.0
    %1845 = vmatpush1.msra.mxu0 0.0
    %1846 = vmatprep.subr.mxu0 0.0
    %1847 = vmatpush1.msra.mxu0 0.0
    %1848 = vmatprep.subr.mxu0 0.0
    %1849 = vmatpush1.msra.mxu0 0.0
    %1850 = vmatprep.subr.mxu0 0.0
    %1851 = vmatpush1.msra.mxu0 0.0
    %1852 = vmatprep.subr.mxu0 0.0
    %1853 = vmatpush1.msra.mxu0 0.0
    %1854 = vmatprep.subr.mxu0 0.0
    %1855 = vmatpush1.msra.mxu0 0.0
    %1856 = vmatprep.subr.mxu0 0.0
    %1857 = vmatpush1.msra.mxu0 0.0
    %1858 = vmatprep.subr.mxu0 0.0
    %1859 = vmatpush1.msra.mxu0 0.0
    %1860 = vmatprep.subr.mxu0 0.0
    %1861 = vmatpush1.msra.mxu0 0.0
    %1862 = vmatprep.subr.mxu0 0.0
    %1863 = vmatpush1.msra.mxu0 0.0
    %1864 = vmatprep.subr.mxu0 0.0
    %1865 = vmatpush1.msra.mxu0 0.0
    %1866 = vmatprep.subr.mxu0 0.0
    %1867 = vmatpush1.msra.mxu0 0.0
    %1868 = vmatprep.subr.mxu0 0.0
    %1869 = vmatpush1.msra.mxu0 0.0
    %1870 = vmatprep.subr.mxu0 0.0
    %1871 = vmatpush1.msra.mxu0 0.0
    %1872 = vmatprep.subr.mxu0 0.0
    %1873 = vmatpush1.msra.mxu0 0.0
    %1874 = vmatprep.subr.mxu0 0.0
    %1875 = vmatpush1.msra.mxu0 0.0
    %1876 = vmatprep.subr.mxu0 0.0
    %1877 = vmatpush1.msra.mxu0 0.0
    %1878 = vmatprep.subr.mxu0 0.0
    %1879 = vmatpush1.msra.mxu0 0.0
    %1880 = vmatprep.subr.mxu0 0.0
    %1881 = vmatpush1.msra.mxu0 0.0
    %1882 = vmatprep.subr.mxu0 0.0
    %1883 = vmatpush1.msra.mxu0 0.0
    %1884 = vmatprep.subr.mxu0 0.0
    %1885 = vmatpush1.msra.mxu0 0.0
    %1886 = vmatprep.subr.mxu0 0.0
    %1887 = vmatpush1.msra.mxu0 0.0
    %1888 = vmatprep.subr.mxu0 0.0
    %1889 = vmatpush1.msra.mxu0 0.0
    %1890 = vmatprep.subr.mxu0 0.0
    %1891 = vmatpush1.msra.mxu0 0.0
    %1892 = vmatprep.subr.mxu0 0.0
    %1893 = vmatpush1.msra.mxu0 0.0
    %1894 = vmatprep.subr.mxu0 0.0
    %1895 = vmatpush1.msra.mxu0 0.0
    %1896 = vmatprep.subr.mxu0 0.0
    %1897 = vmatpush1.msra.mxu0 0.0
    %1898 = vmatprep.subr.mxu0 0.0
    %1899 = vmatpush1.msra.mxu0 0.0
    %1900 = vmatprep.subr.mxu0 0.0
    %1901 = vmatpush1.msra.mxu0 0.0
    %1902 = vmatprep.subr.mxu0 0.0
    %1903 = vmatpush1.msra.mxu0 0.0
    %1904 = vmatprep.subr.mxu0 0.0
    %1905 = vmatpush1.msra.mxu0 0.0
    %1906 = vmatprep.mubr.f32.mxu0 0.0
    %1907 = vmatmul.mubr.f32.gmra.mrb[0].mxu0 %v1840
    %v1908 = vpop.f32.mrb[0].mxu0
    %v1909 = vadd.f32 0.0, %v1908
    %v1910 = vpop.f32.mrb[0].mxu0
    %1911 = vdwg.mxu0
    %v1913 = vsel %vm540, %v1671, 0
    %1915 = vmatprep.subr.mxu0 0.0
    %1916 = vmatpush1.msra.mxu0 %v949
    %1917 = vmatprep.subr.mxu0 0.0
    %1918 = vmatpush1.msra.mxu0 0.0
    %1919 = vmatprep.subr.mxu0 0.0
    %1920 = vmatpush1.msra.mxu0 0.0
    %1921 = vmatprep.subr.mxu0 0.0
    %1922 = vmatpush1.msra.mxu0 0.0
    %1923 = vmatprep.subr.mxu0 0.0
    %1924 = vmatpush1.msra.mxu0 0.0
    %1925 = vmatprep.subr.mxu0 0.0
    %1926 = vmatpush1.msra.mxu0 0.0
    %1927 = vmatprep.subr.mxu0 0.0
    %1928 = vmatpush1.msra.mxu0 0.0
    %1929 = vmatprep.subr.mxu0 0.0
    %1930 = vmatpush1.msra.mxu0 0.0
    %1931 = vmatprep.subr.mxu0 0.0
    %1932 = vmatpush1.msra.mxu0 0.0
    %1933 = vmatprep.subr.mxu0 0.0
    %1934 = vmatpush1.msra.mxu0 0.0
    %1935 = vmatprep.subr.mxu0 0.0
    %1936 = vmatpush1.msra.mxu0 0.0
    %1937 = vmatprep.subr.mxu0 0.0
    %1938 = vmatpush1.msra.mxu0 0.0
    %1939 = vmatprep.subr.mxu0 0.0
    %1940 = vmatpush1.msra.mxu0 0.0
    %1941 = vmatprep.subr.mxu0 0.0
    %1942 = vmatpush1.msra.mxu0 0.0
    %1943 = vmatprep.subr.mxu0 0.0
    %1944 = vmatpush1.msra.mxu0 0.0
    %1945 = vmatprep.subr.mxu0 0.0
    %1946 = vmatpush1.msra.mxu0 0.0
    %1947 = vmatprep.subr.mxu0 0.0
    %1948 = vmatpush1.msra.mxu0 0.0
    %1949 = vmatprep.subr.mxu0 0.0
    %1950 = vmatpush1.msra.mxu0 0.0
    %1951 = vmatprep.subr.mxu0 0.0
    %1952 = vmatpush1.msra.mxu0 0.0
    %1953 = vmatprep.subr.mxu0 0.0
    %1954 = vmatpush1.msra.mxu0 0.0
    %1955 = vmatprep.subr.mxu0 0.0
    %1956 = vmatpush1.msra.mxu0 0.0
    %1957 = vmatprep.subr.mxu0 0.0
    %1958 = vmatpush1.msra.mxu0 0.0
    %1959 = vmatprep.subr.mxu0 0.0
    %1960 = vmatpush1.msra.mxu0 0.0
    %1961 = vmatprep.subr.mxu0 0.0
    %1962 = vmatpush1.msra.mxu0 0.0
    %1963 = vmatprep.subr.mxu0 0.0
    %1964 = vmatpush1.msra.mxu0 0.0
    %1965 = vmatprep.subr.mxu0 0.0
    %1966 = vmatpush1.msra.mxu0 0.0
    %1967 = vmatprep.subr.mxu0 0.0
    %1968 = vmatpush1.msra.mxu0 0.0
    %1969 = vmatprep.subr.mxu0 0.0
    %1970 = vmatpush1.msra.mxu0 0.0
    %1971 = vmatprep.subr.mxu0 0.0
    %1972 = vmatpush1.msra.mxu0 0.0
    %1973 = vmatprep.subr.mxu0 0.0
    %1974 = vmatpush1.msra.mxu0 0.0
    %1975 = vmatprep.subr.mxu0 0.0
    %1976 = vmatpush1.msra.mxu0 0.0
    %1977 = vmatprep.subr.mxu0 0.0
    %1978 = vmatpush1.msra.mxu0 0.0
    %1979 = vmatprep.mubr.f32.mxu0 0.0
    %1980 = vmatmul.mubr.f32.gmra.mrb[0].mxu0 %v1913
    %v1981 = vpop.f32.mrb[0].mxu0
    %v1982 = vadd.f32 %v1909, %v1981
    %v1983 = vpop.f32.mrb[0].mxu0
    %1984 = vdwg.mxu0
    %1985 = vrot.lane.b32.xlu0 %v533, 112
    %v1986 = vpop.permute.xlu0 %1985
    %1987 = vrot.lane.b32.xlu0 %v539, 112
    %v1988 = vpop.permute.xlu0 %1987
    %v1989 = vsel %vm540, %v1986, 0
    %v1991 = vsel %vm540, %v1988, 0
    %1993 = vmatprep.subr.mxu0 0.0
    %1994 = vmatpush1.xpose.msra.mxu0 %v1991
    %1995 = vmatprep.subr.mxu0 0.0
    %1996 = vmatpush1.xpose.msra.mxu0 0.0
    %1997 = vmatprep.subr.mxu0 0.0
    %1998 = vmatpush1.xpose.msra.mxu0 0.0
    %1999 = vmatprep.subr.mxu0 0.0
    %2000 = vmatpush1.xpose.msra.mxu0 0.0
    %2001 = vmatprep.subr.mxu0 0.0
    %2002 = vmatpush1.xpose.msra.mxu0 0.0
    %2003 = vmatprep.subr.mxu0 0.0
    %2004 = vmatpush1.xpose.msra.mxu0 0.0
    %2005 = vmatprep.subr.mxu0 0.0
    %2006 = vmatpush1.xpose.msra.mxu0 0.0
    %2007 = vmatprep.subr.mxu0 0.0
    %2008 = vmatpush1.xpose.msra.mxu0 0.0
    %2009 = vmatprep.subr.mxu0 0.0
    %2010 = vmatpush1.xpose.msra.mxu0 0.0
    %2011 = vmatprep.subr.mxu0 0.0
    %2012 = vmatpush1.xpose.msra.mxu0 0.0
    %2013 = vmatprep.subr.mxu0 0.0
    %2014 = vmatpush1.xpose.msra.mxu0 0.0
    %2015 = vmatprep.subr.mxu0 0.0
    %2016 = vmatpush1.xpose.msra.mxu0 0.0
    %2017 = vmatprep.subr.mxu0 0.0
    %2018 = vmatpush1.xpose.msra.mxu0 0.0
    %2019 = vmatprep.subr.mxu0 0.0
    %2020 = vmatpush1.xpose.msra.mxu0 0.0
    %2021 = vmatprep.subr.mxu0 0.0
    %2022 = vmatpush1.xpose.msra.mxu0 0.0
    %2023 = vmatprep.subr.mxu0 0.0
    %2024 = vmatpush1.xpose.msra.mxu0 0.0
    %2025 = vmatprep.subr.mxu0 0.0
    %2026 = vmatpush1.xpose.msra.mxu0 0.0
    %2027 = vmatprep.subr.mxu0 0.0
    %2028 = vmatpush1.xpose.msra.mxu0 0.0
    %2029 = vmatprep.subr.mxu0 0.0
    %2030 = vmatpush1.xpose.msra.mxu0 0.0
    %2031 = vmatprep.subr.mxu0 0.0
    %2032 = vmatpush1.xpose.msra.mxu0 0.0
    %2033 = vmatprep.subr.mxu0 0.0
    %2034 = vmatpush1.xpose.msra.mxu0 0.0
    %2035 = vmatprep.subr.mxu0 0.0
    %2036 = vmatpush1.xpose.msra.mxu0 0.0
    %2037 = vmatprep.subr.mxu0 0.0
    %2038 = vmatpush1.xpose.msra.mxu0 0.0
    %2039 = vmatprep.subr.mxu0 0.0
    %2040 = vmatpush1.xpose.msra.mxu0 0.0
    %2041 = vmatprep.subr.mxu0 0.0
    %2042 = vmatpush1.xpose.msra.mxu0 0.0
    %2043 = vmatprep.subr.mxu0 0.0
    %2044 = vmatpush1.xpose.msra.mxu0 0.0
    %2045 = vmatprep.subr.mxu0 0.0
    %2046 = vmatpush1.xpose.msra.mxu0 0.0
    %2047 = vmatprep.subr.mxu0 0.0
    %2048 = vmatpush1.xpose.msra.mxu0 0.0
    %2049 = vmatprep.subr.mxu0 0.0
    %2050 = vmatpush1.xpose.msra.mxu0 0.0
    %2051 = vmatprep.subr.mxu0 0.0
    %2052 = vmatpush1.xpose.msra.mxu0 0.0
    %2053 = vmatprep.subr.mxu0 0.0
    %2054 = vmatpush1.xpose.msra.mxu0 0.0
    %2055 = vmatprep.subr.mxu0 0.0
    %2056 = vmatpush1.xpose.msra.mxu0 0.0
    %2057 = vmatprep.mubr.f32.mxu0 0.0
    %2058 = vmatmul.mubr.f32.gmra.mrb[0].mxu0 %v1989
    %v2059 = vpop.f32.mrb[0].mxu0
    %v2060 = vadd.f32 0.0, %v2059
    %v2061 = vpop.f32.mrb[0].mxu0
    %2062 = vdwg.mxu0
    %v2063 = vsel %vm540, %v2060, -inf
    %2064 = vmax.xlane.f32.xlu0 %v2063
    %v2065 = vpop.xlane.xlu0 %2064
    %v2066 = vsub.f32 %v2060, %v2065
    %v2067 = vmul.f32 %v2066, 1.442695
    %v2068 = vpow.pop %v2067
    %v2069 = vsel %vm540, %v2068, 0.0
    %2070 = vadd.xlane.f32.xlu0 %v2069
    %v2071 = vpop.xlane.xlu0 %2070
    %v2072 = vrcp.pop %v2071
    %v2073 = vmul.f32 %v2068, %v2072
    %2074 = vrot.lane.b32.xlu0 %v259, 80
    %v2075 = vpop.permute.xlu0 %2074
    %v2078 = vsel %vm540, %v2073, 0
    %2080 = vmatprep.subr.mxu0 0.0
    %2081 = vmatpush1.msra.mxu0 %v2075
    %2082 = vmatprep.subr.mxu0 0.0
    %2083 = vmatpush1.msra.mxu0 0.0
    %2084 = vmatprep.subr.mxu0 0.0
    %2085 = vmatpush1.msra.mxu0 0.0
    %2086 = vmatprep.subr.mxu0 0.0
    %2087 = vmatpush1.msra.mxu0 0.0
    %2088 = vmatprep.subr.mxu0 0.0
    %2089 = vmatpush1.msra.mxu0 0.0
    %2090 = vmatprep.subr.mxu0 0.0
    %2091 = vmatpush1.msra.mxu0 0.0
    %2092 = vmatprep.subr.mxu0 0.0
    %2093 = vmatpush1.msra.mxu0 0.0
    %2094 = vmatprep.subr.mxu0 0.0
    %2095 = vmatpush1.msra.mxu0 0.0
    %2096 = vmatprep.subr.mxu0 0.0
    %2097 = vmatpush1.msra.mxu0 0.0
    %2098 = vmatprep.subr.mxu0 0.0
    %2099 = vmatpush1.msra.mxu0 0.0
    %2100 = vmatprep.subr.mxu0 0.0
    %2101 = vmatpush1.msra.mxu0 0.0
    %2102 = vmatprep.subr.mxu0 0.0
    %2103 = vmatpush1.msra.mxu0 0.0
    %2104 = vmatprep.subr.mxu0 0.0
    %2105 = vmatpush1.msra.mxu0 0.0
    %2106 = vmatprep.subr.mxu0 0.0
    %2107 = vmatpush1.msra.mxu0 0.0
    %2108 = vmatprep.subr.mxu0 0.0
    %2109 = vmatpush1.msra.mxu0 0.0
    %2110 = vmatprep.subr.mxu0 0.0
    %2111 = vmatpush1.msra.mxu0 0.0
    %2112 = vmatprep.subr.mxu0 0.0
    %2113 = vmatpush1.msra.mxu0 0.0
    %2114 = vmatprep.subr.mxu0 0.0
    %2115 = vmatpush1.msra.mxu0 0.0
    %2116 = vmatprep.subr.mxu0 0.0
    %2117 = vmatpush1.msra.mxu0 0.0
    %2118 = vmatprep.subr.mxu0 0.0
    %2119 = vmatpush1.msra.mxu0 0.0
    %2120 = vmatprep.subr.mxu0 0.0
    %2121 = vmatpush1.msra.mxu0 0.0
    %2122 = vmatprep.subr.mxu0 0.0
    %2123 = vmatpush1.msra.mxu0 0.0
    %2124 = vmatprep.subr.mxu0 0.0
    %2125 = vmatpush1.msra.mxu0 0.0
    %2126 = vmatprep.subr.mxu0 0.0
    %2127 = vmatpush1.msra.mxu0 0.0
    %2128 = vmatprep.subr.mxu0 0.0
    %2129 = vmatpush1.msra.mxu0 0.0
    %2130 = vmatprep.subr.mxu0 0.0
    %2131 = vmatpush1.msra.mxu0 0.0
    %2132 = vmatprep.subr.mxu0 0.0
    %2133 = vmatpush1.msra.mxu0 0.0
    %2134 = vmatprep.subr.mxu0 0.0
    %2135 = vmatpush1.msra.mxu0 0.0
    %2136 = vmatprep.subr.mxu0 0.0
    %2137 = vmatpush1.msra.mxu0 0.0
    %2138 = vmatprep.subr.mxu0 0.0
    %2139 = vmatpush1.msra.mxu0 0.0
    %2140 = vmatprep.subr.mxu0 0.0
    %2141 = vmatpush1.msra.mxu0 0.0
    %2142 = vmatprep.subr.mxu0 0.0
    %2143 = vmatpush1.msra.mxu0 0.0
    %2144 = vmatprep.mubr.f32.mxu0 0.0
    %2145 = vmatmul.mubr.f32.gmra.mrb[0].mxu0 %v2078
    %v2146 = vpop.f32.mrb[0].mxu0
    %v2147 = vadd.f32 0.0, %v2146
    %v2148 = vpop.f32.mrb[0].mxu0
    %2149 = vdwg.mxu0
    %v2151 = vsel %vm540, %v2147, 0
    %2153 = vmatprep.subr.mxu0 0.0
    %2154 = vmatpush1.msra.mxu0 %v1191
    %2155 = vmatprep.subr.mxu0 0.0
    %2156 = vmatpush1.msra.mxu0 0.0
    %2157 = vmatprep.subr.mxu0 0.0
    %2158 = vmatpush1.msra.mxu0 0.0
    %2159 = vmatprep.subr.mxu0 0.0
    %2160 = vmatpush1.msra.mxu0 0.0
    %2161 = vmatprep.subr.mxu0 0.0
    %2162 = vmatpush1.msra.mxu0 0.0
    %2163 = vmatprep.subr.mxu0 0.0
    %2164 = vmatpush1.msra.mxu0 0.0
    %2165 = vmatprep.subr.mxu0 0.0
    %2166 = vmatpush1.msra.mxu0 0.0
    %2167 = vmatprep.subr.mxu0 0.0
    %2168 = vmatpush1.msra.mxu0 0.0
    %2169 = vmatprep.subr.mxu0 0.0
    %2170 = vmatpush1.msra.mxu0 0.0
    %2171 = vmatprep.subr.mxu0 0.0
    %2172 = vmatpush1.msra.mxu0 0.0
    %2173 = vmatprep.subr.mxu0 0.0
    %2174 = vmatpush1.msra.mxu0 0.0
    %2175 = vmatprep.subr.mxu0 0.0
    %2176 = vmatpush1.msra.mxu0 0.0
    %2177 = vmatprep.subr.mxu0 0.0
    %2178 = vmatpush1.msra.mxu0 0.0
    %2179 = vmatprep.subr.mxu0 0.0
    %2180 = vmatpush1.msra.mxu0 0.0
    %2181 = vmatprep.subr.mxu0 0.0
    %2182 = vmatpush1.msra.mxu0 0.0
    %2183 = vmatprep.subr.mxu0 0.0
    %2184 = vmatpush1.msra.mxu0 0.0
    %2185 = vmatprep.subr.mxu0 0.0
    %2186 = vmatpush1.msra.mxu0 0.0
    %2187 = vmatprep.subr.mxu0 0.0
    %2188 = vmatpush1.msra.mxu0 0.0
    %2189 = vmatprep.subr.mxu0 0.0
    %2190 = vmatpush1.msra.mxu0 0.0
    %2191 = vmatprep.subr.mxu0 0.0
    %2192 = vmatpush1.msra.mxu0 0.0
    %2193 = vmatprep.subr.mxu0 0.0
    %2194 = vmatpush1.msra.mxu0 0.0
    %2195 = vmatprep.subr.mxu0 0.0
    %2196 = vmatpush1.msra.mxu0 0.0
    %2197 = vmatprep.subr.mxu0 0.0
    %2198 = vmatpush1.msra.mxu0 0.0
    %2199 = vmatprep.subr.mxu0 0.0
    %2200 = vmatpush1.msra.mxu0 0.0
    %2201 = vmatprep.subr.mxu0 0.0
    %2202 = vmatpush1.msra.mxu0 0.0
    %2203 = vmatprep.subr.mxu0 0.0
    %2204 = vmatpush1.msra.mxu0 0.0
    %2205 = vmatprep.subr.mxu0 0.0
    %2206 = vmatpush1.msra.mxu0 0.0
    %2207 = vmatprep.subr.mxu0 0.0
    %2208 = vmatpush1.msra.mxu0 0.0
    %2209 = vmatprep.subr.mxu0 0.0
    %2210 = vmatpush1.msra.mxu0 0.0
    %2211 = vmatprep.subr.mxu0 0.0
    %2212 = vmatpush1.msra.mxu0 0.0
    %2213 = vmatprep.subr.mxu0 0.0
    %2214 = vmatpush1.msra.mxu0 0.0
    %2215 = vmatprep.subr.mxu0 0.0
    %2216 = vmatpush1.msra.mxu0 0.0
    %2217 = vmatprep.mubr.f32.mxu0 0.0
    %2218 = vmatmul.mubr.f32.gmra.mrb[0].mxu0 %v2151
    %v2219 = vpop.f32.mrb[0].mxu0
    %v2220 = vadd.f32 0.0, %v2219
    %v2221 = vpop.f32.mrb[0].mxu0
    %2222 = vdwg.mxu0
    %v2223 = vadd.f32 %v1982, %v2220
    %2224 = vrot.lane.b32.xlu0 %v533, 104
    %v2225 = vpop.permute.xlu0 %2224
    %2226 = vrot.lane.b32.xlu0 %v539, 104
    %v2227 = vpop.permute.xlu0 %2226
    %v2228 = vsel %vm540, %v2225, 0
    %v2230 = vsel %vm540, %v2227, 0
    %2232 = vmatprep.subr.mxu0 0.0
    %2233 = vmatpush1.xpose.msra.mxu0 %v2230
    %2234 = vmatprep.subr.mxu0 0.0
    %2235 = vmatpush1.xpose.msra.mxu0 0.0
    %2236 = vmatprep.subr.mxu0 0.0
    %2237 = vmatpush1.xpose.msra.mxu0 0.0
    %2238 = vmatprep.subr.mxu0 0.0
    %2239 = vmatpush1.xpose.msra.mxu0 0.0
    %2240 = vmatprep.subr.mxu0 0.0
    %2241 = vmatpush1.xpose.msra.mxu0 0.0
    %2242 = vmatprep.subr.mxu0 0.0
    %2243 = vmatpush1.xpose.msra.mxu0 0.0
    %2244 = vmatprep.subr.mxu0 0.0
    %2245 = vmatpush1.xpose.msra.mxu0 0.0
    %2246 = vmatprep.subr.mxu0 0.0
    %2247 = vmatpush1.xpose.msra.mxu0 0.0
    %2248 = vmatprep.subr.mxu0 0.0
    %2249 = vmatpush1.xpose.msra.mxu0 0.0
    %2250 = vmatprep.subr.mxu0 0.0
    %2251 = vmatpush1.xpose.msra.mxu0 0.0
    %2252 = vmatprep.subr.mxu0 0.0
    %2253 = vmatpush1.xpose.msra.mxu0 0.0
    %2254 = vmatprep.subr.mxu0 0.0
    %2255 = vmatpush1.xpose.msra.mxu0 0.0
    %2256 = vmatprep.subr.mxu0 0.0
    %2257 = vmatpush1.xpose.msra.mxu0 0.0
    %2258 = vmatprep.subr.mxu0 0.0
    %2259 = vmatpush1.xpose.msra.mxu0 0.0
    %2260 = vmatprep.subr.mxu0 0.0
    %2261 = vmatpush1.xpose.msra.mxu0 0.0
    %2262 = vmatprep.subr.mxu0 0.0
    %2263 = vmatpush1.xpose.msra.mxu0 0.0
    %2264 = vmatprep.subr.mxu0 0.0
    %2265 = vmatpush1.xpose.msra.mxu0 0.0
    %2266 = vmatprep.subr.mxu0 0.0
    %2267 = vmatpush1.xpose.msra.mxu0 0.0
    %2268 = vmatprep.subr.mxu0 0.0
    %2269 = vmatpush1.xpose.msra.mxu0 0.0
    %2270 = vmatprep.subr.mxu0 0.0
    %2271 = vmatpush1.xpose.msra.mxu0 0.0
    %2272 = vmatprep.subr.mxu0 0.0
    %2273 = vmatpush1.xpose.msra.mxu0 0.0
    %2274 = vmatprep.subr.mxu0 0.0
    %2275 = vmatpush1.xpose.msra.mxu0 0.0
    %2276 = vmatprep.subr.mxu0 0.0
    %2277 = vmatpush1.xpose.msra.mxu0 0.0
    %2278 = vmatprep.subr.mxu0 0.0
    %2279 = vmatpush1.xpose.msra.mxu0 0.0
    %2280 = vmatprep.subr.mxu0 0.0
    %2281 = vmatpush1.xpose.msra.mxu0 0.0
    %2282 = vmatprep.subr.mxu0 0.0
    %2283 = vmatpush1.xpose.msra.mxu0 0.0
    %2284 = vmatprep.subr.mxu0 0.0
    %2285 = vmatpush1.xpose.msra.mxu0 0.0
    %2286 = vmatprep.subr.mxu0 0.0
    %2287 = vmatpush1.xpose.msra.mxu0 0.0
    %2288 = vmatprep.subr.mxu0 0.0
    %2289 = vmatpush1.xpose.msra.mxu0 0.0
    %2290 = vmatprep.subr.mxu0 0.0
    %2291 = vmatpush1.xpose.msra.mxu0 0.0
    %2292 = vmatprep.subr.mxu0 0.0
    %2293 = vmatpush1.xpose.msra.mxu0 0.0
    %2294 = vmatprep.subr.mxu0 0.0
    %2295 = vmatpush1.xpose.msra.mxu0 0.0
    %2296 = vmatprep.mubr.f32.mxu0 0.0
    %2297 = vmatmul.mubr.f32.gmra.mrb[0].mxu0 %v2228
    %v2298 = vpop.f32.mrb[0].mxu0
    %v2299 = vadd.f32 0.0, %v2298
    %v2300 = vpop.f32.mrb[0].mxu0
    %2301 = vdwg.mxu0
    %v2302 = vsel %vm540, %v2299, -inf
    %2303 = vmax.xlane.f32.xlu0 %v2302
    %v2304 = vpop.xlane.xlu0 %2303
    %v2305 = vsub.f32 %v2299, %v2304
    %v2306 = vmul.f32 %v2305, 1.442695
    %v2307 = vpow.pop %v2306
    %v2308 = vsel %vm540, %v2307, 0.0
    %2309 = vadd.xlane.f32.xlu0 %v2308
    %v2310 = vpop.xlane.xlu0 %2309
    %v2311 = vrcp.pop %v2310
    %v2312 = vmul.f32 %v2307, %v2311
    %2313 = vrot.lane.b32.xlu0 %v259, 72
    %v2314 = vpop.permute.xlu0 %2313
    %v2317 = vsel %vm540, %v2312, 0
    %2319 = vmatprep.subr.mxu0 0.0
    %2320 = vmatpush1.msra.mxu0 %v2314
    %2321 = vmatprep.subr.mxu0 0.0
    %2322 = vmatpush1.msra.mxu0 0.0
    %2323 = vmatprep.subr.mxu0 0.0
    %2324 = vmatpush1.msra.mxu0 0.0
    %2325 = vmatprep.subr.mxu0 0.0
    %2326 = vmatpush1.msra.mxu0 0.0
    %2327 = vmatprep.subr.mxu0 0.0
    %2328 = vmatpush1.msra.mxu0 0.0
    %2329 = vmatprep.subr.mxu0 0.0
    %2330 = vmatpush1.msra.mxu0 0.0
    %2331 = vmatprep.subr.mxu0 0.0
    %2332 = vmatpush1.msra.mxu0 0.0
    %2333 = vmatprep.subr.mxu0 0.0
    %2334 = vmatpush1.msra.mxu0 0.0
    %2335 = vmatprep.subr.mxu0 0.0
    %2336 = vmatpush1.msra.mxu0 0.0
    %2337 = vmatprep.subr.mxu0 0.0
    %2338 = vmatpush1.msra.mxu0 0.0
    %2339 = vmatprep.subr.mxu0 0.0
    %2340 = vmatpush1.msra.mxu0 0.0
    %2341 = vmatprep.subr.mxu0 0.0
    %2342 = vmatpush1.msra.mxu0 0.0
    %2343 = vmatprep.subr.mxu0 0.0
    %2344 = vmatpush1.msra.mxu0 0.0
    %2345 = vmatprep.subr.mxu0 0.0
    %2346 = vmatpush1.msra.mxu0 0.0
    %2347 = vmatprep.subr.mxu0 0.0
    %2348 = vmatpush1.msra.mxu0 0.0
    %2349 = vmatprep.subr.mxu0 0.0
    %2350 = vmatpush1.msra.mxu0 0.0
    %2351 = vmatprep.subr.mxu0 0.0
    %2352 = vmatpush1.msra.mxu0 0.0
    %2353 = vmatprep.subr.mxu0 0.0
    %2354 = vmatpush1.msra.mxu0 0.0
    %2355 = vmatprep.subr.mxu0 0.0
    %2356 = vmatpush1.msra.mxu0 0.0
    %2357 = vmatprep.subr.mxu0 0.0
    %2358 = vmatpush1.msra.mxu0 0.0
    %2359 = vmatprep.subr.mxu0 0.0
    %2360 = vmatpush1.msra.mxu0 0.0
    %2361 = vmatprep.subr.mxu0 0.0
    %2362 = vmatpush1.msra.mxu0 0.0
    %2363 = vmatprep.subr.mxu0 0.0
    %2364 = vmatpush1.msra.mxu0 0.0
    %2365 = vmatprep.subr.mxu0 0.0
    %2366 = vmatpush1.msra.mxu0 0.0
    %2367 = vmatprep.subr.mxu0 0.0
    %2368 = vmatpush1.msra.mxu0 0.0
    %2369 = vmatprep.subr.mxu0 0.0
    %2370 = vmatpush1.msra.mxu0 0.0
    %2371 = vmatprep.subr.mxu0 0.0
    %2372 = vmatpush1.msra.mxu0 0.0
    %2373 = vmatprep.subr.mxu0 0.0
    %2374 = vmatpush1.msra.mxu0 0.0
    %2375 = vmatprep.subr.mxu0 0.0
    %2376 = vmatpush1.msra.mxu0 0.0
    %2377 = vmatprep.subr.mxu0 0.0
    %2378 = vmatpush1.msra.mxu0 0.0
    %2379 = vmatprep.subr.mxu0 0.0
    %2380 = vmatpush1.msra.mxu0 0.0
    %2381 = vmatprep.subr.mxu0 0.0
    %2382 = vmatpush1.msra.mxu0 0.0
    %2383 = vmatprep.mubr.f32.mxu0 0.0
    %2384 = vmatmul.mubr.f32.gmra.mrb[0].mxu0 %v2317
    %v2385 = vpop.f32.mrb[0].mxu0
    %v2386 = vadd.f32 0.0, %v2385
    %v2387 = vpop.f32.mrb[0].mxu0
    %2388 = vdwg.mxu0
    %v2390 = vsel %vm540, %v2386, 0
    %2392 = vmatprep.subr.mxu0 0.0
    %2393 = vmatpush1.msra.mxu0 %v1434
    %2394 = vmatprep.subr.mxu0 0.0
    %2395 = vmatpush1.msra.mxu0 0.0
    %2396 = vmatprep.subr.mxu0 0.0
    %2397 = vmatpush1.msra.mxu0 0.0
    %2398 = vmatprep.subr.mxu0 0.0
    %2399 = vmatpush1.msra.mxu0 0.0
    %2400 = vmatprep.subr.mxu0 0.0
    %2401 = vmatpush1.msra.mxu0 0.0
    %2402 = vmatprep.subr.mxu0 0.0
    %2403 = vmatpush1.msra.mxu0 0.0
    %2404 = vmatprep.subr.mxu0 0.0
    %2405 = vmatpush1.msra.mxu0 0.0
    %2406 = vmatprep.subr.mxu0 0.0
    %2407 = vmatpush1.msra.mxu0 0.0
    %2408 = vmatprep.subr.mxu0 0.0
    %2409 = vmatpush1.msra.mxu0 0.0
    %2410 = vmatprep.subr.mxu0 0.0
    %2411 = vmatpush1.msra.mxu0 0.0
    %2412 = vmatprep.subr.mxu0 0.0
    %2413 = vmatpush1.msra.mxu0 0.0
    %2414 = vmatprep.subr.mxu0 0.0
    %2415 = vmatpush1.msra.mxu0 0.0
    %2416 = vmatprep.subr.mxu0 0.0
    %2417 = vmatpush1.msra.mxu0 0.0
    %2418 = vmatprep.subr.mxu0 0.0
    %2419 = vmatpush1.msra.mxu0 0.0
    %2420 = vmatprep.subr.mxu0 0.0
    %2421 = vmatpush1.msra.mxu0 0.0
    %2422 = vmatprep.subr.mxu0 0.0
    %2423 = vmatpush1.msra.mxu0 0.0
    %2424 = vmatprep.subr.mxu0 0.0
    %2425 = vmatpush1.msra.mxu0 0.0
    %2426 = vmatprep.subr.mxu0 0.0
    %2427 = vmatpush1.msra.mxu0 0.0
    %2428 = vmatprep.subr.mxu0 0.0
    %2429 = vmatpush1.msra.mxu0 0.0
    %2430 = vmatprep.subr.mxu0 0.0
    %2431 = vmatpush1.msra.mxu0 0.0
    %2432 = vmatprep.subr.mxu0 0.0
    %2433 = vmatpush1.msra.mxu0 0.0
    %2434 = vmatprep.subr.mxu0 0.0
    %2435 = vmatpush1.msra.mxu0 0.0
    %2436 = vmatprep.subr.mxu0 0.0
    %2437 = vmatpush1.msra.mxu0 0.0
    %2438 = vmatprep.subr.mxu0 0.0
    %2439 = vmatpush1.msra.mxu0 0.0
    %2440 = vmatprep.subr.mxu0 0.0
    %2441 = vmatpush1.msra.mxu0 0.0
    %2442 = vmatprep.subr.mxu0 0.0
    %2443 = vmatpush1.msra.mxu0 0.0
    %2444 = vmatprep.subr.mxu0 0.0
    %2445 = vmatpush1.msra.mxu0 0.0
    %2446 = vmatprep.subr.mxu0 0.0
    %2447 = vmatpush1.msra.mxu0 0.0
    %2448 = vmatprep.subr.mxu0 0.0
    %2449 = vmatpush1.msra.mxu0 0.0
    %2450 = vmatprep.subr.mxu0 0.0
    %2451 = vmatpush1.msra.mxu0 0.0
    %2452 = vmatprep.subr.mxu0 0.0
    %2453 = vmatpush1.msra.mxu0 0.0
    %2454 = vmatprep.subr.mxu0 0.0
    %2455 = vmatpush1.msra.mxu0 0.0
    %2456 = vmatprep.mubr.f32.mxu0 0.0
    %2457 = vmatmul.mubr.f32.gmra.mrb[0].mxu0 %v2390
    %v2458 = vpop.f32.mrb[0].mxu0
    %v2459 = vadd.f32 0.0, %v2458
    %v2460 = vpop.f32.mrb[0].mxu0
    %2461 = vdwg.mxu0
    %v2462 = vadd.f32 %v2223, %v2459
    %2464 = vrot.lane.b32.xlu0 %v88, 64
    %v2465 = vpop.permute.xlu0 %2464
    %v2467 = vadd.f32 %v1509, %v2465
    %v2468 = vadd.f32 %v2462, %v2465
    %v2469 = vadd.f32 %v39, %v2467
    %v2470 = vadd.f32 %v40, %v2468
    %v2471 = vmul.f32 %v2469, %v2469
    %v2472 = vmul.f32 %v2470, %v2470
    %v2473 = vsel %vm69, %v2471, 0.0
    %2474 = vadd.xlane.f32.xlu0 %v2473
    %v2475 = vpop.xlane.xlu0 %2474
    %v2476 = vsel %vm69, %v2472, 0.0
    %2477 = vadd.xlane.f32.xlu0 %v2476
    %v2478 = vpop.xlane.xlu0 %2477
    %v2479 = vmul.f32 %v2475, %v76
    %v2480 = vmul.f32 %v2478, %v76
    %v2481 = vadd.f32 %v2479, 1e-06
    %v2482 = vadd.f32 %v2480, 1e-06
    %v2483 = vrsqrt.pop %v2481
    %v2484 = vrsqrt.pop %v2482
    %v2485 = vmul.f32 %v2469, %v2483
    %v2486 = vmul.f32 %v2470, %v2484
    %2487 = vrot.lane.b32.xlu0 %v88, 96
    %v2488 = vpop.permute.xlu0 %2487
    %v2490 = vmul.f32 %v2485, %v2488
    %v2491 = vmul.f32 %v2486, %v2488
    %v2492 = vlaneseq
    %v2493 = vshrl.u32 %v2492, 7
    %v2494 = vsub.s32 0, %v2493
    %v2495 = vrot.slane %v44, %v2494
    %v2497 = vsel %vm69, %v2490, 0
    %v2500 = vsel %vm69, %v2491, 0
    %2502 = vmatprep.subr.mxu0 0.0
    %2503 = vmatpush1.msra.mxu0 %v55
    %2504 = vmatprep.subr.mxu0 0.0
    %2505 = vmatpush1.msra.mxu0 %v56
    %2506 = vmatprep.subr.mxu0 0.0
    %2507 = vmatpush1.msra.mxu0 %v57
    %2508 = vmatprep.subr.mxu0 0.0
    %2509 = vmatpush1.msra.mxu0 %v58
    %2510 = vmatprep.subr.mxu0 0.0
    %2511 = vmatpush1.msra.mxu0 0.0
    %2512 = vmatprep.subr.mxu0 0.0
    %2513 = vmatpush1.msra.mxu0 0.0
    %2514 = vmatprep.subr.mxu0 0.0
    %2515 = vmatpush1.msra.mxu0 0.0
    %2516 = vmatprep.subr.mxu0 0.0
    %2517 = vmatpush1.msra.mxu0 0.0
    %2518 = vmatprep.subr.mxu0 0.0
    %2519 = vmatpush1.msra.mxu0 0.0
    %2520 = vmatprep.subr.mxu0 0.0
    %2521 = vmatpush1.msra.mxu0 0.0
    %2522 = vmatprep.subr.mxu0 0.0
    %2523 = vmatpush1.msra.mxu0 0.0
    %2524 = vmatprep.subr.mxu0 0.0
    %2525 = vmatpush1.msra.mxu0 0.0
    %2526 = vmatprep.subr.mxu0 0.0
    %2527 = vmatpush1.msra.mxu0 0.0
    %2528 = vmatprep.subr.mxu0 0.0
    %2529 = vmatpush1.msra.mxu0 0.0
    %2530 = vmatprep.subr.mxu0 0.0
    %2531 = vmatpush1.msra.mxu0 0.0
    %2532 = vmatprep.subr.mxu0 0.0
    %2533 = vmatpush1.msra.mxu0 0.0
    %2534 = vmatprep.subr.mxu0 0.0
    %2535 = vmatpush1.msra.mxu0 0.0
    %2536 = vmatprep.subr.mxu0 0.0
    %2537 = vmatpush1.msra.mxu0 0.0
    %2538 = vmatprep.subr.mxu0 0.0
    %2539 = vmatpush1.msra.mxu0 0.0
    %2540 = vmatprep.subr.mxu0 0.0
    %2541 = vmatpush1.msra.mxu0 0.0
    %2542 = vmatprep.subr.mxu0 0.0
    %2543 = vmatpush1.msra.mxu0 0.0
    %2544 = vmatprep.subr.mxu0 0.0
    %2545 = vmatpush1.msra.mxu0 0.0
    %2546 = vmatprep.subr.mxu0 0.0
    %2547 = vmatpush1.msra.mxu0 0.0
    %2548 = vmatprep.subr.mxu0 0.0
    %2549 = vmatpush1.msra.mxu0 0.0
    %2550 = vmatprep.subr.mxu0 0.0
    %2551 = vmatpush1.msra.mxu0 0.0
    %2552 = vmatprep.subr.mxu0 0.0
    %2553 = vmatpush1.msra.mxu0 0.0
    %2554 = vmatprep.subr.mxu0 0.0
    %2555 = vmatpush1.msra.mxu0 0.0
    %2556 = vmatprep.subr.mxu0 0.0
    %2557 = vmatpush1.msra.mxu0 0.0
    %2558 = vmatprep.subr.mxu0 0.0
    %2559 = vmatpush1.msra.mxu0 0.0
    %2560 = vmatprep.subr.mxu0 0.0
    %2561 = vmatpush1.msra.mxu0 0.0
    %2562 = vmatprep.subr.mxu0 0.0
    %2563 = vmatpush1.msra.mxu0 0.0
    %2564 = vmatprep.subr.mxu0 0.0
    %2565 = vmatpush1.msra.mxu0 0.0
    %2566 = vmatprep.mubr.f32.mxu0 0.0
    %2567 = vmatmul.mubr.f32.gmra.mrb[0].mxu0 %v2497
    %v2568 = vpop.f32.mrb[0].mxu0
    %v2569 = vadd.f32 %v2495, %v2568
    %v2570 = vpop.f32.mrb[0].mxu0
    %2571 = vmatprep.mubr.f32.mxu0 0.0
    %2572 = vmatmul.mubr.f32.gmra.mrb[0].mxu0 %v2500
    %v2573 = vpop.f32.mrb[0].mxu0
    %v2574 = vadd.f32 %v2495, %v2573
    %v2575 = vpop.f32.mrb[0].mxu0
    %2576 = vdwg.mxu0
    %v2577 = vxor.u32 %v2569, 2147483648
    %v2578 = vxor.u32 %v2574, 2147483648
    %v2579 = vmul.f32 %v2577, 1.442695
    %v2580 = vpow.pop %v2579
    %v2581 = vmul.f32 %v2578, 1.442695
    %v2582 = vpow.pop %v2581
    %v2583 = vadd.f32 %v2580, 1.0
    %v2584 = vadd.f32 %v2582, 1.0
    %v2585 = vrcp.pop %v2583
    %v2586 = vmul.f32 1.0, %v2585
    %v2587 = vrcp.pop %v2584
    %v2588 = vmul.f32 1.0, %v2587
    %v2589 = vmul.f32 %v2569, %v2586
    %v2590 = vmul.f32 %v2574, %v2588
    %2593 = vrot.lane.b32.xlu0 %v2569, 64
    %v2594 = vpop.permute.xlu0 %2593
    %2595 = vrot.lane.b32.xlu0 %v2574, 64
    %v2596 = vpop.permute.xlu0 %2595
    %v2599 = vmul.f32 %v2589, %v2594
    %v2600 = vmul.f32 %v2590, %v2596
    %2601 = vrot.lane.b32.xlu0 %v88, 32
    %v2602 = vpop.permute.xlu0 %2601
    %vm2604 = vcmask 523264
    %v2606 = vsel %vm2604, %v2599, 0
    %v2609 = vsel %vm2604, %v2600, 0
    %2611 = vmatprep.subr.mxu0 0.0
    %2612 = vmatpush1.msra.mxu0 %v59
    %2613 = vmatprep.subr.mxu0 0.0
    %2614 = vmatpush1.msra.mxu0 %v60
    %2615 = vmatprep.subr.mxu0 0.0
    %2616 = vmatpush1.msra.mxu0 %v61
    %2617 = vmatprep.subr.mxu0 0.0
    %2618 = vmatpush1.msra.mxu0 %v62
    %2619 = vmatprep.subr.mxu0 0.0
    %2620 = vmatpush1.msra.mxu0 %v63
    %2621 = vmatprep.subr.mxu0 0.0
    %2622 = vmatpush1.msra.mxu0 %v64
    %2623 = vmatprep.subr.mxu0 0.0
    %2624 = vmatpush1.msra.mxu0 %v65
    %2625 = vmatprep.subr.mxu0 0.0
    %2626 = vmatpush1.msra.mxu0 %v66
    %2627 = vmatprep.subr.mxu0 0.0
    %2628 = vmatpush1.msra.mxu0 0.0
    %2629 = vmatprep.subr.mxu0 0.0
    %2630 = vmatpush1.msra.mxu0 0.0
    %2631 = vmatprep.subr.mxu0 0.0
    %2632 = vmatpush1.msra.mxu0 0.0
    %2633 = vmatprep.subr.mxu0 0.0
    %2634 = vmatpush1.msra.mxu0 0.0
    %2635 = vmatprep.subr.mxu0 0.0
    %2636 = vmatpush1.msra.mxu0 0.0
    %2637 = vmatprep.subr.mxu0 0.0
    %2638 = vmatpush1.msra.mxu0 0.0
    %2639 = vmatprep.subr.mxu0 0.0
    %2640 = vmatpush1.msra.mxu0 0.0
    %2641 = vmatprep.subr.mxu0 0.0
    %2642 = vmatpush1.msra.mxu0 0.0
    %2643 = vmatprep.subr.mxu0 0.0
    %2644 = vmatpush1.msra.mxu0 0.0
    %2645 = vmatprep.subr.mxu0 0.0
    %2646 = vmatpush1.msra.mxu0 0.0
    %2647 = vmatprep.subr.mxu0 0.0
    %2648 = vmatpush1.msra.mxu0 0.0
    %2649 = vmatprep.subr.mxu0 0.0
    %2650 = vmatpush1.msra.mxu0 0.0
    %2651 = vmatprep.subr.mxu0 0.0
    %2652 = vmatpush1.msra.mxu0 0.0
    %2653 = vmatprep.subr.mxu0 0.0
    %2654 = vmatpush1.msra.mxu0 0.0
    %2655 = vmatprep.subr.mxu0 0.0
    %2656 = vmatpush1.msra.mxu0 0.0
    %2657 = vmatprep.subr.mxu0 0.0
    %2658 = vmatpush1.msra.mxu0 0.0
    %2659 = vmatprep.subr.mxu0 0.0
    %2660 = vmatpush1.msra.mxu0 0.0
    %2661 = vmatprep.subr.mxu0 0.0
    %2662 = vmatpush1.msra.mxu0 0.0
    %2663 = vmatprep.subr.mxu0 0.0
    %2664 = vmatpush1.msra.mxu0 0.0
    %2665 = vmatprep.subr.mxu0 0.0
    %2666 = vmatpush1.msra.mxu0 0.0
    %2667 = vmatprep.subr.mxu0 0.0
    %2668 = vmatpush1.msra.mxu0 0.0
    %2669 = vmatprep.subr.mxu0 0.0
    %2670 = vmatpush1.msra.mxu0 0.0
    %2671 = vmatprep.subr.mxu0 0.0
    %2672 = vmatpush1.msra.mxu0 0.0
    %2673 = vmatprep.subr.mxu0 0.0
    %2674 = vmatpush1.msra.mxu0 0.0
    %2675 = vmatprep.mubr.f32.mxu0 0.0
    %2676 = vmatmul.mubr.f32.gmra.mrb[0].mxu0 %v2606
    %v2677 = vpop.f32.mrb[0].mxu0
    %v2678 = vadd.f32 %v2602, %v2677
    %v2679 = vpop.f32.mrb[0].mxu0
    %2680 = vmatprep.mubr.f32.mxu0 0.0
    %2681 = vmatmul.mubr.f32.gmra.mrb[0].mxu0 %v2609
    %v2682 = vpop.f32.mrb[0].mxu0
    %v2683 = vadd.f32 %v2602, %v2682
    %v2684 = vpop.f32.mrb[0].mxu0
    %2685 = vdwg.mxu0
    %v2686 = vadd.f32 %v2469, %v2678
    %v2687 = vadd.f32 %v2470, %v2683
    %2688 = vrot.lane.b32.xlu0 %v538, 32
    %v2689 = vpop.permute.xlu0 %2688
    %2690 = vrot.lane.b32.xlu0 %v539, 32
    %v2691 = vpop.permute.xlu0 %2690
    %2694 = vrot.lane.b32.xlu0 %v254, 32
    %v2695 = vpop.permute.xlu0 %2694
    %2696 = vrot.lane.b32.xlu0 %v259, 32
    %v2697 = vpop.permute.xlu0 %2696
    %v2700 = vsel %vm69, %v2686, %v2689
    %v2701 = vsel %vm69, %v2687, %v2691
    %v2702 = vsel %vm2604, %v2700, %v2695
    %v2703 = vsel %vm2604, %v2701, %v2697
    %vm2704 = vcmask 785408
    %v2705 = vsel %vm2704, %v2702, 0.0
    %v2706 = vsel %vm2704, %v2703, 0.0
    %2707 = vst [vmem:[%s2] sm:$0xff] %v2705
    %2708 = vst [vmem:[%s2 + $0x8] sm:$0xff] %v2706
    // Predicated region
    $region18: #{quasar_block_pallas.1} parent=1 // pred_check
      _
    $region19: #{quasar_block_pallas.1} parent=1 // pred_check_branch
      %2710 = sbr.rel (0) target = $region21
    $region20: #{quasar_block_pallas.1} parent=1 // pred_region
      _
    $region21: #{quasar_block_pallas.1} parent=1 // pred_fallthru
      _
    // Predicated region
    $region22: #{quasar_block_pallas.1} parent=1 // pred_check
      _
    $region23: #{quasar_block_pallas.1} parent=1 // pred_check_branch
      %2712 = sbr.rel (0) target = $region25
    $region24: #{quasar_block_pallas.1} parent=1 // pred_region
      _
    $region25: #{quasar_block_pallas.1} parent=1 // pred_fallthru
      _
    %2713 = vsyncpa [#allocation3], 1
    %2714 = vsyncpa [#allocation5], 1

</llo_original>
